<compile_context>
chip_gen: v6e
topology: v6e:2x2x1
jax: 0.10.0
libtpu: 0.0.40
codegen_flags: <defaults>
</compile_context>

<pallas_src>
import functools

import jax
import jax.numpy as jnp
import numpy as np
from jax.experimental import pallas as pl
from jax.experimental.pallas import tpu as pltpu

BN_EPS = 1e-5
LEAKY_SLOPE = 0.1
LANE = 128


# ------------------------------ fused Pallas kernel ------------------------------ #

def _yolo_res_block_kernel(xm_ref, xh_ref, w1_ref, b1_ref, w2_ref, b2_ref,
                           o_ref, y1_ref, *, residual):
    # xm_ref: (TH, Wp2, Cp)    bf16  main row-block of the W/C padded input
    # xh_ref: (2, Wp2, Cp)     bf16  top / bottom halo rows for this tile (zeros at edges)
    # w1_ref: (Cp, Mp)         bf16  1x1 conv weight, BN scale folded in
    # b1_ref: (1, Mp)          f32   folded BN shift of conv1
    # w2_ref: (9, Mp, Np)      bf16  3x3 conv weight, tap-major (ky,kx), BN scale folded in
    # b2_ref: (1, Np)          f32   folded BN shift of conv2
    # o_ref : (TH, W, Np)      bf16  output row-block
    # y1_ref: (TH+2, Wp2, Mp)  bf16  VMEM scratch: conv1 output incl. 1-row halo
    th, w, npad = o_ref.shape
    _, wp2, cp = xm_ref.shape
    mp = w1_ref.shape[1]
    h = pl.program_id(1)
    nh = pl.num_programs(1)

    # Columns 1..W of the padded frame hold real data; columns 0 and W+1.. are conv2's
    # zero padding (and W-alignment padding) and must stay exactly zero in y1, because
    # lrelu(0 @ w1 + b1) != 0.
    col = jax.lax.broadcasted_iota(jnp.int32, (1, wp2, 1), 1)
    col_ok = (col >= 1) & (col <= w)

    def conv1(x2d, nrows):
        y = jnp.dot(x2d, w1_ref[...], preferred_element_type=jnp.float32)
        y = y + b1_ref[...]                               # folded BN shift
        y = jnp.where(y > 0, y, LEAKY_SLOPE * y)          # LeakyReLU
        y = y.reshape(nrows, wp2, mp)
        return jnp.where(col_ok, y, 0.0)                  # zero the padded columns

    # ---- conv1 (1x1) on the main rows, stitched into the y1 scratch ----
    xm = xm_ref[...]                                      # (th, Wp2, Cp) bf16, resident
    ym = conv1(xm.reshape(th * wp2, cp), th)
    y1_ref[1:th + 1] = ym.astype(jnp.bfloat16)

    # ---- conv1 on the two halo rows; gate out-of-image rows to zero ----
    yh = conv1(xh_ref[...].reshape(2 * wp2, cp), 2)
    top_ok = (h > 0).astype(jnp.float32)
    bot_ok = (h < nh - 1).astype(jnp.float32)
    y1_ref[0:1] = (yh[0:1] * top_ok).astype(jnp.bfloat16)
    y1_ref[th + 1:th + 2] = (yh[1:2] * bot_ok).astype(jnp.bfloat16)

    # ---- conv2 (3x3, pad=1): 9 full-width matmuls, kx alignment via XLU rolls ----
    # y1 slices along ky are leading-dim slices (no relayout); each kx partial sum is a
    # full-width f32 slab that only needs a sublane roll by kx before being folded in.
    y1s = [y1_ref[ky:ky + th].reshape(th * wp2, mp) for ky in range(3)]
    n_flat = th * wp2
    y2 = None
    for kx in range(3):
        s = None
        for ky in range(3):
            part = jnp.dot(y1s[ky], w2_ref[3 * ky + kx],
                           preferred_element_type=jnp.float32)
            s = part if s is None else s + part
        if kx:
            # output column j needs s_kx at column j+kx  (roll by -kx == +(n-kx))
            s = pltpu.roll(s, n_flat - kx, 0)
        y2 = s if y2 is None else y2 + s

    y2 = y2 + b2_ref[...]                                 # folded BN shift
    y2 = jnp.where(y2 > 0, y2, LEAKY_SLOPE * y2)          # LeakyReLU

    if residual:
        # Residual reuses the resident x tile.  Output column j corresponds to padded
        # column j+1, so shift x left by one column (module requires C == Nout).
        xres = xm.reshape(th * wp2, cp).astype(jnp.float32)
        y2 = y2 + pltpu.roll(xres, n_flat - 1, 0)

    y2 = y2.reshape(th, wp2, npad)
    o_ref[...] = y2[:, :w, :].astype(o_ref.dtype)         # crop alignment pad, store bf16


# ----------------------------------- wrapper ------------------------------------- #

def _round_up(x, m):
    return ((x + m - 1) // m) * m


def _fold_bn(gamma, beta, mean, var):
    scale = gamma / jnp.sqrt(var + BN_EPS)
    shift = beta - mean * scale
    return scale, shift


def _vmem_limit_bytes():
    """Per-generation VMEM budget: 128 MiB on v5e/v6e, 64 MiB on v7x (conservative default)."""
    phys = 64 * 1024 * 1024
    try:
        info = pltpu.get_tpu_info()
        for name in ("vmem_capacity_bytes", "vmem_bytes", "vmem_size_bytes"):
            v = getattr(info, name, None)
            if v:
                phys = int(v)
                break
    except Exception:
        pass
    phys = min(max(phys, 64 * 1024 * 1024), 256 * 1024 * 1024)
    return (phys * 3) // 4                       # v7x: 48 MiB, v5e/v6e: 96 MiB


def _vmem_estimate_bytes(th, W, Wp2, Cp, Mp, Np, residual):
    """Conservative per-tile working-set estimate (double-buffered blocks + temporaries)."""
    bf16, f32 = 2, 4
    xm_blk = th * Wp2 * Cp * bf16
    xh_blk = 2 * Wp2 * Cp * bf16
    out_blk = th * W * Np * bf16
    weights = Cp * Mp * bf16 + 9 * Mp * Np * bf16 + (Mp + Np) * f32
    y1_scratch = (th + 2) * Wp2 * Mp * bf16
    conv1_live = th * Wp2 * (Cp * bf16 + Mp * f32 + Mp * bf16)
    conv2_live = th * Wp2 * (2 * Np * f32 + 2 * Mp * bf16)
    if residual:
        conv2_live += th * Wp2 * Cp * f32
    return (2 * (xm_blk + xh_blk + out_blk) + 2 * weights
            + y1_scratch + max(conv1_live, conv2_live))


def _pick_tile_h(H, W, Wp2, Cp, Mp, Np, residual, budget):
    """Largest row tile that divides H and fits the VMEM budget; prefer >=2 row tiles
    (pipelining / megacore) as long as the tile stays reasonably big."""
    divs = sorted({d for d in range(1, H + 1) if H % d == 0}, reverse=True)
    fits = [d for d in divs
            if _vmem_estimate_bytes(d, W, Wp2, Cp, Mp, Np, residual) <= budget]
    if not fits:
        return 1
    multi = [d for d in fits if H // d >= 2]
    if multi and multi[0] >= 8:
        return multi[0]
    return fits[0]


def yolo_res_block(x_nchw, params, *, res):
    """Forward pass of YoloResBlock. Input/output are NCHW float32 (PyTorch convention)."""
    N, C, H, W = x_nchw.shape
    w1 = params["w1"]                                   # (M, C, 1, 1)  PyTorch OIHW
    w2 = params["w2"]                                   # (Nout, M, 3, 3)
    M, Nout = w1.shape[0], w2.shape[0]
    if res and C != Nout:
        raise ValueError("residual path requires C == Nout")

    Cp, Mp, Np = _round_up(C, LANE), _round_up(M, LANE), _round_up(Nout, LANE)
    Wp2 = _round_up(W + 2, 8)                           # sublane-aligned padded width

    # ---- fold BatchNorm: scale into weights (bf16), keep shift as a per-channel bias ----
    s1, sh1 = _fold_bn(params["g1"], params["be1"], params["m1"], params["v1"])
    s2, sh2 = _fold_bn(params["g2"], params["be2"], params["m2"], params["v2"])
    w1_mat = jnp.transpose(w1[:, :, 0, 0], (1, 0)) * s1                 # (C, M)
    w2_mat = jnp.transpose(w2, (2, 3, 1, 0)).reshape(9, M, Nout) * s2   # (9, M, Nout)

    w1_p = jnp.pad(w1_mat, ((0, Cp - C), (0, Mp - M))).astype(jnp.bfloat16)
    w2_p = jnp.pad(w2_mat, ((0, 0), (0, Mp - M), (0, Np - Nout))).astype(jnp.bfloat16)
    b1_p = jnp.pad(sh1, (0, Mp - M)).reshape(1, Mp).astype(jnp.float32)
    b2_p = jnp.pad(sh2, (0, Np - Nout)).reshape(1, Np).astype(jnp.float32)

    # ---- NHWC, pad only W (1 zero col + alignment) and channels: single padded copy ----
    x_nhwc = jnp.transpose(x_nchw, (0, 2, 3, 1)).astype(jnp.bfloat16)
    xp = jnp.pad(x_nhwc, ((0, 0), (0, 0), (1, Wp2 - W - 1), (0, Cp - C)))   # (N,H,Wp2,Cp)

    vmem_limit = _vmem_limit_bytes()
    th = _pick_tile_h(H, W, Wp2, Cp, Mp, Np, res, budget=(vmem_limit * 85) // 100)
    nH = H // th

    # Tiny halo side-array: 2 rows per tile (top = row h*th-1, bottom = row h*th+th),
    # zeros at the image edges.  No duplicated full copy of x in HBM.
    zrow = jnp.zeros((N, 1, Wp2, Cp), jnp.bfloat16)
    if nH > 1:
        tops = jnp.concatenate([zrow, xp[:, th - 1::th][:, :nH - 1]], axis=1)
        bots = jnp.concatenate([xp[:, th::th], zrow], axis=1)
    else:
        tops, bots = zrow, zrow
    x_halo = jnp.stack([tops, bots], axis=2)                                # (N,nH,2,Wp2,Cp)

    kernel = functools.partial(_yolo_res_block_kernel, residual=res)
    out = pl.pallas_call(
        kernel,
        out_shape=jax.ShapeDtypeStruct((N, H, W, Np), jnp.bfloat16),
        grid=(N, nH),
        in_specs=[
            pl.BlockSpec((None, th, Wp2, Cp), lambda n, h: (n, h, 0, 0)),
            pl.BlockSpec((None, None, 2, Wp2, Cp), lambda n, h: (n, h, 0, 0, 0)),
            pl.BlockSpec((Cp, Mp), lambda n, h: (0, 0)),
            pl.BlockSpec((1, Mp), lambda n, h: (0, 0)),
            pl.BlockSpec((9, Mp, Np), lambda n, h: (0, 0, 0)),
            pl.BlockSpec((1, Np), lambda n, h: (0, 0)),
        ],
        out_specs=pl.BlockSpec((None, th, W, Np), lambda n, h: (n, h, 0, 0)),
        scratch_shapes=[pltpu.VMEM((th + 2, Wp2, Mp), jnp.bfloat16)],
        compiler_params=pltpu.CompilerParams(
            dimension_semantics=("parallel", "parallel"),
            vmem_limit_bytes=int(vmem_limit),
        ),
    )(xp, x_halo, w1_p, b1_p, w2_p, b2_p)

    return jnp.transpose(out[..., :Nout], (0, 3, 1, 2)).astype(jnp.float32)  # -> NCHW f32


# ----------------------------- synthetic parameters ------------------------------ #

def init_params(key, c, n):
    m = n // 2
    ks = jax.random.split(key, 10)
    return {
        # YoloConv 1: Conv2d(c, n//2, 1, 1, 0, bias=False) + BN(n//2)
        "w1": 0.3 * jax.random.normal(ks[0], (m, c, 1, 1), jnp.float32),
        "g1": 1.0 + 0.1 * jax.random.normal(ks[1], (m,), jnp.float32),
        "be1": 0.1 * jax.random.normal(ks[2], (m,), jnp.float32),
        "m1": 0.1 * jax.random.normal(ks[3], (m,), jnp.float32),
        "v1": jax.random.uniform(ks[4], (m,), jnp.float32, 0.5, 1.5),
        # YoloConv 2: Conv2d(n//2, n, 3, 1, 1, bias=False) + BN(n)
        "w2": 0.1 * jax.random.normal(ks[5], (n, m, 3, 3), jnp.float32),
        "g2": 1.0 + 0.1 * jax.random.normal(ks[6], (n,), jnp.float32),
        "be2": 0.1 * jax.random.normal(ks[7], (n,), jnp.float32),
        "m2": 0.1 * jax.random.normal(ks[8], (n,), jnp.float32),
        "v2": jax.random.uniform(ks[9], (n,), jnp.float32, 0.5, 1.5),
    }


# ------------------------------- pure-JAX reference ------------------------------ #

def reference(x_nchw, params, *, res):
    def conv(x, w, pad):
        return jax.lax.conv_general_dilated(
            x, w, (1, 1), [(pad, pad), (pad, pad)],
            dimension_numbers=("NCHW", "OIHW", "NCHW"))

    def bn(x, g, b, m, v):
        g, b, m, v = (t[None, :, None, None] for t in (g, b, m, v))
        return (x - m) / jnp.sqrt(v + BN_EPS) * g + b

    def lrelu(x):
        return jnp.where(x > 0, x, LEAKY_SLOPE * x)

    y = lrelu(bn(conv(x_nchw, params["w1"], 0),
                 params["g1"], params["be1"], params["m1"], params["v1"]))
    y = lrelu(bn(conv(y, params["w2"], 1),
                 params["g2"], params["be2"], params["m2"], params["v2"]))
    if res:
        y = x_nchw + y
    return y


if __name__ == "__main__":
    key = jax.random.PRNGKey(0)
    kx, kp1, kp2 = jax.random.split(key, 3)

    # Case 1: residual block (requires c == n)
    c, n = 4, 4
    x = jax.random.normal(kx, (2, c, 16, 16), jnp.float32)       # NCHW, like PyTorch
    params = init_params(kp1, c, n)
    fwd = jax.jit(functools.partial(yolo_res_block, res=True))
    out = jax.block_until_ready(fwd(x, params))
    ref = reference(x, params, res=True)
    assert out.shape == ref.shape == (2, n, 16, 16)
    np.testing.assert_allclose(np.asarray(out), np.asarray(ref), rtol=2e-2, atol=2e-2)

    # Case 2: non-residual block (c != n allowed)
    c2, n2 = 4, 8
    params2 = init_params(kp2, c2, n2)
    fwd2 = jax.jit(functools.partial(yolo_res_block, res=False))
    out2 = jax.block_until_ready(fwd2(x, params2))
    ref2 = reference(x, params2, res=False)
    assert out2.shape == ref2.shape == (2, n2, 16, 16)
    np.testing.assert_allclose(np.asarray(out2), np.asarray(ref2), rtol=2e-2, atol=2e-2)

    print("KERNEL_OK")
</pallas_src>

<mosaic_0001>
module attributes {stable_mosaic.version = 11 : i64} {
  func.func @_yolo_res_block_kernel(%arg0: i32, %arg1: i32, %arg2: memref<1x8x24x128xbf16, #tpu.memory_space<vmem>>, %arg3: memref<1x1x2x24x128xbf16, #tpu.memory_space<vmem>>, %arg4: memref<128x128xbf16, #tpu.memory_space<vmem>>, %arg5: memref<1x128xf32, #tpu.memory_space<vmem>>, %arg6: memref<9x128x128xbf16, #tpu.memory_space<vmem>>, %arg7: memref<1x128xf32, #tpu.memory_space<vmem>>, %arg8: memref<1x8x16x128xbf16, #tpu.memory_space<vmem>>, %arg9: memref<10x24x128xbf16, #tpu.memory_space<vmem>>) attributes {dimension_semantics = [#tpu.dimension_semantics<parallel>, #tpu.dimension_semantics<parallel>], iteration_bounds = array<i64: 2, 2>, scalar_prefetch = 0 : i64, scratch_operands = 1 : i64, tpu.core_type = #tpu.core_type<tc>, window_params = [{transform_indices = @transform_0, window_bounds = array<i64: 1, 8, 24, 128>}, {transform_indices = @transform_1, window_bounds = array<i64: 1, 1, 2, 24, 128>}, {pipeline_mode = #tpu.pipeline_mode<synchronous>, transform_indices = @transform_2, window_bounds = array<i64: 128, 128>}, {pipeline_mode = #tpu.pipeline_mode<synchronous>, transform_indices = @transform_3, window_bounds = array<i64: 1, 128>}, {pipeline_mode = #tpu.pipeline_mode<synchronous>, transform_indices = @transform_4, window_bounds = array<i64: 9, 128, 128>}, {pipeline_mode = #tpu.pipeline_mode<synchronous>, transform_indices = @transform_5, window_bounds = array<i64: 1, 128>}, {transform_indices = @transform_6, window_bounds = array<i64: 1, 8, 16, 128>}]} {
    %0 = tpu.iota {dimensions = array<i32: 1>} : vector<1x24x1xi32>
    %c1_i32 = arith.constant 1 : i32
    %1 = vector.broadcast %c1_i32 : i32 to vector<1x24x1xi32>
    %2 = arith.cmpi sge, %0, %1 : vector<1x24x1xi32>
    %c16_i32 = arith.constant 16 : i32
    %3 = vector.broadcast %c16_i32 : i32 to vector<1x24x1xi32>
    %4 = arith.cmpi sle, %0, %3 : vector<1x24x1xi32>
    %5 = arith.andi %2, %4 : vector<1x24x1xi1>
    %c0 = arith.constant 0 : index
    %c0_0 = arith.constant 0 : index
    %c0_1 = arith.constant 0 : index
    %c0_2 = arith.constant 0 : index
    %6 = vector.load %arg2[%c0, %c0_0, %c0_1, %c0_2] : memref<1x8x24x128xbf16, #tpu.memory_space<vmem>>, vector<1x8x24x128xbf16>
    %7 = vector.shape_cast %6 : vector<1x8x24x128xbf16> to vector<8x24x128xbf16>
    %8 = vector.shape_cast %7 : vector<8x24x128xbf16> to vector<192x128xbf16>
    %c0_3 = arith.constant 0 : index
    %c0_4 = arith.constant 0 : index
    %9 = vector.load %arg4[%c0_3, %c0_4] : memref<128x128xbf16, #tpu.memory_space<vmem>>, vector<128x128xbf16>
    %cst = arith.constant dense<0.000000e+00> : vector<192x128xf32>
    %10 = tpu.matmul %8, %9, %cst {dimension_numbers = #tpu.dot_dimension_numbers<[1], [0], [0], [1], [0, 0, 1, 1], [], []>} : vector<192x128xbf16>, vector<128x128xbf16>, vector<192x128xf32> -> vector<192x128xf32>
    %c0_5 = arith.constant 0 : index
    %c0_6 = arith.constant 0 : index
    %11 = vector.load %arg5[%c0_5, %c0_6] : memref<1x128xf32, #tpu.memory_space<vmem>>, vector<1x128xf32>
    %12 = vector.broadcast %11 : vector<1x128xf32> to vector<192x128xf32>
    %13 = arith.addf %10, %12 : vector<192x128xf32>
    %cst_7 = arith.constant 0.000000e+00 : f32
    %14 = vector.broadcast %cst_7 : f32 to vector<192x128xf32>
    %15 = arith.cmpf ogt, %13, %14 : vector<192x128xf32>
    %cst_8 = arith.constant 1.000000e-01 : f32
    %16 = vector.broadcast %cst_8 : f32 to vector<192x128xf32>
    %17 = arith.mulf %16, %13 : vector<192x128xf32>
    %18 = arith.select %15, %13, %17 : vector<192x128xi1>, vector<192x128xf32>
    %19 = vector.shape_cast %18 : vector<192x128xf32> to vector<8x24x128xf32>
    %cst_9 = arith.constant 0.000000e+00 : f32
    %20 = vector.shape_cast %5 : vector<1x24x1xi1> to vector<1x24x1xi1>
    %21 = vector.broadcast %20 : vector<1x24x1xi1> to vector<8x24x128xi1>
    %22 = vector.broadcast %cst_9 : f32 to vector<8x24x128xf32>
    %23 = arith.select %21, %19, %22 : vector<8x24x128xi1>, vector<8x24x128xf32>
    %24 = arith.truncf %23 : vector<8x24x128xf32> to vector<8x24x128xbf16>
    %c1 = arith.constant 1 : index
    %c0_10 = arith.constant 0 : index
    %c0_11 = arith.constant 0 : index
    %25 = vector.load %arg9[%c1, %c0_10, %c0_11] : memref<10x24x128xbf16, #tpu.memory_space<vmem>>, vector<8x24x128xbf16>
    tpu.vector_store %arg9[%c1, %c0_10, %c0_11], %24 {strides = array<i32>} : memref<10x24x128xbf16, #tpu.memory_space<vmem>>, vector<8x24x128xbf16>,
    %c0_12 = arith.constant 0 : index
    %c0_13 = arith.constant 0 : index
    %c0_14 = arith.constant 0 : index
    %c0_15 = arith.constant 0 : index
    %c0_16 = arith.constant 0 : index
    %26 = vector.load %arg3[%c0_12, %c0_13, %c0_14, %c0_15, %c0_16] : memref<1x1x2x24x128xbf16, #tpu.memory_space<vmem>>, vector<1x1x2x24x128xbf16>
    %27 = vector.shape_cast %26 : vector<1x1x2x24x128xbf16> to vector<2x24x128xbf16>
    %28 = vector.shape_cast %27 : vector<2x24x128xbf16> to vector<48x128xbf16>
    %c0_17 = arith.constant 0 : index
    %c0_18 = arith.constant 0 : index
    %29 = vector.load %arg4[%c0_17, %c0_18] : memref<128x128xbf16, #tpu.memory_space<vmem>>, vector<128x128xbf16>
    %cst_19 = arith.constant dense<0.000000e+00> : vector<48x128xf32>
    %30 = tpu.matmul %28, %29, %cst_19 {dimension_numbers = #tpu.dot_dimension_numbers<[1], [0], [0], [1], [0, 0, 1, 1], [], []>} : vector<48x128xbf16>, vector<128x128xbf16>, vector<48x128xf32> -> vector<48x128xf32>
    %c0_20 = arith.constant 0 : index
    %c0_21 = arith.constant 0 : index
    %31 = vector.load %arg5[%c0_20, %c0_21] : memref<1x128xf32, #tpu.memory_space<vmem>>, vector<1x128xf32>
    %32 = vector.broadcast %31 : vector<1x128xf32> to vector<48x128xf32>
    %33 = arith.addf %30, %32 : vector<48x128xf32>
    %cst_22 = arith.constant 0.000000e+00 : f32
    %34 = vector.broadcast %cst_22 : f32 to vector<48x128xf32>
    %35 = arith.cmpf ogt, %33, %34 : vector<48x128xf32>
    %cst_23 = arith.constant 1.000000e-01 : f32
    %36 = vector.broadcast %cst_23 : f32 to vector<48x128xf32>
    %37 = arith.mulf %36, %33 : vector<48x128xf32>
    %38 = arith.select %35, %33, %37 : vector<48x128xi1>, vector<48x128xf32>
    %39 = vector.shape_cast %38 : vector<48x128xf32> to vector<2x24x128xf32>
    %cst_24 = arith.constant 0.000000e+00 : f32
    %40 = vector.shape_cast %5 : vector<1x24x1xi1> to vector<1x24x1xi1>
    %41 = vector.broadcast %40 : vector<1x24x1xi1> to vector<2x24x128xi1>
    %42 = vector.broadcast %cst_24 : f32 to vector<2x24x128xf32>
    %43 = arith.select %41, %39, %42 : vector<2x24x128xi1>, vector<2x24x128xf32>
    %c0_i32 = arith.constant 0 : i32
    %44 = arith.cmpi sgt, %arg1, %c0_i32 : i32
    %45 = arith.extui %44 : i1 to i32
    %46 = arith.sitofp %45 : i32 to f32
    %c1_i32_25 = arith.constant 1 : i32
    %47 = arith.cmpi slt, %arg1, %c1_i32_25 : i32
    %48 = arith.extui %47 : i1 to i32
    %49 = arith.sitofp %48 : i32 to f32
    %50 = vector.extract_strided_slice %43 {offsets = [0, 0, 0], sizes = [1, 24, 128], strides = [1, 1, 1]} : vector<2x24x128xf32> to vector<1x24x128xf32>
    %51 = vector.broadcast %46 : f32 to vector<1x24x128xf32>
    %52 = arith.mulf %50, %51 : vector<1x24x128xf32>
    %53 = arith.truncf %52 : vector<1x24x128xf32> to vector<1x24x128xbf16>
    %c0_26 = arith.constant 0 : index
    %c0_27 = arith.constant 0 : index
    %c0_28 = arith.constant 0 : index
    %54 = vector.load %arg9[%c0_26, %c0_27, %c0_28] : memref<10x24x128xbf16, #tpu.memory_space<vmem>>, vector<1x24x128xbf16>
    tpu.vector_store %arg9[%c0_26, %c0_27, %c0_28], %53 {strides = array<i32>} : memref<10x24x128xbf16, #tpu.memory_space<vmem>>, vector<1x24x128xbf16>,
    %55 = vector.extract_strided_slice %43 {offsets = [1, 0, 0], sizes = [1, 24, 128], strides = [1, 1, 1]} : vector<2x24x128xf32> to vector<1x24x128xf32>
    %56 = vector.broadcast %49 : f32 to vector<1x24x128xf32>
    %57 = arith.mulf %55, %56 : vector<1x24x128xf32>
    %58 = arith.truncf %57 : vector<1x24x128xf32> to vector<1x24x128xbf16>
    %c9 = arith.constant 9 : index
    %c0_29 = arith.constant 0 : index
    %c0_30 = arith.constant 0 : index
    %59 = vector.load %arg9[%c9, %c0_29, %c0_30] : memref<10x24x128xbf16, #tpu.memory_space<vmem>>, vector<1x24x128xbf16>
    tpu.vector_store %arg9[%c9, %c0_29, %c0_30], %58 {strides = array<i32>} : memref<10x24x128xbf16, #tpu.memory_space<vmem>>, vector<1x24x128xbf16>,
    %c0_31 = arith.constant 0 : index
    %c0_32 = arith.constant 0 : index
    %c0_33 = arith.constant 0 : index
    %60 = vector.load %arg9[%c0_31, %c0_32, %c0_33] : memref<10x24x128xbf16, #tpu.memory_space<vmem>>, vector<8x24x128xbf16>
    %61 = vector.shape_cast %60 : vector<8x24x128xbf16> to vector<192x128xbf16>
    %c1_34 = arith.constant 1 : index
    %c0_35 = arith.constant 0 : index
    %c0_36 = arith.constant 0 : index
    %62 = vector.load %arg9[%c1_34, %c0_35, %c0_36] : memref<10x24x128xbf16, #tpu.memory_space<vmem>>, vector<8x24x128xbf16>
    %63 = vector.shape_cast %62 : vector<8x24x128xbf16> to vector<192x128xbf16>
    %c2 = arith.constant 2 : index
    %c0_37 = arith.constant 0 : index
    %c0_38 = arith.constant 0 : index
    %64 = vector.load %arg9[%c2, %c0_37, %c0_38] : memref<10x24x128xbf16, #tpu.memory_space<vmem>>, vector<8x24x128xbf16>
    %65 = vector.shape_cast %64 : vector<8x24x128xbf16> to vector<192x128xbf16>
    %c0_39 = arith.constant 0 : index
    %c0_40 = arith.constant 0 : index
    %c0_41 = arith.constant 0 : index
    %66 = vector.load %arg6[%c0_39, %c0_40, %c0_41] : memref<9x128x128xbf16, #tpu.memory_space<vmem>>, vector<1x128x128xbf16>
    %67 = vector.shape_cast %66 : vector<1x128x128xbf16> to vector<128x128xbf16>
    %cst_42 = arith.constant dense<0.000000e+00> : vector<192x128xf32>
    %68 = tpu.matmul %61, %67, %cst_42 {dimension_numbers = #tpu.dot_dimension_numbers<[1], [0], [0], [1], [0, 0, 1, 1], [], []>} : vector<192x128xbf16>, vector<128x128xbf16>, vector<192x128xf32> -> vector<192x128xf32>
    %c3 = arith.constant 3 : index
    %c0_43 = arith.constant 0 : index
    %c0_44 = arith.constant 0 : index
    %69 = vector.load %arg6[%c3, %c0_43, %c0_44] : memref<9x128x128xbf16, #tpu.memory_space<vmem>>, vector<1x128x128xbf16>
    %70 = vector.shape_cast %69 : vector<1x128x128xbf16> to vector<128x128xbf16>
    %cst_45 = arith.constant dense<0.000000e+00> : vector<192x128xf32>
    %71 = tpu.matmul %63, %70, %cst_45 {dimension_numbers = #tpu.dot_dimension_numbers<[1], [0], [0], [1], [0, 0, 1, 1], [], []>} : vector<192x128xbf16>, vector<128x128xbf16>, vector<192x128xf32> -> vector<192x128xf32>
    %72 = arith.addf %68, %71 : vector<192x128xf32>
    %c6 = arith.constant 6 : index
    %c0_46 = arith.constant 0 : index
    %c0_47 = arith.constant 0 : index
    %73 = vector.load %arg6[%c6, %c0_46, %c0_47] : memref<9x128x128xbf16, #tpu.memory_space<vmem>>, vector<1x128x128xbf16>
    %74 = vector.shape_cast %73 : vector<1x128x128xbf16> to vector<128x128xbf16>
    %cst_48 = arith.constant dense<0.000000e+00> : vector<192x128xf32>
    %75 = tpu.matmul %65, %74, %cst_48 {dimension_numbers = #tpu.dot_dimension_numbers<[1], [0], [0], [1], [0, 0, 1, 1], [], []>} : vector<192x128xbf16>, vector<128x128xbf16>, vector<192x128xf32> -> vector<192x128xf32>
    %76 = arith.addf %72, %75 : vector<192x128xf32>
    %c1_49 = arith.constant 1 : index
    %c0_50 = arith.constant 0 : index
    %c0_51 = arith.constant 0 : index
    %77 = vector.load %arg6[%c1_49, %c0_50, %c0_51] : memref<9x128x128xbf16, #tpu.memory_space<vmem>>, vector<1x128x128xbf16>
    %78 = vector.shape_cast %77 : vector<1x128x128xbf16> to vector<128x128xbf16>
    %cst_52 = arith.constant dense<0.000000e+00> : vector<192x128xf32>
    %79 = tpu.matmul %61, %78, %cst_52 {dimension_numbers = #tpu.dot_dimension_numbers<[1], [0], [0], [1], [0, 0, 1, 1], [], []>} : vector<192x128xbf16>, vector<128x128xbf16>, vector<192x128xf32> -> vector<192x128xf32>
    %c4 = arith.constant 4 : index
    %c0_53 = arith.constant 0 : index
    %c0_54 = arith.constant 0 : index
    %80 = vector.load %arg6[%c4, %c0_53, %c0_54] : memref<9x128x128xbf16, #tpu.memory_space<vmem>>, vector<1x128x128xbf16>
    %81 = vector.shape_cast %80 : vector<1x128x128xbf16> to vector<128x128xbf16>
    %cst_55 = arith.constant dense<0.000000e+00> : vector<192x128xf32>
    %82 = tpu.matmul %63, %81, %cst_55 {dimension_numbers = #tpu.dot_dimension_numbers<[1], [0], [0], [1], [0, 0, 1, 1], [], []>} : vector<192x128xbf16>, vector<128x128xbf16>, vector<192x128xf32> -> vector<192x128xf32>
    %83 = arith.addf %79, %82 : vector<192x128xf32>
    %c7 = arith.constant 7 : index
    %c0_56 = arith.constant 0 : index
    %c0_57 = arith.constant 0 : index
    %84 = vector.load %arg6[%c7, %c0_56, %c0_57] : memref<9x128x128xbf16, #tpu.memory_space<vmem>>, vector<1x128x128xbf16>
    %85 = vector.shape_cast %84 : vector<1x128x128xbf16> to vector<128x128xbf16>
    %cst_58 = arith.constant dense<0.000000e+00> : vector<192x128xf32>
    %86 = tpu.matmul %65, %85, %cst_58 {dimension_numbers = #tpu.dot_dimension_numbers<[1], [0], [0], [1], [0, 0, 1, 1], [], []>} : vector<192x128xbf16>, vector<128x128xbf16>, vector<192x128xf32> -> vector<192x128xf32>
    %87 = arith.addf %83, %86 : vector<192x128xf32>
    %c191_i32 = arith.constant 191 : i32
    %88 = tpu.dynamic_rotate %87 by %c191_i32 dim 0 : vector<192x128xf32>, i32 -> vector<192x128xf32>
    %89 = arith.addf %76, %88 : vector<192x128xf32>
    %c2_59 = arith.constant 2 : index
    %c0_60 = arith.constant 0 : index
    %c0_61 = arith.constant 0 : index
    %90 = vector.load %arg6[%c2_59, %c0_60, %c0_61] : memref<9x128x128xbf16, #tpu.memory_space<vmem>>, vector<1x128x128xbf16>
    %91 = vector.shape_cast %90 : vector<1x128x128xbf16> to vector<128x128xbf16>
    %cst_62 = arith.constant dense<0.000000e+00> : vector<192x128xf32>
    %92 = tpu.matmul %61, %91, %cst_62 {dimension_numbers = #tpu.dot_dimension_numbers<[1], [0], [0], [1], [0, 0, 1, 1], [], []>} : vector<192x128xbf16>, vector<128x128xbf16>, vector<192x128xf32> -> vector<192x128xf32>
    %c5 = arith.constant 5 : index
    %c0_63 = arith.constant 0 : index
    %c0_64 = arith.constant 0 : index
    %93 = vector.load %arg6[%c5, %c0_63, %c0_64] : memref<9x128x128xbf16, #tpu.memory_space<vmem>>, vector<1x128x128xbf16>
    %94 = vector.shape_cast %93 : vector<1x128x128xbf16> to vector<128x128xbf16>
    %cst_65 = arith.constant dense<0.000000e+00> : vector<192x128xf32>
    %95 = tpu.matmul %63, %94, %cst_65 {dimension_numbers = #tpu.dot_dimension_numbers<[1], [0], [0], [1], [0, 0, 1, 1], [], []>} : vector<192x128xbf16>, vector<128x128xbf16>, vector<192x128xf32> -> vector<192x128xf32>
    %96 = arith.addf %92, %95 : vector<192x128xf32>
    %c8 = arith.constant 8 : index
    %c0_66 = arith.constant 0 : index
    %c0_67 = arith.constant 0 : index
    %97 = vector.load %arg6[%c8, %c0_66, %c0_67] : memref<9x128x128xbf16, #tpu.memory_space<vmem>>, vector<1x128x128xbf16>
    %98 = vector.shape_cast %97 : vector<1x128x128xbf16> to vector<128x128xbf16>
    %cst_68 = arith.constant dense<0.000000e+00> : vector<192x128xf32>
    %99 = tpu.matmul %65, %98, %cst_68 {dimension_numbers = #tpu.dot_dimension_numbers<[1], [0], [0], [1], [0, 0, 1, 1], [], []>} : vector<192x128xbf16>, vector<128x128xbf16>, vector<192x128xf32> -> vector<192x128xf32>
    %100 = arith.addf %96, %99 : vector<192x128xf32>
    %c190_i32 = arith.constant 190 : i32
    %101 = tpu.dynamic_rotate %100 by %c190_i32 dim 0 : vector<192x128xf32>, i32 -> vector<192x128xf32>
    %102 = arith.addf %89, %101 : vector<192x128xf32>
    %c0_69 = arith.constant 0 : index
    %c0_70 = arith.constant 0 : index
    %103 = vector.load %arg7[%c0_69, %c0_70] : memref<1x128xf32, #tpu.memory_space<vmem>>, vector<1x128xf32>
    %104 = vector.broadcast %103 : vector<1x128xf32> to vector<192x128xf32>
    %105 = arith.addf %102, %104 : vector<192x128xf32>
    %cst_71 = arith.constant 0.000000e+00 : f32
    %106 = vector.broadcast %cst_71 : f32 to vector<192x128xf32>
    %107 = arith.cmpf ogt, %105, %106 : vector<192x128xf32>
    %cst_72 = arith.constant 1.000000e-01 : f32
    %108 = vector.broadcast %cst_72 : f32 to vector<192x128xf32>
    %109 = arith.mulf %108, %105 : vector<192x128xf32>
    %110 = arith.select %107, %105, %109 : vector<192x128xi1>, vector<192x128xf32>
    %111 = vector.shape_cast %7 : vector<8x24x128xbf16> to vector<192x128xbf16>
    %112 = arith.extf %111 : vector<192x128xbf16> to vector<192x128xf32>
    %c191_i32_73 = arith.constant 191 : i32
    %113 = tpu.dynamic_rotate %112 by %c191_i32_73 dim 0 : vector<192x128xf32>, i32 -> vector<192x128xf32>
    %114 = arith.addf %110, %113 : vector<192x128xf32>
    %115 = vector.shape_cast %114 : vector<192x128xf32> to vector<8x24x128xf32>
    %116 = vector.extract_strided_slice %115 {offsets = [0, 0, 0], sizes = [8, 16, 128], strides = [1, 1, 1]} : vector<8x24x128xf32> to vector<8x16x128xf32>
    %117 = arith.truncf %116 : vector<8x16x128xf32> to vector<8x16x128xbf16>
    %c0_74 = arith.constant 0 : index
    %c0_75 = arith.constant 0 : index
    %c0_76 = arith.constant 0 : index
    %c0_77 = arith.constant 0 : index
    %118 = vector.load %arg8[%c0_74, %c0_75, %c0_76, %c0_77] : memref<1x8x16x128xbf16, #tpu.memory_space<vmem>>, vector<1x8x16x128xbf16>
    %119 = vector.shape_cast %118 : vector<1x8x16x128xbf16> to vector<8x16x128xbf16>
    %120 = vector.shape_cast %117 : vector<8x16x128xbf16> to vector<1x8x16x128xbf16>
    tpu.vector_store %arg8[%c0_74, %c0_75, %c0_76, %c0_77], %120 {strides = array<i32>} : memref<1x8x16x128xbf16, #tpu.memory_space<vmem>>, vector<1x8x16x128xbf16>,
    return
  }
  func.func @transform_0(%arg0: i32, %arg1: i32) -> (i32, i32, i32, i32) {
    %c0_i32 = arith.constant 0 : i32
    %c0_i32_0 = arith.constant 0 : i32
    %c0_i32_1 = arith.constant 0 : i32
    return %arg0, %arg1, %c0_i32, %c0_i32_0 : i32, i32, i32, i32
  }
  func.func @transform_1(%arg0: i32, %arg1: i32) -> (i32, i32, i32, i32, i32) {
    %c0_i32 = arith.constant 0 : i32
    %c0_i32_0 = arith.constant 0 : i32
    %c0_i32_1 = arith.constant 0 : i32
    %c0_i32_2 = arith.constant 0 : i32
    return %arg0, %arg1, %c0_i32, %c0_i32_0, %c0_i32_1 : i32, i32, i32, i32, i32
  }
  func.func @transform_2(%arg0: i32, %arg1: i32) -> (i32, i32) {
    %c0_i32 = arith.constant 0 : i32
    %c0_i32_0 = arith.constant 0 : i32
    %c0_i32_1 = arith.constant 0 : i32
    return %c0_i32, %c0_i32_0 : i32, i32
  }
  func.func @transform_3(%arg0: i32, %arg1: i32) -> (i32, i32) {
    %c0_i32 = arith.constant 0 : i32
    %c0_i32_0 = arith.constant 0 : i32
    %c0_i32_1 = arith.constant 0 : i32
    return %c0_i32, %c0_i32_0 : i32, i32
  }
  func.func @transform_4(%arg0: i32, %arg1: i32) -> (i32, i32, i32) {
    %c0_i32 = arith.constant 0 : i32
    %c0_i32_0 = arith.constant 0 : i32
    %c0_i32_1 = arith.constant 0 : i32
    %c0_i32_2 = arith.constant 0 : i32
    return %c0_i32, %c0_i32_0, %c0_i32_1 : i32, i32, i32
  }
  func.func @transform_5(%arg0: i32, %arg1: i32) -> (i32, i32) {
    %c0_i32 = arith.constant 0 : i32
    %c0_i32_0 = arith.constant 0 : i32
    %c0_i32_1 = arith.constant 0 : i32
    return %c0_i32, %c0_i32_0 : i32, i32
  }
  func.func @transform_6(%arg0: i32, %arg1: i32) -> (i32, i32, i32, i32) {
    %c0_i32 = arith.constant 0 : i32
    %c0_i32_0 = arith.constant 0 : i32
    %c0_i32_1 = arith.constant 0 : i32
    return %arg0, %arg1, %c0_i32, %c0_i32_0 : i32, i32, i32, i32
  }
}

</mosaic_0001>

<llo_original>
// kernel: yolo_res_block.1
$region0: #{yolo_res_block.1}
  #allocation0 [shape = 'u32[]', space=smem, size = 0x4, offset = 0x4, fixed_abs, tag = 'smem constant byte address 0x4 - core index']
  #allocation1 [shape = 'u32[144,128]{1,0:T(1,128)}', space=vmem, size = 0x12000, scoped, tag = 'internal scratch']
  #allocation2 [shape = 'bf16[10,24,128]{2,1,0:T(8,128)(2,1)}', space=vmem, size = 0xf000, scoped, tag = 'scratch operand']
  %s0 = inlined_call_operand.vmem [shape: bf16[2,16,24,128], index: 0, kind: input, shape index: {}]
  %s1 = inlined_call_operand.vmem [shape: bf16[2,2,2,24,128], index: 1, kind: input, shape index: {}]
  %s2 = inlined_call_operand.vmem [shape: bf16[128,128], index: 2, kind: input, shape index: {}]
  %s3 = inlined_call_operand.vmem [shape: f32[1,128], index: 3, kind: input, shape index: {}]
  %s4 = inlined_call_operand.vmem [shape: bf16[9,128,128], index: 4, kind: input, shape index: {}]
  %s5 = inlined_call_operand.vmem [shape: f32[1,128], index: 5, kind: input, shape index: {}]
  %s6 = inlined_call_operand.vmem [shape: bf16[2,16,16,128], index: 6, kind: output, shape index: {}]
  %s7 = sld [smem:[#allocation0]]
  $region57: #{yolo_res_block.1} parent=0
    _
  %s9 = ssub.s32 1, %s7
  %s10 = scalar_select 0, %s9, %s7
  loop: start=0, step=1, limit=6
  $region2: #{yolo_res_block.1} parent=0 // loop_pre_header
    _
  $region3: #{yolo_res_block.1} parent=0 // loop_header
    %s12 = sphi 0, %s16
    %p13 = scmp.ge.s32.totalorder %s12, 6
    %s19 = sphi 0, %s31
    %s20 = sphi 0, %s27
    %s21 = sphi 0, %s19
    %s22 = sphi 0, %s20
    %s23 = sphi 0, %s21
    %s24 = sphi 0, %s22
    %s36 = sphi 0, %s38
    %s39 = sphi 0, %s36
    %s40 = sphi 0, %s39
    %s56 = sphi 0, %s40
    %s64 = sphi 0, %s66
    %s67 = sphi 0, %s64
    %s68 = sphi 0, %s67
    %s84 = sphi 0, %s68
    %s88 = sphi 0, %s88
    %s90 = sphi 0, %s88
    %s91 = sphi 0, %s90
    %s105 = sphi 0, %s91
    %s109 = sphi 0, %s109
    %s111 = sphi 0, %s109
    %s112 = sphi 0, %s111
    %s126 = sphi 0, %s112
    %s130 = sphi 0, %s130
    %s132 = sphi 0, %s130
    %s133 = sphi 0, %s132
    %s147 = sphi 0, %s133
    %s151 = sphi 0, %s151
    %s153 = sphi 0, %s151
    %s154 = sphi 0, %s153
    %s168 = sphi 0, %s154
    %s176 = sphi 0, %s178
    %s179 = sphi 0, %s176
    %s180 = sphi 0, %s179
    %s196 = sphi 0, %s180
  $region4: #{yolo_res_block.1} parent=0 // loop_header_branch
    %15 = sbr.rel (%p13) target = $region8
  $region5: #{yolo_res_block.1} parent=0 // loop_body
    %s17 = ssub.s32 %s12, 1
    %s18 = ssub.s32 %s12, 2
    %s25 = sadd.s32 1, %s20
    %p26 = scmp.ge.s32.totalorder %s25, 2
    %s27 = scalar_select %p26, 0, %s25
    %s28 = sadd.s32 1, %s19
    %s29 = scalar_select %p26, %s28, %s19
    %p30 = scmp.ge.s32.totalorder %s29, 2
    %s31 = scalar_select %p30, 0, %s29
    %s32 = ssub.s32 %s19, %s31
    %s33 = ssub.s32 %s20, %s27
    %s34 = sor.u32 %s32, %s33
    %p35 = scmp.eq.s32.totalorder %s34, 0
    %s37 = sadd.s32 %s36, 1
    %s38 = scalar_select %p35, %s36, %s37
    %p41 = pneg %p35
    %p42 = scmp.eq.s32.totalorder %s12, 3
    %p43 = por %p41, %p42
    %p44 = scmp.ne.s32.totalorder %s36, %s39
    %p45 = scmp.eq.s32.totalorder %s12, 0
    %p46 = por %p44, %p45
    %p47 = scmp.ne.s32.totalorder %s36, %s39
    %p48 = scmp.eq.s32.totalorder %s17, 3
    %p49 = por %p47, %p48
    %p50 = scmp.ne.s32.totalorder %s39, %s40
    %p51 = scmp.eq.s32.totalorder %s17, 0
    %p52 = por %p50, %p51
    %p53 = scmp.ne.s32.totalorder %s39, %s40
    %p54 = scmp.eq.s32.totalorder %s18, 3
    %p55 = por %p53, %p54
    %p57 = scmp.ne.s32.totalorder %s40, %s56
    %p58 = scmp.eq.s32.totalorder %s18, 0
    %p59 = por %p57, %p58
    %s60 = ssub.s32 %s19, %s31
    %s61 = ssub.s32 %s20, %s27
    %s62 = sor.u32 %s60, %s61
    %p63 = scmp.eq.s32.totalorder %s62, 0
    %s65 = sadd.s32 %s64, 1
    %s66 = scalar_select %p63, %s64, %s65
    %p69 = pneg %p63
    %p70 = scmp.eq.s32.totalorder %s12, 3
    %p71 = por %p69, %p70
    %p72 = scmp.ne.s32.totalorder %s64, %s67
    %p73 = scmp.eq.s32.totalorder %s12, 0
    %p74 = por %p72, %p73
    %p75 = scmp.ne.s32.totalorder %s64, %s67
    %p76 = scmp.eq.s32.totalorder %s17, 3
    %p77 = por %p75, %p76
    %p78 = scmp.ne.s32.totalorder %s67, %s68
    %p79 = scmp.eq.s32.totalorder %s17, 0
    %p80 = por %p78, %p79
    %p81 = scmp.ne.s32.totalorder %s67, %s68
    %p82 = scmp.eq.s32.totalorder %s18, 3
    %p83 = por %p81, %p82
    %p85 = scmp.ne.s32.totalorder %s68, %s84
    %p86 = scmp.eq.s32.totalorder %s18, 0
    %p87 = por %p85, %p86
    %s89 = sadd.s32 %s88, 1
    %p92 = scmp.eq.s32.totalorder %s12, 3
    %p93 = scmp.ne.s32.totalorder %s88, %s90
    %p94 = scmp.eq.s32.totalorder %s12, 0
    %p95 = por %p93, %p94
    %p96 = scmp.ne.s32.totalorder %s88, %s90
    %p97 = scmp.eq.s32.totalorder %s17, 3
    %p98 = por %p96, %p97
    %p99 = scmp.ne.s32.totalorder %s90, %s91
    %p100 = scmp.eq.s32.totalorder %s17, 0
    %p101 = por %p99, %p100
    %p102 = scmp.ne.s32.totalorder %s90, %s91
    %p103 = scmp.eq.s32.totalorder %s18, 3
    %p104 = por %p102, %p103
    %p106 = scmp.ne.s32.totalorder %s91, %s105
    %p107 = scmp.eq.s32.totalorder %s18, 0
    %p108 = por %p106, %p107
    %s110 = sadd.s32 %s109, 1
    %p113 = scmp.eq.s32.totalorder %s12, 3
    %p114 = scmp.ne.s32.totalorder %s109, %s111
    %p115 = scmp.eq.s32.totalorder %s12, 0
    %p116 = por %p114, %p115
    %p117 = scmp.ne.s32.totalorder %s109, %s111
    %p118 = scmp.eq.s32.totalorder %s17, 3
    %p119 = por %p117, %p118
    %p120 = scmp.ne.s32.totalorder %s111, %s112
    %p121 = scmp.eq.s32.totalorder %s17, 0
    %p122 = por %p120, %p121
    %p123 = scmp.ne.s32.totalorder %s111, %s112
    %p124 = scmp.eq.s32.totalorder %s18, 3
    %p125 = por %p123, %p124
    %p127 = scmp.ne.s32.totalorder %s112, %s126
    %p128 = scmp.eq.s32.totalorder %s18, 0
    %p129 = por %p127, %p128
    %s131 = sadd.s32 %s130, 1
    %p134 = scmp.eq.s32.totalorder %s12, 3
    %p135 = scmp.ne.s32.totalorder %s130, %s132
    %p136 = scmp.eq.s32.totalorder %s12, 0
    %p137 = por %p135, %p136
    %p138 = scmp.ne.s32.totalorder %s130, %s132
    %p139 = scmp.eq.s32.totalorder %s17, 3
    %p140 = por %p138, %p139
    %p141 = scmp.ne.s32.totalorder %s132, %s133
    %p142 = scmp.eq.s32.totalorder %s17, 0
    %p143 = por %p141, %p142
    %p144 = scmp.ne.s32.totalorder %s132, %s133
    %p145 = scmp.eq.s32.totalorder %s18, 3
    %p146 = por %p144, %p145
    %p148 = scmp.ne.s32.totalorder %s133, %s147
    %p149 = scmp.eq.s32.totalorder %s18, 0
    %p150 = por %p148, %p149
    %s152 = sadd.s32 %s151, 1
    %p155 = scmp.eq.s32.totalorder %s12, 3
    %p156 = scmp.ne.s32.totalorder %s151, %s153
    %p157 = scmp.eq.s32.totalorder %s12, 0
    %p158 = por %p156, %p157
    %p159 = scmp.ne.s32.totalorder %s151, %s153
    %p160 = scmp.eq.s32.totalorder %s17, 3
    %p161 = por %p159, %p160
    %p162 = scmp.ne.s32.totalorder %s153, %s154
    %p163 = scmp.eq.s32.totalorder %s17, 0
    %p164 = por %p162, %p163
    %p165 = scmp.ne.s32.totalorder %s153, %s154
    %p166 = scmp.eq.s32.totalorder %s18, 3
    %p167 = por %p165, %p166
    %p169 = scmp.ne.s32.totalorder %s154, %s168
    %p170 = scmp.eq.s32.totalorder %s18, 0
    %p171 = por %p169, %p170
    %s172 = ssub.s32 %s19, %s31
    %s173 = ssub.s32 %s20, %s27
    %s174 = sor.u32 %s172, %s173
    %p175 = scmp.eq.s32.totalorder %s174, 0
    %s177 = sadd.s32 %s176, 1
    %s178 = scalar_select %p175, %s176, %s177
    %p181 = pneg %p175
    %p182 = scmp.eq.s32.totalorder %s12, 3
    %p183 = por %p181, %p182
    %p184 = scmp.ne.s32.totalorder %s176, %s179
    %p185 = scmp.eq.s32.totalorder %s12, 0
    %p186 = por %p184, %p185
    %p187 = scmp.ne.s32.totalorder %s176, %s179
    %p188 = scmp.eq.s32.totalorder %s17, 3
    %p189 = por %p187, %p188
    %p190 = scmp.ne.s32.totalorder %s179, %s180
    %p191 = scmp.eq.s32.totalorder %s17, 0
    %p192 = por %p190, %p191
    %p193 = scmp.ne.s32.totalorder %s179, %s180
    %p194 = scmp.eq.s32.totalorder %s18, 3
    %p195 = por %p193, %p194
    %p197 = scmp.ne.s32.totalorder %s180, %s196
    %p198 = scmp.eq.s32.totalorder %s18, 0
    %p199 = por %p197, %p198
    %p200 = scmp.le.s32.totalorder 1, %s12
    %p201 = scmp.lt.s32.totalorder %s12, 5
    %p202 = pnand %p200, %p201
    %p203 = pneg %p202
    // Predicated region
    $region9: #{yolo_res_block.1} parent=5 // pred_check
      _
    $region10: #{yolo_res_block.1} parent=5 // pred_check_branch
      %205 = sbr.rel (%p202) target = $region12
    $region11: #{yolo_res_block.1} parent=5 // pred_region
      %s206 = ssub.s32 %s12, 1
      // Predicated region
      $region13: #{yolo_res_block.1} parent=11 // pred_check
        %p207 = pneg %p101
      $region14: #{yolo_res_block.1} parent=11 // pred_check_branch
        %209 = sbr.rel (%p207) target = $region16
      $region15: #{yolo_res_block.1} parent=11 // pred_region
        _
      $region16: #{yolo_res_block.1} parent=11 // pred_fallthru
        _
      // Predicated region
      $region17: #{yolo_res_block.1} parent=11 // pred_check
        %p210 = pneg %p122
      $region18: #{yolo_res_block.1} parent=11 // pred_check_branch
        %212 = sbr.rel (%p210) target = $region20
      $region19: #{yolo_res_block.1} parent=11 // pred_region
        _
      $region20: #{yolo_res_block.1} parent=11 // pred_fallthru
        _
      // Predicated region
      $region21: #{yolo_res_block.1} parent=11 // pred_check
        %p213 = pneg %p143
      $region22: #{yolo_res_block.1} parent=11 // pred_check_branch
        %215 = sbr.rel (%p213) target = $region24
      $region23: #{yolo_res_block.1} parent=11 // pred_region
        _
      $region24: #{yolo_res_block.1} parent=11 // pred_fallthru
        _
      // Predicated region
      $region25: #{yolo_res_block.1} parent=11 // pred_check
        %p216 = pneg %p164
      $region26: #{yolo_res_block.1} parent=11 // pred_check_branch
        %218 = sbr.rel (%p216) target = $region28
      $region27: #{yolo_res_block.1} parent=11 // pred_region
        _
      $region28: #{yolo_res_block.1} parent=11 // pred_fallthru
        _
    $region12: #{yolo_res_block.1} parent=5 // pred_fallthru
      _
    %p219 = scmp.lt.s32.totalorder %s12, 4
    // Predicated region
    $region29: #{yolo_res_block.1} parent=5 // pred_check
      %p220 = pneg %p219
    $region30: #{yolo_res_block.1} parent=5 // pred_check_branch
      %222 = sbr.rel (%p220) target = $region32
    $region31: #{yolo_res_block.1} parent=5 // pred_region
      // Predicated region
      $region33: #{yolo_res_block.1} parent=31 // pred_check
        %p223 = pneg %p46
      $region34: #{yolo_res_block.1} parent=31 // pred_check_branch
        %225 = sbr.rel (%p223) target = $region36
      $region35: #{yolo_res_block.1} parent=31 // pred_region
        %s226 = smul.u32 8, %s20
        %p227 = scmp.lt.s32.totalorder %s19, 1
        %s228 = scalar_select %p227, %s19, 1
        %p229 = scmp.lt.s32.totalorder %s226, 15
        %s230 = scalar_select %p229, %s226, 15
        %s231 = smul.addr %s230, 3
        %s232 = smul.addr %s228, 48
        %s233 = sadd.s32 %s231, %s232
        %s234 = smul.addr %s233, 4
        %s235 = scalar_lea.vmem %s0, %s234
        %s236 = smul.u32 8, %s20
      $region36: #{yolo_res_block.1} parent=31 // pred_fallthru
        _
      // Predicated region
      $region37: #{yolo_res_block.1} parent=31 // pred_check
        %p237 = pneg %p74
      $region38: #{yolo_res_block.1} parent=31 // pred_check_branch
        %239 = sbr.rel (%p237) target = $region40
      $region39: #{yolo_res_block.1} parent=31 // pred_region
        %p240 = scmp.lt.s32.totalorder %s19, 1
        %s241 = scalar_select %p240, %s19, 1
        %p242 = scmp.lt.s32.totalorder %s20, 1
        %s243 = scalar_select %p242, %s20, 1
        %s244 = smul.addr %s243, 6
        %s245 = smul.addr %s241, 12
        %s246 = sadd.s32 %s244, %s245
        %s247 = smul.addr %s246, 4
        %s248 = scalar_lea.vmem %s1, %s247
      $region40: #{yolo_res_block.1} parent=31 // pred_fallthru
        _
    $region32: #{yolo_res_block.1} parent=5 // pred_fallthru
      _
    %p249 = scmp.le.s32.totalorder 1, %s12
    %p250 = scmp.lt.s32.totalorder %s12, 5
    %p251 = pnand %p249, %p250
    %p252 = pneg %p251
    // Predicated region
    $region41: #{yolo_res_block.1} parent=5 // pred_check
      _
    $region42: #{yolo_res_block.1} parent=5 // pred_check_branch
      %254 = sbr.rel (%p251) target = $region44
    $region43: #{yolo_res_block.1} parent=5 // pred_region
      %s255 = ssub.s32 %s12, 1
      %s256 = smul.u32 8, %s22
      %p257 = scmp.lt.s32.totalorder %s21, 1
      %s258 = scalar_select %p257, %s21, 1
      %p259 = scmp.lt.s32.totalorder %s256, 15
      %s260 = scalar_select %p259, %s256, 15
      %s261 = smul.addr %s260, 3
      %s262 = smul.addr %s258, 48
      %s263 = sadd.s32 %s261, %s262
      %s264 = smul.addr %s263, 4
      %s265 = scalar_lea.vmem %s0, %s264
      %p266 = pneg %p52
      %p267 = pneg %p49
      %p268 = scmp.lt.s32.totalorder %s21, 1
      %s269 = scalar_select %p268, %s21, 1
      %p270 = scmp.lt.s32.totalorder %s22, 1
      %s271 = scalar_select %p270, %s22, 1
      %s272 = smul.addr %s271, 6
      %s273 = smul.addr %s269, 12
      %s274 = sadd.s32 %s272, %s273
      %s275 = smul.addr %s274, 4
      %s276 = scalar_lea.vmem %s1, %s275
      %p277 = pneg %p80
      %p278 = pneg %p77
      %p279 = pneg %p101
      %p280 = pneg %p98
      %p281 = pneg %p122
      %p282 = pneg %p119
      %p283 = pneg %p143
      %p284 = pneg %p140
      %p285 = pneg %p164
      %p286 = pneg %p161
      %p287 = pneg %p192
      %p288 = pneg %p189
      %s289 = smul.u32 8, %s22
      %p290 = scmp.lt.s32.totalorder %s21, 1
      %s291 = scalar_select %p290, %s21, 1
      %p292 = scmp.lt.s32.totalorder %s289, 15
      %s293 = scalar_select %p292, %s289, 15
      %s294 = smul.addr %s293, 2
      %s295 = smul.addr %s291, 32
      %s296 = sadd.s32 %s294, %s295
      %s297 = smul.addr %s296, 4
      %s298 = scalar_lea.vmem %s6, %s297
      %s299 = smul.u32 8, %s22
      %p300 = scmp.lt.s32.totalorder %s21, 1
      %s301 = scalar_select %p300, %s21, 1
      %p302 = scmp.lt.s32.totalorder %s299, 15
      %s303 = scalar_select %p302, %s299, 15
      %s304 = smul.addr %s303, 3
      %s305 = smul.addr %s301, 48
      %s306 = sadd.s32 %s304, %s305
      %s307 = smul.addr %s306, 4
      %s308 = scalar_lea.vmem %s0, %s307
      %s309 = smul.u32 8, %s22
      %p310 = scmp.lt.s32.totalorder %s21, 1
      %s311 = scalar_select %p310, %s21, 1
      %p312 = scmp.lt.s32.totalorder %s22, 1
      %s313 = scalar_select %p312, %s22, 1
      %s314 = smul.addr %s313, 6
      %s315 = smul.addr %s311, 12
      %s316 = sadd.s32 %s314, %s315
      %s317 = smul.addr %s316, 4
      %s318 = scalar_lea.vmem %s1, %s317
      %s319 = smul.u32 8, %s22
      %p320 = scmp.lt.s32.totalorder %s21, 1
      %s321 = scalar_select %p320, %s21, 1
      %p322 = scmp.lt.s32.totalorder %s319, 15
      %s323 = scalar_select %p322, %s319, 15
      %s324 = smul.addr %s323, 2
      %s325 = smul.addr %s321, 32
      %s326 = sadd.s32 %s324, %s325
      %s327 = smul.addr %s326, 4
      %s328 = scalar_lea.vmem %s6, %s327
      %s329 = smul.u32 8, %s22
      %v331 = vlaneseq
      %v332 = vshrl.u32 %v331, 7
      %v333 = vadd.s32 %v332, 8
      %v334 = vadd.s32 %v332, 16
      %vm335 = vcmp.ge.s32.totalorder %v332, 1
      %vm336 = vcmp.ge.s32.totalorder %v333, 1
      %vm337 = vcmp.ge.s32.totalorder %v334, 1
      %vm338 = vcmp.le.s32.totalorder %v332, 16
      %vm339 = vcmp.le.s32.totalorder %v333, 16
      %vm340 = vcmp.le.s32.totalorder %v334, 16
      %vm341 = vmand %vm335, %vm338
      %vm342 = vmand %vm336, %vm339
      %vm343 = vmand %vm337, %vm340
      %v344 = vld [vmem:[%s308] sm:$0xf]
      %v345 = vld [vmem:[%s308 + $0x4] sm:$0xf]
      %v346 = vld [vmem:[%s308 + $0x8] sm:$0xf]
      %v347 = vld [vmem:[%s308 + $0xc] sm:$0xf]
      %v348 = vld [vmem:[%s308 + $0x10] sm:$0xf]
      %v349 = vld [vmem:[%s308 + $0x14] sm:$0xf]
      %v350 = vld [vmem:[%s308 + $0x18] sm:$0xf]
      %v351 = vld [vmem:[%s308 + $0x1c] sm:$0xf]
      %v352 = vld [vmem:[%s308 + $0x20] sm:$0xf]
      %v353 = vld [vmem:[%s308 + $0x24] sm:$0xf]
      %v354 = vld [vmem:[%s308 + $0x28] sm:$0xf]
      %v355 = vld [vmem:[%s308 + $0x2c] sm:$0xf]
      %v356 = vld [vmem:[%s308 + $0x30] sm:$0xf]
      %v357 = vld [vmem:[%s308 + $0x34] sm:$0xf]
      %v358 = vld [vmem:[%s308 + $0x38] sm:$0xf]
      %v359 = vld [vmem:[%s308 + $0x3c] sm:$0xf]
      %v360 = vld [vmem:[%s308 + $0x40] sm:$0xf]
      %v361 = vld [vmem:[%s308 + $0x44] sm:$0xf]
      %v362 = vld [vmem:[%s308 + $0x48] sm:$0xf]
      %v363 = vld [vmem:[%s308 + $0x4c] sm:$0xf]
      %v364 = vld [vmem:[%s308 + $0x50] sm:$0xf]
      %v365 = vld [vmem:[%s308 + $0x54] sm:$0xf]
      %v366 = vld [vmem:[%s308 + $0x58] sm:$0xf]
      %v367 = vld [vmem:[%s308 + $0x5c] sm:$0xf]
      %v368 = vld [vmem:[%s2] sm:$0xf]
      %v369 = vld [vmem:[%s2 + $0x4] sm:$0xf]
      %v370 = vld [vmem:[%s2 + $0x8] sm:$0xf]
      %v371 = vld [vmem:[%s2 + $0xc] sm:$0xf]
      %v372 = vld [vmem:[%s2 + $0x10] sm:$0xf]
      %v373 = vld [vmem:[%s2 + $0x14] sm:$0xf]
      %v374 = vld [vmem:[%s2 + $0x18] sm:$0xf]
      %v375 = vld [vmem:[%s2 + $0x1c] sm:$0xf]
      %v376 = vld [vmem:[%s2 + $0x20] sm:$0xf]
      %v377 = vld [vmem:[%s2 + $0x24] sm:$0xf]
      %v378 = vld [vmem:[%s2 + $0x28] sm:$0xf]
      %v379 = vld [vmem:[%s2 + $0x2c] sm:$0xf]
      %v380 = vld [vmem:[%s2 + $0x30] sm:$0xf]
      %v381 = vld [vmem:[%s2 + $0x34] sm:$0xf]
      %v382 = vld [vmem:[%s2 + $0x38] sm:$0xf]
      %v383 = vld [vmem:[%s2 + $0x3c] sm:$0xf]
      %v384 = vld [vmem:[%s3] sm:$0x1]
      %v386 = vlaneseq
      %v387 = vshrl.u32 %v386, 7
      %v388 = vsub.s32 0, %v387
      %v389 = vrot.slane %v384, %v388
      %v415 = vunpack.c.l.b16 %v344
      %v416 = vunpack.c.l.b16 %v345
      %v417 = vunpack.c.l.b16 %v346
      %v418 = vunpack.c.l.b16 %v347
      %v419 = vunpack.c.l.b16 %v348
      %v420 = vunpack.c.l.b16 %v349
      %v421 = vunpack.c.l.b16 %v350
      %v422 = vunpack.c.l.b16 %v351
      %v423 = vunpack.c.l.b16 %v352
      %v424 = vunpack.c.l.b16 %v353
      %v425 = vunpack.c.l.b16 %v354
      %v426 = vunpack.c.l.b16 %v355
      %v427 = vunpack.c.l.b16 %v356
      %v428 = vunpack.c.l.b16 %v357
      %v429 = vunpack.c.l.b16 %v358
      %v430 = vunpack.c.l.b16 %v359
      %v431 = vunpack.c.l.b16 %v360
      %v432 = vunpack.c.l.b16 %v361
      %v433 = vunpack.c.l.b16 %v362
      %v434 = vunpack.c.l.b16 %v363
      %v435 = vunpack.c.l.b16 %v364
      %v436 = vunpack.c.l.b16 %v365
      %v437 = vunpack.c.l.b16 %v366
      %v438 = vunpack.c.l.b16 %v367
      %v439 = vpack.c.b16 %v416, %v415
      %v440 = vpack.c.b16 %v418, %v417
      %v441 = vpack.c.b16 %v420, %v419
      %v442 = vpack.c.b16 %v422, %v421
      %v443 = vpack.c.b16 %v424, %v423
      %v444 = vpack.c.b16 %v426, %v425
      %v445 = vpack.c.b16 %v428, %v427
      %v446 = vpack.c.b16 %v430, %v429
      %v447 = vpack.c.b16 %v432, %v431
      %v448 = vpack.c.b16 %v434, %v433
      %v449 = vpack.c.b16 %v436, %v435
      %v450 = vpack.c.b16 %v438, %v437
      %v479 = vunpack.c.l.b16 %v368
      %v480 = vunpack.c.l.b16 %v369
      %v481 = vunpack.c.l.b16 %v370
      %v482 = vunpack.c.l.b16 %v371
      %v483 = vunpack.c.l.b16 %v372
      %v484 = vunpack.c.l.b16 %v373
      %v485 = vunpack.c.l.b16 %v374
      %v486 = vunpack.c.l.b16 %v375
      %v487 = vunpack.c.l.b16 %v376
      %v488 = vunpack.c.l.b16 %v377
      %v489 = vunpack.c.l.b16 %v378
      %v490 = vunpack.c.l.b16 %v379
      %v491 = vunpack.c.l.b16 %v380
      %v492 = vunpack.c.l.b16 %v381
      %v493 = vunpack.c.l.b16 %v382
      %v494 = vunpack.c.l.b16 %v383
      %v495 = vpack.c.b16 %v480, %v479
      %v496 = vpack.c.b16 %v482, %v481
      %v497 = vpack.c.b16 %v484, %v483
      %v498 = vpack.c.b16 %v486, %v485
      %v499 = vpack.c.b16 %v488, %v487
      %v500 = vpack.c.b16 %v490, %v489
      %v501 = vpack.c.b16 %v492, %v491
      %v502 = vpack.c.b16 %v494, %v493
      %511 = vmatprep.subr.bf16.mxu0 0
      %512 = vmatpush1.bf16.msra.mxu0 %v502
      %513 = vmatprep.subr.bf16.mxu0 0
      %514 = vmatpush1.bf16.msra.mxu0 %v501
      %515 = vmatprep.subr.bf16.mxu0 0
      %516 = vmatpush1.bf16.msra.mxu0 %v500
      %517 = vmatprep.subr.bf16.mxu0 0
      %518 = vmatpush1.bf16.msra.mxu0 %v499
      %519 = vmatprep.subr.bf16.mxu0 0
      %520 = vmatpush1.bf16.msra.mxu0 %v498
      %521 = vmatprep.subr.bf16.mxu0 0
      %522 = vmatpush1.bf16.msra.mxu0 %v497
      %523 = vmatprep.subr.bf16.mxu0 0
      %524 = vmatpush1.bf16.msra.mxu0 %v496
      %525 = vmatprep.subr.bf16.mxu0 0
      %526 = vmatpush1.bf16.msra.mxu0 %v495
      %527 = vmatprep.subr.bf16.mxu0 0
      %528 = vmatpush2.bf16.msra.mxu0 0
      %529 = vmatprep.subr.bf16.mxu0 0
      %530 = vmatpush2.bf16.msra.mxu0 0
      %531 = vmatprep.subr.bf16.mxu0 0
      %532 = vmatpush2.bf16.msra.mxu0 0
      %533 = vmatprep.subr.bf16.mxu0 0
      %534 = vmatpush2.bf16.msra.mxu0 0
      %535 = vmatprep.subr.bf16.mxu0 0
      %536 = vmatpush2.bf16.msra.mxu0 0
      %537 = vmatprep.subr.bf16.mxu0 0
      %538 = vmatpush2.bf16.msra.mxu0 0
      %539 = vmatprep.subr.bf16.mxu0 0
      %540 = vmatpush2.bf16.msra.mxu0 0
      %541 = vmatprep.subr.bf16.mxu0 0
      %542 = vmatpush2.bf16.msra.mxu0 0
      %543 = vmatprep.mubr.bf16.mxu0 0
      %544 = vmatmul.mubr.bf16.gmra.mxu0 %v439
      %v545 = vpop.f32.mrf.mxu0
      %v546 = vadd.f32 %v389, %v545
      %v547 = vpop.f32.mrf.mxu0
      %v548 = vpop.f32.mrf.mxu0
      %v549 = vadd.f32 %v389, %v548
      %v550 = vpop.f32.mrf.mxu0
      %551 = vmatprep.mubr.bf16.mxu0 0
      %552 = vmatmul.mubr.bf16.gmra.mxu0 %v440
      %v553 = vpop.f32.mrf.mxu0
      %v554 = vadd.f32 %v389, %v553
      %v555 = vpop.f32.mrf.mxu0
      %v556 = vpop.f32.mrf.mxu0
      %v557 = vadd.f32 %v389, %v556
      %v558 = vpop.f32.mrf.mxu0
      %559 = vmatprep.mubr.bf16.mxu0 0
      %560 = vmatmul.mubr.bf16.gmra.mxu0 %v441
      %v561 = vpop.f32.mrf.mxu0
      %v562 = vadd.f32 %v389, %v561
      %v563 = vpop.f32.mrf.mxu0
      %v564 = vpop.f32.mrf.mxu0
      %v565 = vadd.f32 %v389, %v564
      %v566 = vpop.f32.mrf.mxu0
      %567 = vmatprep.mubr.bf16.mxu0 0
      %568 = vmatmul.mubr.bf16.gmra.mxu0 %v442
      %v569 = vpop.f32.mrf.mxu0
      %v570 = vadd.f32 %v389, %v569
      %v571 = vpop.f32.mrf.mxu0
      %v572 = vpop.f32.mrf.mxu0
      %v573 = vadd.f32 %v389, %v572
      %v574 = vpop.f32.mrf.mxu0
      %575 = vmatprep.mubr.bf16.mxu0 0
      %576 = vmatmul.mubr.bf16.gmra.mxu0 %v443
      %v577 = vpop.f32.mrf.mxu0
      %v578 = vadd.f32 %v389, %v577
      %v579 = vpop.f32.mrf.mxu0
      %v580 = vpop.f32.mrf.mxu0
      %v581 = vadd.f32 %v389, %v580
      %v582 = vpop.f32.mrf.mxu0
      %583 = vmatprep.mubr.bf16.mxu0 0
      %584 = vmatmul.mubr.bf16.gmra.mxu0 %v444
      %v585 = vpop.f32.mrf.mxu0
      %v586 = vadd.f32 %v389, %v585
      %v587 = vpop.f32.mrf.mxu0
      %v588 = vpop.f32.mrf.mxu0
      %v589 = vadd.f32 %v389, %v588
      %v590 = vpop.f32.mrf.mxu0
      %591 = vmatprep.mubr.bf16.mxu0 0
      %592 = vmatmul.mubr.bf16.gmra.mxu0 %v445
      %v593 = vpop.f32.mrf.mxu0
      %v594 = vadd.f32 %v389, %v593
      %v595 = vpop.f32.mrf.mxu0
      %v596 = vpop.f32.mrf.mxu0
      %v597 = vadd.f32 %v389, %v596
      %v598 = vpop.f32.mrf.mxu0
      %599 = vmatprep.mubr.bf16.mxu0 0
      %600 = vmatmul.mubr.bf16.gmra.mxu0 %v446
      %v601 = vpop.f32.mrf.mxu0
      %v602 = vadd.f32 %v389, %v601
      %v603 = vpop.f32.mrf.mxu0
      %v604 = vpop.f32.mrf.mxu0
      %v605 = vadd.f32 %v389, %v604
      %v606 = vpop.f32.mrf.mxu0
      %607 = vmatprep.mubr.bf16.mxu0 0
      %608 = vmatmul.mubr.bf16.gmra.mxu0 %v447
      %v609 = vpop.f32.mrf.mxu0
      %v610 = vadd.f32 %v389, %v609
      %v611 = vpop.f32.mrf.mxu0
      %v612 = vpop.f32.mrf.mxu0
      %v613 = vadd.f32 %v389, %v612
      %v614 = vpop.f32.mrf.mxu0
      %615 = vmatprep.mubr.bf16.mxu0 0
      %616 = vmatmul.mubr.bf16.gmra.mxu0 %v448
      %v617 = vpop.f32.mrf.mxu0
      %v618 = vadd.f32 %v389, %v617
      %v619 = vpop.f32.mrf.mxu0
      %v620 = vpop.f32.mrf.mxu0
      %v621 = vadd.f32 %v389, %v620
      %v622 = vpop.f32.mrf.mxu0
      %623 = vmatprep.mubr.bf16.mxu0 0
      %624 = vmatmul.mubr.bf16.gmra.mxu0 %v449
      %v625 = vpop.f32.mrf.mxu0
      %v626 = vadd.f32 %v389, %v625
      %v627 = vpop.f32.mrf.mxu0
      %v628 = vpop.f32.mrf.mxu0
      %v629 = vadd.f32 %v389, %v628
      %v630 = vpop.f32.mrf.mxu0
      %631 = vmatprep.mubr.bf16.mxu0 0
      %632 = vmatmul.mubr.bf16.gmra.mxu0 %v450
      %v633 = vpop.f32.mrf.mxu0
      %v634 = vadd.f32 %v389, %v633
      %v635 = vpop.f32.mrf.mxu0
      %v636 = vpop.f32.mrf.mxu0
      %v637 = vadd.f32 %v389, %v636
      %v638 = vpop.f32.mrf.mxu0
      %639 = vdwg.mxu0
      %vm640 = vcmp.gt.f32.partialorder %v546, 0.0
      %vm641 = vcmp.gt.f32.partialorder %v549, 0.0
      %vm642 = vcmp.gt.f32.partialorder %v554, 0.0
      %vm643 = vcmp.gt.f32.partialorder %v557, 0.0
      %vm644 = vcmp.gt.f32.partialorder %v562, 0.0
      %vm645 = vcmp.gt.f32.partialorder %v565, 0.0
      %vm646 = vcmp.gt.f32.partialorder %v570, 0.0
      %vm647 = vcmp.gt.f32.partialorder %v573, 0.0
      %vm648 = vcmp.gt.f32.partialorder %v578, 0.0
      %vm649 = vcmp.gt.f32.partialorder %v581, 0.0
      %vm650 = vcmp.gt.f32.partialorder %v586, 0.0
      %vm651 = vcmp.gt.f32.partialorder %v589, 0.0
      %vm652 = vcmp.gt.f32.partialorder %v594, 0.0
      %vm653 = vcmp.gt.f32.partialorder %v597, 0.0
      %vm654 = vcmp.gt.f32.partialorder %v602, 0.0
      %vm655 = vcmp.gt.f32.partialorder %v605, 0.0
      %vm656 = vcmp.gt.f32.partialorder %v610, 0.0
      %vm657 = vcmp.gt.f32.partialorder %v613, 0.0
      %vm658 = vcmp.gt.f32.partialorder %v618, 0.0
      %vm659 = vcmp.gt.f32.partialorder %v621, 0.0
      %vm660 = vcmp.gt.f32.partialorder %v626, 0.0
      %vm661 = vcmp.gt.f32.partialorder %v629, 0.0
      %vm662 = vcmp.gt.f32.partialorder %v634, 0.0
      %vm663 = vcmp.gt.f32.partialorder %v637, 0.0
      %v664 = vmul.f32 %v546, 0.1
      %v665 = vmul.f32 %v549, 0.1
      %v666 = vmul.f32 %v554, 0.1
      %v667 = vmul.f32 %v557, 0.1
      %v668 = vmul.f32 %v562, 0.1
      %v669 = vmul.f32 %v565, 0.1
      %v670 = vmul.f32 %v570, 0.1
      %v671 = vmul.f32 %v573, 0.1
      %v672 = vmul.f32 %v578, 0.1
      %v673 = vmul.f32 %v581, 0.1
      %v674 = vmul.f32 %v586, 0.1
      %v675 = vmul.f32 %v589, 0.1
      %v676 = vmul.f32 %v594, 0.1
      %v677 = vmul.f32 %v597, 0.1
      %v678 = vmul.f32 %v602, 0.1
      %v679 = vmul.f32 %v605, 0.1
      %v680 = vmul.f32 %v610, 0.1
      %v681 = vmul.f32 %v613, 0.1
      %v682 = vmul.f32 %v618, 0.1
      %v683 = vmul.f32 %v621, 0.1
      %v684 = vmul.f32 %v626, 0.1
      %v685 = vmul.f32 %v629, 0.1
      %v686 = vmul.f32 %v634, 0.1
      %v687 = vmul.f32 %v637, 0.1
      %v688 = vsel %vm640, %v546, %v664
      %v689 = vsel %vm641, %v549, %v665
      %v690 = vsel %vm642, %v554, %v666
      %v691 = vsel %vm643, %v557, %v667
      %v692 = vsel %vm644, %v562, %v668
      %v693 = vsel %vm645, %v565, %v669
      %v694 = vsel %vm646, %v570, %v670
      %v695 = vsel %vm647, %v573, %v671
      %v696 = vsel %vm648, %v578, %v672
      %v697 = vsel %vm649, %v581, %v673
      %v698 = vsel %vm650, %v586, %v674
      %v699 = vsel %vm651, %v589, %v675
      %v700 = vsel %vm652, %v594, %v676
      %v701 = vsel %vm653, %v597, %v677
      %v702 = vsel %vm654, %v602, %v678
      %v703 = vsel %vm655, %v605, %v679
      %v704 = vsel %vm656, %v610, %v680
      %v705 = vsel %vm657, %v613, %v681
      %v706 = vsel %vm658, %v618, %v682
      %v707 = vsel %vm659, %v621, %v683
      %v708 = vsel %vm660, %v626, %v684
      %v709 = vsel %vm661, %v629, %v685
      %v710 = vsel %vm662, %v634, %v686
      %v711 = vsel %vm663, %v637, %v687
      %v712 = vsel %vm341, 1, 0
      %v713 = vsel %vm342, 1, 0
      %v714 = vsel %vm343, 1, 0
      %vm715 = vcmp.eq.s32.totalorder %v712, 1
      %vm716 = vcmp.eq.s32.totalorder %v713, 1
      %vm717 = vcmp.eq.s32.totalorder %v714, 1
      %v718 = vsel %vm715, %v688, 0.0
      %v719 = vsel %vm716, %v689, 0.0
      %v720 = vsel %vm717, %v690, 0.0
      %v721 = vsel %vm715, %v691, 0.0
      %v722 = vsel %vm716, %v692, 0.0
      %v723 = vsel %vm717, %v693, 0.0
      %v724 = vsel %vm715, %v694, 0.0
      %v725 = vsel %vm716, %v695, 0.0
      %v726 = vsel %vm717, %v696, 0.0
      %v727 = vsel %vm715, %v697, 0.0
      %v728 = vsel %vm716, %v698, 0.0
      %v729 = vsel %vm717, %v699, 0.0
      %v730 = vsel %vm715, %v700, 0.0
      %v731 = vsel %vm716, %v701, 0.0
      %v732 = vsel %vm717, %v702, 0.0
      %v733 = vsel %vm715, %v703, 0.0
      %v734 = vsel %vm716, %v704, 0.0
      %v735 = vsel %vm717, %v705, 0.0
      %v736 = vsel %vm715, %v706, 0.0
      %v737 = vsel %vm716, %v707, 0.0
      %v738 = vsel %vm717, %v708, 0.0
      %v739 = vsel %vm715, %v709, 0.0
      %v740 = vsel %vm716, %v710, 0.0
      %v741 = vsel %vm717, %v711, 0.0
      %v742 = vpack.c.bf16 %v719, %v718
      %v743 = vpack.c.bf16 %v720, %v720
      %v744 = vpack.c.bf16 %v722, %v721
      %v745 = vpack.c.bf16 %v723, %v723
      %v746 = vpack.c.bf16 %v725, %v724
      %v747 = vpack.c.bf16 %v726, %v726
      %v748 = vpack.c.bf16 %v728, %v727
      %v749 = vpack.c.bf16 %v729, %v729
      %v750 = vpack.c.bf16 %v731, %v730
      %v751 = vpack.c.bf16 %v732, %v732
      %v752 = vpack.c.bf16 %v734, %v733
      %v753 = vpack.c.bf16 %v735, %v735
      %v754 = vpack.c.bf16 %v737, %v736
      %v755 = vpack.c.bf16 %v738, %v738
      %v756 = vpack.c.bf16 %v740, %v739
      %v757 = vpack.c.bf16 %v741, %v741
      %v774 = vunpack.c.l.b16 %v742
      %v775 = vunpack.c.h.b16 %v742
      %v776 = vunpack.c.l.b16 %v743
      %v777 = vunpack.c.l.b16 %v744
      %v778 = vunpack.c.h.b16 %v744
      %v779 = vunpack.c.l.b16 %v745
      %v780 = vunpack.c.l.b16 %v746
      %v781 = vunpack.c.h.b16 %v746
      %v782 = vunpack.c.l.b16 %v747
      %v783 = vunpack.c.l.b16 %v748
      %v784 = vunpack.c.h.b16 %v748
      %v785 = vunpack.c.l.b16 %v749
      %v786 = vunpack.c.l.b16 %v750
      %v787 = vunpack.c.h.b16 %v750
      %v788 = vunpack.c.l.b16 %v751
      %v789 = vunpack.c.l.b16 %v752
      %v790 = vunpack.c.h.b16 %v752
      %v791 = vunpack.c.l.b16 %v753
      %v792 = vunpack.c.l.b16 %v754
      %v793 = vunpack.c.h.b16 %v754
      %v794 = vunpack.c.l.b16 %v755
      %v795 = vunpack.c.l.b16 %v756
      %v796 = vunpack.c.h.b16 %v756
      %v797 = vunpack.c.l.b16 %v757
      %v798 = vpack.c.b16 %v774, %v774
      %v799 = vpack.c.b16 %v775, %v775
      %v800 = vpack.c.b16 %v776, %v776
      %v801 = vpack.c.b16 %v777, %v777
      %v802 = vpack.c.b16 %v778, %v778
      %v803 = vpack.c.b16 %v779, %v779
      %v804 = vpack.c.b16 %v780, %v780
      %v805 = vpack.c.b16 %v781, %v781
      %v806 = vpack.c.b16 %v782, %v782
      %v807 = vpack.c.b16 %v783, %v783
      %v808 = vpack.c.b16 %v784, %v784
      %v809 = vpack.c.b16 %v785, %v785
      %v810 = vpack.c.b16 %v786, %v786
      %v811 = vpack.c.b16 %v787, %v787
      %v812 = vpack.c.b16 %v788, %v788
      %v813 = vpack.c.b16 %v789, %v789
      %v814 = vpack.c.b16 %v790, %v790
      %v815 = vpack.c.b16 %v791, %v791
      %v816 = vpack.c.b16 %v792, %v792
      %v817 = vpack.c.b16 %v793, %v793
      %v818 = vpack.c.b16 %v794, %v794
      %v819 = vpack.c.b16 %v795, %v795
      %v820 = vpack.c.b16 %v796, %v796
      %v821 = vpack.c.b16 %v797, %v797
      %s846 = scalar_lea.vmem [#allocation2], 12
      %847 = vst [vmem:[%s846] sm:$0xf] %v798
      %848 = vst [vmem:[%s846 + $0x4] sm:$0xf] %v799
      %849 = vst [vmem:[%s846 + $0x8] sm:$0xf] %v800
      %850 = vst [vmem:[%s846 + $0xc] sm:$0xf] %v801
      %851 = vst [vmem:[%s846 + $0x10] sm:$0xf] %v802
      %852 = vst [vmem:[%s846 + $0x14] sm:$0xf] %v803
      %853 = vst [vmem:[%s846 + $0x18] sm:$0xf] %v804
      %854 = vst [vmem:[%s846 + $0x1c] sm:$0xf] %v805
      %855 = vst [vmem:[%s846 + $0x20] sm:$0xf] %v806
      %856 = vst [vmem:[%s846 + $0x24] sm:$0xf] %v807
      %857 = vst [vmem:[%s846 + $0x28] sm:$0xf] %v808
      %858 = vst [vmem:[%s846 + $0x2c] sm:$0xf] %v809
      %859 = vst [vmem:[%s846 + $0x30] sm:$0xf] %v810
      %860 = vst [vmem:[%s846 + $0x34] sm:$0xf] %v811
      %861 = vst [vmem:[%s846 + $0x38] sm:$0xf] %v812
      %862 = vst [vmem:[%s846 + $0x3c] sm:$0xf] %v813
      %863 = vst [vmem:[%s846 + $0x40] sm:$0xf] %v814
      %864 = vst [vmem:[%s846 + $0x44] sm:$0xf] %v815
      %865 = vst [vmem:[%s846 + $0x48] sm:$0xf] %v816
      %866 = vst [vmem:[%s846 + $0x4c] sm:$0xf] %v817
      %867 = vst [vmem:[%s846 + $0x50] sm:$0xf] %v818
      %868 = vst [vmem:[%s846 + $0x54] sm:$0xf] %v819
      %869 = vst [vmem:[%s846 + $0x58] sm:$0xf] %v820
      %870 = vst [vmem:[%s846 + $0x5c] sm:$0xf] %v821
      %v871 = vld [vmem:[%s318] sm:$0xf]
      %v872 = vld [vmem:[%s318 + $0x4] sm:$0xf]
      %v873 = vld [vmem:[%s318 + $0x8] sm:$0xf]
      %v874 = vld [vmem:[%s318 + $0xc] sm:$0xf]
      %v875 = vld [vmem:[%s318 + $0x10] sm:$0xf]
      %v876 = vld [vmem:[%s318 + $0x14] sm:$0xf]
      %v877 = vld [vmem:[%s2] sm:$0xf]
      %v878 = vld [vmem:[%s2 + $0x4] sm:$0xf]
      %v879 = vld [vmem:[%s2 + $0x8] sm:$0xf]
      %v880 = vld [vmem:[%s2 + $0xc] sm:$0xf]
      %v881 = vld [vmem:[%s2 + $0x10] sm:$0xf]
      %v882 = vld [vmem:[%s2 + $0x14] sm:$0xf]
      %v883 = vld [vmem:[%s2 + $0x18] sm:$0xf]
      %v884 = vld [vmem:[%s2 + $0x1c] sm:$0xf]
      %v885 = vld [vmem:[%s2 + $0x20] sm:$0xf]
      %v886 = vld [vmem:[%s2 + $0x24] sm:$0xf]
      %v887 = vld [vmem:[%s2 + $0x28] sm:$0xf]
      %v888 = vld [vmem:[%s2 + $0x2c] sm:$0xf]
      %v889 = vld [vmem:[%s2 + $0x30] sm:$0xf]
      %v890 = vld [vmem:[%s2 + $0x34] sm:$0xf]
      %v891 = vld [vmem:[%s2 + $0x38] sm:$0xf]
      %v892 = vld [vmem:[%s2 + $0x3c] sm:$0xf]
      %v893 = vld [vmem:[%s3] sm:$0x1]
      %v895 = vlaneseq
      %v896 = vshrl.u32 %v895, 7
      %v897 = vsub.s32 0, %v896
      %v898 = vrot.slane %v893, %v897
      %v906 = vunpack.c.l.b16 %v871
      %v907 = vunpack.c.l.b16 %v872
      %v908 = vunpack.c.l.b16 %v873
      %v909 = vunpack.c.l.b16 %v874
      %v910 = vunpack.c.l.b16 %v875
      %v911 = vunpack.c.l.b16 %v876
      %v912 = vpack.c.b16 %v907, %v906
      %v913 = vpack.c.b16 %v909, %v908
      %v914 = vpack.c.b16 %v911, %v910
      %v934 = vunpack.c.l.b16 %v877
      %v935 = vunpack.c.l.b16 %v878
      %v936 = vunpack.c.l.b16 %v879
      %v937 = vunpack.c.l.b16 %v880
      %v938 = vunpack.c.l.b16 %v881
      %v939 = vunpack.c.l.b16 %v882
      %v940 = vunpack.c.l.b16 %v883
      %v941 = vunpack.c.l.b16 %v884
      %v942 = vunpack.c.l.b16 %v885
      %v943 = vunpack.c.l.b16 %v886
      %v944 = vunpack.c.l.b16 %v887
      %v945 = vunpack.c.l.b16 %v888
      %v946 = vunpack.c.l.b16 %v889
      %v947 = vunpack.c.l.b16 %v890
      %v948 = vunpack.c.l.b16 %v891
      %v949 = vunpack.c.l.b16 %v892
      %v950 = vpack.c.b16 %v935, %v934
      %v951 = vpack.c.b16 %v937, %v936
      %v952 = vpack.c.b16 %v939, %v938
      %v953 = vpack.c.b16 %v941, %v940
      %v954 = vpack.c.b16 %v943, %v942
      %v955 = vpack.c.b16 %v945, %v944
      %v956 = vpack.c.b16 %v947, %v946
      %v957 = vpack.c.b16 %v949, %v948
      %966 = vmatprep.subr.bf16.mxu0 0
      %967 = vmatpush1.bf16.msra.mxu0 %v957
      %968 = vmatprep.subr.bf16.mxu0 0
      %969 = vmatpush1.bf16.msra.mxu0 %v956
      %970 = vmatprep.subr.bf16.mxu0 0
      %971 = vmatpush1.bf16.msra.mxu0 %v955
      %972 = vmatprep.subr.bf16.mxu0 0
      %973 = vmatpush1.bf16.msra.mxu0 %v954
      %974 = vmatprep.subr.bf16.mxu0 0
      %975 = vmatpush1.bf16.msra.mxu0 %v953
      %976 = vmatprep.subr.bf16.mxu0 0
      %977 = vmatpush1.bf16.msra.mxu0 %v952
      %978 = vmatprep.subr.bf16.mxu0 0
      %979 = vmatpush1.bf16.msra.mxu0 %v951
      %980 = vmatprep.subr.bf16.mxu0 0
      %981 = vmatpush1.bf16.msra.mxu0 %v950
      %982 = vmatprep.subr.bf16.mxu0 0
      %983 = vmatpush2.bf16.msra.mxu0 0
      %984 = vmatprep.subr.bf16.mxu0 0
      %985 = vmatpush2.bf16.msra.mxu0 0
      %986 = vmatprep.subr.bf16.mxu0 0
      %987 = vmatpush2.bf16.msra.mxu0 0
      %988 = vmatprep.subr.bf16.mxu0 0
      %989 = vmatpush2.bf16.msra.mxu0 0
      %990 = vmatprep.subr.bf16.mxu0 0
      %991 = vmatpush2.bf16.msra.mxu0 0
      %992 = vmatprep.subr.bf16.mxu0 0
      %993 = vmatpush2.bf16.msra.mxu0 0
      %994 = vmatprep.subr.bf16.mxu0 0
      %995 = vmatpush2.bf16.msra.mxu0 0
      %996 = vmatprep.subr.bf16.mxu0 0
      %997 = vmatpush2.bf16.msra.mxu0 0
      %998 = vmatprep.mubr.bf16.mxu0 0
      %999 = vmatmul.mubr.bf16.gmra.mxu0 %v912
      %v1000 = vpop.f32.mrf.mxu0
      %v1001 = vadd.f32 %v898, %v1000
      %v1002 = vpop.f32.mrf.mxu0
      %v1003 = vpop.f32.mrf.mxu0
      %v1004 = vadd.f32 %v898, %v1003
      %v1005 = vpop.f32.mrf.mxu0
      %1006 = vmatprep.mubr.bf16.mxu0 0
      %1007 = vmatmul.mubr.bf16.gmra.mxu0 %v913
      %v1008 = vpop.f32.mrf.mxu0
      %v1009 = vadd.f32 %v898, %v1008
      %v1010 = vpop.f32.mrf.mxu0
      %v1011 = vpop.f32.mrf.mxu0
      %v1012 = vadd.f32 %v898, %v1011
      %v1013 = vpop.f32.mrf.mxu0
      %1014 = vmatprep.mubr.bf16.mxu0 0
      %1015 = vmatmul.mubr.bf16.gmra.mxu0 %v914
      %v1016 = vpop.f32.mrf.mxu0
      %v1017 = vadd.f32 %v898, %v1016
      %v1018 = vpop.f32.mrf.mxu0
      %v1019 = vpop.f32.mrf.mxu0
      %v1020 = vadd.f32 %v898, %v1019
      %v1021 = vpop.f32.mrf.mxu0
      %1022 = vdwg.mxu0
      %vm1023 = vcmp.gt.f32.partialorder %v1001, 0.0
      %vm1024 = vcmp.gt.f32.partialorder %v1004, 0.0
      %vm1025 = vcmp.gt.f32.partialorder %v1009, 0.0
      %vm1026 = vcmp.gt.f32.partialorder %v1012, 0.0
      %vm1027 = vcmp.gt.f32.partialorder %v1017, 0.0
      %vm1028 = vcmp.gt.f32.partialorder %v1020, 0.0
      %v1029 = vmul.f32 %v1001, 0.1
      %v1030 = vmul.f32 %v1004, 0.1
      %v1031 = vmul.f32 %v1009, 0.1
      %v1032 = vmul.f32 %v1012, 0.1
      %v1033 = vmul.f32 %v1017, 0.1
      %v1034 = vmul.f32 %v1020, 0.1
      %v1035 = vsel %vm1023, %v1001, %v1029
      %v1036 = vsel %vm1024, %v1004, %v1030
      %v1037 = vsel %vm1025, %v1009, %v1031
      %v1038 = vsel %vm1026, %v1012, %v1032
      %v1039 = vsel %vm1027, %v1017, %v1033
      %v1040 = vsel %vm1028, %v1020, %v1034
      %v1041 = vsel %vm715, %v1035, 0.0
      %v1042 = vsel %vm716, %v1036, 0.0
      %v1043 = vsel %vm717, %v1037, 0.0
      %v1044 = vsel %vm715, %v1038, 0.0
      %v1045 = vsel %vm716, %v1039, 0.0
      %v1046 = vsel %vm717, %v1040, 0.0
      %p1047 = scmp.gt.s32.totalorder %s22, 0
      %s1048 = scalar_select %p1047, 1, 0
      %s1049 = scvt.s32.f32 %s1048
      %p1050 = scmp.lt.s32.totalorder %s22, 1
      %s1051 = scalar_select %p1050, 1, 0
      %s1052 = scvt.s32.f32 %s1051
      %v1053 = vstv %s1049
      %v1054 = vmul.f32 %v1041, %v1053
      %v1055 = vmul.f32 %v1042, %v1053
      %v1056 = vmul.f32 %v1043, %v1053
      %v1057 = vpack.c.bf16 %v1055, %v1054
      %v1058 = vpack.c.bf16 %v1056, %v1056
      %v1061 = vunpack.c.l.b16 %v1057
      %v1062 = vunpack.c.h.b16 %v1057
      %v1063 = vunpack.c.l.b16 %v1058
      %v1064 = vpack.c.b16 %v1061, %v1061
      %v1065 = vpack.c.b16 %v1062, %v1062
      %v1066 = vpack.c.b16 %v1063, %v1063
      %1070 = vst [vmem:[#allocation2] sm:$0xf] %v1064
      %1071 = vst [vmem:[#allocation2 + $0x4] sm:$0xf] %v1065
      %1072 = vst [vmem:[#allocation2 + $0x8] sm:$0xf] %v1066
      %v1073 = vstv %s1052
      %v1074 = vmul.f32 %v1044, %v1073
      %v1075 = vmul.f32 %v1045, %v1073
      %v1076 = vmul.f32 %v1046, %v1073
      %v1077 = vpack.c.bf16 %v1075, %v1074
      %v1078 = vpack.c.bf16 %v1076, %v1076
      %v1081 = vunpack.c.l.b16 %v1077
      %v1082 = vunpack.c.h.b16 %v1077
      %v1083 = vunpack.c.l.b16 %v1078
      %v1084 = vpack.c.b16 %v1081, %v1081
      %v1085 = vpack.c.b16 %v1082, %v1082
      %v1086 = vpack.c.b16 %v1083, %v1083
      %s1090 = scalar_lea.vmem [#allocation2], 108
      %1091 = vst [vmem:[%s1090] sm:$0xf] %v1084
      %1092 = vst [vmem:[%s1090 + $0x4] sm:$0xf] %v1085
      %1093 = vst [vmem:[%s1090 + $0x8] sm:$0xf] %v1086
      %v1094 = vld [vmem:[#allocation2] sm:$0xf]
      %v1095 = vld [vmem:[#allocation2 + $0x4] sm:$0xf]
      %v1096 = vld [vmem:[#allocation2 + $0x8] sm:$0xf]
      %v1097 = vld [vmem:[#allocation2 + $0xc] sm:$0xf]
      %v1098 = vld [vmem:[#allocation2 + $0x10] sm:$0xf]
      %v1099 = vld [vmem:[#allocation2 + $0x14] sm:$0xf]
      %v1100 = vld [vmem:[#allocation2 + $0x18] sm:$0xf]
      %v1101 = vld [vmem:[#allocation2 + $0x1c] sm:$0xf]
      %v1102 = vld [vmem:[#allocation2 + $0x20] sm:$0xf]
      %v1103 = vld [vmem:[#allocation2 + $0x24] sm:$0xf]
      %v1104 = vld [vmem:[#allocation2 + $0x28] sm:$0xf]
      %v1105 = vld [vmem:[#allocation2 + $0x2c] sm:$0xf]
      %v1106 = vld [vmem:[#allocation2 + $0x30] sm:$0xf]
      %v1107 = vld [vmem:[#allocation2 + $0x34] sm:$0xf]
      %v1108 = vld [vmem:[#allocation2 + $0x38] sm:$0xf]
      %v1109 = vld [vmem:[#allocation2 + $0x3c] sm:$0xf]
      %v1110 = vld [vmem:[#allocation2 + $0x40] sm:$0xf]
      %v1111 = vld [vmem:[#allocation2 + $0x44] sm:$0xf]
      %v1112 = vld [vmem:[#allocation2 + $0x48] sm:$0xf]
      %v1113 = vld [vmem:[#allocation2 + $0x4c] sm:$0xf]
      %v1114 = vld [vmem:[#allocation2 + $0x50] sm:$0xf]
      %v1115 = vld [vmem:[#allocation2 + $0x54] sm:$0xf]
      %v1116 = vld [vmem:[#allocation2 + $0x58] sm:$0xf]
      %v1117 = vld [vmem:[#allocation2 + $0x5c] sm:$0xf]
      %v1118 = vld [vmem:[%s846] sm:$0xf]
      %v1119 = vld [vmem:[%s846 + $0x4] sm:$0xf]
      %v1120 = vld [vmem:[%s846 + $0x8] sm:$0xf]
      %v1121 = vld [vmem:[%s846 + $0xc] sm:$0xf]
      %v1122 = vld [vmem:[%s846 + $0x10] sm:$0xf]
      %v1123 = vld [vmem:[%s846 + $0x14] sm:$0xf]
      %v1124 = vld [vmem:[%s846 + $0x18] sm:$0xf]
      %v1125 = vld [vmem:[%s846 + $0x1c] sm:$0xf]
      %v1126 = vld [vmem:[%s846 + $0x20] sm:$0xf]
      %v1127 = vld [vmem:[%s846 + $0x24] sm:$0xf]
      %v1128 = vld [vmem:[%s846 + $0x28] sm:$0xf]
      %v1129 = vld [vmem:[%s846 + $0x2c] sm:$0xf]
      %v1130 = vld [vmem:[%s846 + $0x30] sm:$0xf]
      %v1131 = vld [vmem:[%s846 + $0x34] sm:$0xf]
      %v1132 = vld [vmem:[%s846 + $0x38] sm:$0xf]
      %v1133 = vld [vmem:[%s846 + $0x3c] sm:$0xf]
      %v1134 = vld [vmem:[%s846 + $0x40] sm:$0xf]
      %v1135 = vld [vmem:[%s846 + $0x44] sm:$0xf]
      %v1136 = vld [vmem:[%s846 + $0x48] sm:$0xf]
      %v1137 = vld [vmem:[%s846 + $0x4c] sm:$0xf]
      %v1138 = vld [vmem:[%s846 + $0x50] sm:$0xf]
      %v1139 = vld [vmem:[%s846 + $0x54] sm:$0xf]
      %v1140 = vld [vmem:[%s846 + $0x58] sm:$0xf]
      %v1141 = vld [vmem:[%s846 + $0x5c] sm:$0xf]
      %s1142 = scalar_lea.vmem [#allocation2], 24
      %v1143 = vld [vmem:[%s1142] sm:$0xf]
      %v1144 = vld [vmem:[%s1142 + $0x4] sm:$0xf]
      %v1145 = vld [vmem:[%s1142 + $0x8] sm:$0xf]
      %v1146 = vld [vmem:[%s1142 + $0xc] sm:$0xf]
      %v1147 = vld [vmem:[%s1142 + $0x10] sm:$0xf]
      %v1148 = vld [vmem:[%s1142 + $0x14] sm:$0xf]
      %v1149 = vld [vmem:[%s1142 + $0x18] sm:$0xf]
      %v1150 = vld [vmem:[%s1142 + $0x1c] sm:$0xf]
      %v1151 = vld [vmem:[%s1142 + $0x20] sm:$0xf]
      %v1152 = vld [vmem:[%s1142 + $0x24] sm:$0xf]
      %v1153 = vld [vmem:[%s1142 + $0x28] sm:$0xf]
      %v1154 = vld [vmem:[%s1142 + $0x2c] sm:$0xf]
      %v1155 = vld [vmem:[%s1142 + $0x30] sm:$0xf]
      %v1156 = vld [vmem:[%s1142 + $0x34] sm:$0xf]
      %v1157 = vld [vmem:[%s1142 + $0x38] sm:$0xf]
      %v1158 = vld [vmem:[%s1142 + $0x3c] sm:$0xf]
      %v1159 = vld [vmem:[%s1142 + $0x40] sm:$0xf]
      %v1160 = vld [vmem:[%s1142 + $0x44] sm:$0xf]
      %v1161 = vld [vmem:[%s1142 + $0x48] sm:$0xf]
      %v1162 = vld [vmem:[%s1142 + $0x4c] sm:$0xf]
      %v1163 = vld [vmem:[%s1142 + $0x50] sm:$0xf]
      %v1164 = vld [vmem:[%s1142 + $0x54] sm:$0xf]
      %v1165 = vld [vmem:[%s1142 + $0x58] sm:$0xf]
      %v1166 = vld [vmem:[%s1142 + $0x5c] sm:$0xf]
      %v1167 = vld [vmem:[%s4] sm:$0xf]
      %v1168 = vld [vmem:[%s4 + $0x4] sm:$0xf]
      %v1169 = vld [vmem:[%s4 + $0x8] sm:$0xf]
      %v1170 = vld [vmem:[%s4 + $0xc] sm:$0xf]
      %v1171 = vld [vmem:[%s4 + $0x10] sm:$0xf]
      %v1172 = vld [vmem:[%s4 + $0x14] sm:$0xf]
      %v1173 = vld [vmem:[%s4 + $0x18] sm:$0xf]
      %v1174 = vld [vmem:[%s4 + $0x1c] sm:$0xf]
      %v1175 = vld [vmem:[%s4 + $0x20] sm:$0xf]
      %v1176 = vld [vmem:[%s4 + $0x24] sm:$0xf]
      %v1177 = vld [vmem:[%s4 + $0x28] sm:$0xf]
      %v1178 = vld [vmem:[%s4 + $0x2c] sm:$0xf]
      %v1179 = vld [vmem:[%s4 + $0x30] sm:$0xf]
      %v1180 = vld [vmem:[%s4 + $0x34] sm:$0xf]
      %v1181 = vld [vmem:[%s4 + $0x38] sm:$0xf]
      %v1182 = vld [vmem:[%s4 + $0x3c] sm:$0xf]
      %s1183 = scalar_lea.vmem %s4, 192
      %v1184 = vld [vmem:[%s1183] sm:$0xf]
      %v1185 = vld [vmem:[%s1183 + $0x4] sm:$0xf]
      %v1186 = vld [vmem:[%s1183 + $0x8] sm:$0xf]
      %v1187 = vld [vmem:[%s1183 + $0xc] sm:$0xf]
      %v1188 = vld [vmem:[%s1183 + $0x10] sm:$0xf]
      %v1189 = vld [vmem:[%s1183 + $0x14] sm:$0xf]
      %v1190 = vld [vmem:[%s1183 + $0x18] sm:$0xf]
      %v1191 = vld [vmem:[%s1183 + $0x1c] sm:$0xf]
      %v1192 = vld [vmem:[%s1183 + $0x20] sm:$0xf]
      %v1193 = vld [vmem:[%s1183 + $0x24] sm:$0xf]
      %v1194 = vld [vmem:[%s1183 + $0x28] sm:$0xf]
      %v1195 = vld [vmem:[%s1183 + $0x2c] sm:$0xf]
      %v1196 = vld [vmem:[%s1183 + $0x30] sm:$0xf]
      %v1197 = vld [vmem:[%s1183 + $0x34] sm:$0xf]
      %v1198 = vld [vmem:[%s1183 + $0x38] sm:$0xf]
      %v1199 = vld [vmem:[%s1183 + $0x3c] sm:$0xf]
      %v1224 = vunpack.c.l.b16 %v1118
      %v1225 = vunpack.c.l.b16 %v1119
      %v1226 = vunpack.c.l.b16 %v1120
      %v1227 = vunpack.c.l.b16 %v1121
      %v1228 = vunpack.c.l.b16 %v1122
      %v1229 = vunpack.c.l.b16 %v1123
      %v1230 = vunpack.c.l.b16 %v1124
      %v1231 = vunpack.c.l.b16 %v1125
      %v1232 = vunpack.c.l.b16 %v1126
      %v1233 = vunpack.c.l.b16 %v1127
      %v1234 = vunpack.c.l.b16 %v1128
      %v1235 = vunpack.c.l.b16 %v1129
      %v1236 = vunpack.c.l.b16 %v1130
      %v1237 = vunpack.c.l.b16 %v1131
      %v1238 = vunpack.c.l.b16 %v1132
      %v1239 = vunpack.c.l.b16 %v1133
      %v1240 = vunpack.c.l.b16 %v1134
      %v1241 = vunpack.c.l.b16 %v1135
      %v1242 = vunpack.c.l.b16 %v1136
      %v1243 = vunpack.c.l.b16 %v1137
      %v1244 = vunpack.c.l.b16 %v1138
      %v1245 = vunpack.c.l.b16 %v1139
      %v1246 = vunpack.c.l.b16 %v1140
      %v1247 = vunpack.c.l.b16 %v1141
      %v1248 = vpack.c.b16 %v1225, %v1224
      %v1249 = vpack.c.b16 %v1227, %v1226
      %v1250 = vpack.c.b16 %v1229, %v1228
      %v1251 = vpack.c.b16 %v1231, %v1230
      %v1252 = vpack.c.b16 %v1233, %v1232
      %v1253 = vpack.c.b16 %v1235, %v1234
      %v1254 = vpack.c.b16 %v1237, %v1236
      %v1255 = vpack.c.b16 %v1239, %v1238
      %v1256 = vpack.c.b16 %v1241, %v1240
      %v1257 = vpack.c.b16 %v1243, %v1242
      %v1258 = vpack.c.b16 %v1245, %v1244
      %v1259 = vpack.c.b16 %v1247, %v1246
      %v1288 = vunpack.c.l.b16 %v1184
      %v1289 = vunpack.c.l.b16 %v1185
      %v1290 = vunpack.c.l.b16 %v1186
      %v1291 = vunpack.c.l.b16 %v1187
      %v1292 = vunpack.c.l.b16 %v1188
      %v1293 = vunpack.c.l.b16 %v1189
      %v1294 = vunpack.c.l.b16 %v1190
      %v1295 = vunpack.c.l.b16 %v1191
      %v1296 = vunpack.c.l.b16 %v1192
      %v1297 = vunpack.c.l.b16 %v1193
      %v1298 = vunpack.c.l.b16 %v1194
      %v1299 = vunpack.c.l.b16 %v1195
      %v1300 = vunpack.c.l.b16 %v1196
      %v1301 = vunpack.c.l.b16 %v1197
      %v1302 = vunpack.c.l.b16 %v1198
      %v1303 = vunpack.c.l.b16 %v1199
      %v1304 = vpack.c.b16 %v1289, %v1288
      %v1305 = vpack.c.b16 %v1291, %v1290
      %v1306 = vpack.c.b16 %v1293, %v1292
      %v1307 = vpack.c.b16 %v1295, %v1294
      %v1308 = vpack.c.b16 %v1297, %v1296
      %v1309 = vpack.c.b16 %v1299, %v1298
      %v1310 = vpack.c.b16 %v1301, %v1300
      %v1311 = vpack.c.b16 %v1303, %v1302
      %1320 = vmatprep.subr.bf16.mxu0 0
      %1321 = vmatpush1.bf16.msra.mxu0 %v1311
      %1322 = vmatprep.subr.bf16.mxu0 0
      %1323 = vmatpush1.bf16.msra.mxu0 %v1310
      %1324 = vmatprep.subr.bf16.mxu0 0
      %1325 = vmatpush1.bf16.msra.mxu0 %v1309
      %1326 = vmatprep.subr.bf16.mxu0 0
      %1327 = vmatpush1.bf16.msra.mxu0 %v1308
      %1328 = vmatprep.subr.bf16.mxu0 0
      %1329 = vmatpush1.bf16.msra.mxu0 %v1307
      %1330 = vmatprep.subr.bf16.mxu0 0
      %1331 = vmatpush1.bf16.msra.mxu0 %v1306
      %1332 = vmatprep.subr.bf16.mxu0 0
      %1333 = vmatpush1.bf16.msra.mxu0 %v1305
      %1334 = vmatprep.subr.bf16.mxu0 0
      %1335 = vmatpush1.bf16.msra.mxu0 %v1304
      %1336 = vmatprep.subr.bf16.mxu0 0
      %1337 = vmatpush2.bf16.msra.mxu0 0
      %1338 = vmatprep.subr.bf16.mxu0 0
      %1339 = vmatpush2.bf16.msra.mxu0 0
      %1340 = vmatprep.subr.bf16.mxu0 0
      %1341 = vmatpush2.bf16.msra.mxu0 0
      %1342 = vmatprep.subr.bf16.mxu0 0
      %1343 = vmatpush2.bf16.msra.mxu0 0
      %1344 = vmatprep.subr.bf16.mxu0 0
      %1345 = vmatpush2.bf16.msra.mxu0 0
      %1346 = vmatprep.subr.bf16.mxu0 0
      %1347 = vmatpush2.bf16.msra.mxu0 0
      %1348 = vmatprep.subr.bf16.mxu0 0
      %1349 = vmatpush2.bf16.msra.mxu0 0
      %1350 = vmatprep.subr.bf16.mxu0 0
      %1351 = vmatpush2.bf16.msra.mxu0 0
      %1352 = vmatprep.mubr.bf16.mxu0 0
      %1353 = vmatmul.mubr.bf16.gmra.mxu0 %v1248
      %v1354 = vpop.f32.mrf.mxu0
      %v1355 = vadd.f32 0.0, %v1354
      %v1356 = vpop.f32.mrf.mxu0
      %v1357 = vpop.f32.mrf.mxu0
      %v1358 = vadd.f32 0.0, %v1357
      %v1359 = vpop.f32.mrf.mxu0
      %1360 = vmatprep.mubr.bf16.mxu0 0
      %1361 = vmatmul.mubr.bf16.gmra.mxu0 %v1249
      %v1362 = vpop.f32.mrf.mxu0
      %v1363 = vpop.f32.mrf.mxu0
      %v1364 = vpop.f32.mrf.mxu0
      %v1365 = vadd.f32 0.0, %v1364
      %v1366 = vpop.f32.mrf.mxu0
      %1367 = vmatprep.mubr.bf16.mxu0 0
      %1368 = vmatmul.mubr.bf16.gmra.mxu0 %v1250
      %v1369 = vpop.f32.mrf.mxu0
      %v1370 = vadd.f32 0.0, %v1369
      %v1371 = vpop.f32.mrf.mxu0
      %v1372 = vpop.f32.mrf.mxu0
      %v1373 = vpop.f32.mrf.mxu0
      %1374 = vmatprep.mubr.bf16.mxu0 0
      %1375 = vmatmul.mubr.bf16.gmra.mxu0 %v1251
      %v1376 = vpop.f32.mrf.mxu0
      %v1377 = vadd.f32 0.0, %v1376
      %v1378 = vpop.f32.mrf.mxu0
      %v1379 = vpop.f32.mrf.mxu0
      %v1380 = vadd.f32 0.0, %v1379
      %v1381 = vpop.f32.mrf.mxu0
      %1382 = vmatprep.mubr.bf16.mxu0 0
      %1383 = vmatmul.mubr.bf16.gmra.mxu0 %v1252
      %v1384 = vpop.f32.mrf.mxu0
      %v1385 = vpop.f32.mrf.mxu0
      %v1386 = vpop.f32.mrf.mxu0
      %v1387 = vadd.f32 0.0, %v1386
      %v1388 = vpop.f32.mrf.mxu0
      %1389 = vmatprep.mubr.bf16.mxu0 0
      %1390 = vmatmul.mubr.bf16.gmra.mxu0 %v1253
      %v1391 = vpop.f32.mrf.mxu0
      %v1392 = vadd.f32 0.0, %v1391
      %v1393 = vpop.f32.mrf.mxu0
      %v1394 = vpop.f32.mrf.mxu0
      %v1395 = vpop.f32.mrf.mxu0
      %1396 = vmatprep.mubr.bf16.mxu0 0
      %1397 = vmatmul.mubr.bf16.gmra.mxu0 %v1254
      %v1398 = vpop.f32.mrf.mxu0
      %v1399 = vadd.f32 0.0, %v1398
      %v1400 = vpop.f32.mrf.mxu0
      %v1401 = vpop.f32.mrf.mxu0
      %v1402 = vadd.f32 0.0, %v1401
      %v1403 = vpop.f32.mrf.mxu0
      %1404 = vmatprep.mubr.bf16.mxu0 0
      %1405 = vmatmul.mubr.bf16.gmra.mxu0 %v1255
      %v1406 = vpop.f32.mrf.mxu0
      %v1407 = vpop.f32.mrf.mxu0
      %v1408 = vpop.f32.mrf.mxu0
      %v1409 = vadd.f32 0.0, %v1408
      %v1410 = vpop.f32.mrf.mxu0
      %1411 = vmatprep.mubr.bf16.mxu0 0
      %1412 = vmatmul.mubr.bf16.gmra.mxu0 %v1256
      %v1413 = vpop.f32.mrf.mxu0
      %v1414 = vadd.f32 0.0, %v1413
      %v1415 = vpop.f32.mrf.mxu0
      %v1416 = vpop.f32.mrf.mxu0
      %v1417 = vpop.f32.mrf.mxu0
      %1418 = vmatprep.mubr.bf16.mxu0 0
      %1419 = vmatmul.mubr.bf16.gmra.mxu0 %v1257
      %v1420 = vpop.f32.mrf.mxu0
      %v1421 = vadd.f32 0.0, %v1420
      %v1422 = vpop.f32.mrf.mxu0
      %v1423 = vpop.f32.mrf.mxu0
      %v1424 = vadd.f32 0.0, %v1423
      %v1425 = vpop.f32.mrf.mxu0
      %1426 = vmatprep.mubr.bf16.mxu0 0
      %1427 = vmatmul.mubr.bf16.gmra.mxu0 %v1258
      %v1428 = vpop.f32.mrf.mxu0
      %v1429 = vpop.f32.mrf.mxu0
      %v1430 = vpop.f32.mrf.mxu0
      %v1431 = vadd.f32 0.0, %v1430
      %v1432 = vpop.f32.mrf.mxu0
      %1433 = vmatprep.mubr.bf16.mxu0 0
      %1434 = vmatmul.mubr.bf16.gmra.mxu0 %v1259
      %v1435 = vpop.f32.mrf.mxu0
      %v1436 = vadd.f32 0.0, %v1435
      %v1437 = vpop.f32.mrf.mxu0
      %v1438 = vpop.f32.mrf.mxu0
      %v1439 = vpop.f32.mrf.mxu0
      %1440 = vdwg.mxu0
      %v1465 = vunpack.c.l.b16 %v1094
      %v1466 = vunpack.c.l.b16 %v1095
      %v1467 = vunpack.c.l.b16 %v1096
      %v1468 = vunpack.c.l.b16 %v1097
      %v1469 = vunpack.c.l.b16 %v1098
      %v1470 = vunpack.c.l.b16 %v1099
      %v1471 = vunpack.c.l.b16 %v1100
      %v1472 = vunpack.c.l.b16 %v1101
      %v1473 = vunpack.c.l.b16 %v1102
      %v1474 = vunpack.c.l.b16 %v1103
      %v1475 = vunpack.c.l.b16 %v1104
      %v1476 = vunpack.c.l.b16 %v1105
      %v1477 = vunpack.c.l.b16 %v1106
      %v1478 = vunpack.c.l.b16 %v1107
      %v1479 = vunpack.c.l.b16 %v1108
      %v1480 = vunpack.c.l.b16 %v1109
      %v1481 = vunpack.c.l.b16 %v1110
      %v1482 = vunpack.c.l.b16 %v1111
      %v1483 = vunpack.c.l.b16 %v1112
      %v1484 = vunpack.c.l.b16 %v1113
      %v1485 = vunpack.c.l.b16 %v1114
      %v1486 = vunpack.c.l.b16 %v1115
      %v1487 = vunpack.c.l.b16 %v1116
      %v1488 = vunpack.c.l.b16 %v1117
      %v1489 = vpack.c.b16 %v1466, %v1465
      %v1490 = vpack.c.b16 %v1468, %v1467
      %v1491 = vpack.c.b16 %v1470, %v1469
      %v1492 = vpack.c.b16 %v1472, %v1471
      %v1493 = vpack.c.b16 %v1474, %v1473
      %v1494 = vpack.c.b16 %v1476, %v1475
      %v1495 = vpack.c.b16 %v1478, %v1477
      %v1496 = vpack.c.b16 %v1480, %v1479
      %v1497 = vpack.c.b16 %v1482, %v1481
      %v1498 = vpack.c.b16 %v1484, %v1483
      %v1499 = vpack.c.b16 %v1486, %v1485
      %v1500 = vpack.c.b16 %v1488, %v1487
      %v1529 = vunpack.c.l.b16 %v1167
      %v1530 = vunpack.c.l.b16 %v1168
      %v1531 = vunpack.c.l.b16 %v1169
      %v1532 = vunpack.c.l.b16 %v1170
      %v1533 = vunpack.c.l.b16 %v1171
      %v1534 = vunpack.c.l.b16 %v1172
      %v1535 = vunpack.c.l.b16 %v1173
      %v1536 = vunpack.c.l.b16 %v1174
      %v1537 = vunpack.c.l.b16 %v1175
      %v1538 = vunpack.c.l.b16 %v1176
      %v1539 = vunpack.c.l.b16 %v1177
      %v1540 = vunpack.c.l.b16 %v1178
      %v1541 = vunpack.c.l.b16 %v1179
      %v1542 = vunpack.c.l.b16 %v1180
      %v1543 = vunpack.c.l.b16 %v1181
      %v1544 = vunpack.c.l.b16 %v1182
      %v1545 = vpack.c.b16 %v1530, %v1529
      %v1546 = vpack.c.b16 %v1532, %v1531
      %v1547 = vpack.c.b16 %v1534, %v1533
      %v1548 = vpack.c.b16 %v1536, %v1535
      %v1549 = vpack.c.b16 %v1538, %v1537
      %v1550 = vpack.c.b16 %v1540, %v1539
      %v1551 = vpack.c.b16 %v1542, %v1541
      %v1552 = vpack.c.b16 %v1544, %v1543
      %1561 = vmatprep.subr.bf16.mxu0 0
      %1562 = vmatpush1.bf16.msra.mxu0 %v1552
      %1563 = vmatprep.subr.bf16.mxu0 0
      %1564 = vmatpush1.bf16.msra.mxu0 %v1551
      %1565 = vmatprep.subr.bf16.mxu0 0
      %1566 = vmatpush1.bf16.msra.mxu0 %v1550
      %1567 = vmatprep.subr.bf16.mxu0 0
      %1568 = vmatpush1.bf16.msra.mxu0 %v1549
      %1569 = vmatprep.subr.bf16.mxu0 0
      %1570 = vmatpush1.bf16.msra.mxu0 %v1548
      %1571 = vmatprep.subr.bf16.mxu0 0
      %1572 = vmatpush1.bf16.msra.mxu0 %v1547
      %1573 = vmatprep.subr.bf16.mxu0 0
      %1574 = vmatpush1.bf16.msra.mxu0 %v1546
      %1575 = vmatprep.subr.bf16.mxu0 0
      %1576 = vmatpush1.bf16.msra.mxu0 %v1545
      %1577 = vmatprep.subr.bf16.mxu0 0
      %1578 = vmatpush2.bf16.msra.mxu0 0
      %1579 = vmatprep.subr.bf16.mxu0 0
      %1580 = vmatpush2.bf16.msra.mxu0 0
      %1581 = vmatprep.subr.bf16.mxu0 0
      %1582 = vmatpush2.bf16.msra.mxu0 0
      %1583 = vmatprep.subr.bf16.mxu0 0
      %1584 = vmatpush2.bf16.msra.mxu0 0
      %1585 = vmatprep.subr.bf16.mxu0 0
      %1586 = vmatpush2.bf16.msra.mxu0 0
      %1587 = vmatprep.subr.bf16.mxu0 0
      %1588 = vmatpush2.bf16.msra.mxu0 0
      %1589 = vmatprep.subr.bf16.mxu0 0
      %1590 = vmatpush2.bf16.msra.mxu0 0
      %1591 = vmatprep.subr.bf16.mxu0 0
      %1592 = vmatpush2.bf16.msra.mxu0 0
      %1593 = vmatprep.mubr.bf16.mxu0 0
      %1594 = vmatmul.mubr.bf16.gmra.mxu0 %v1489
      %v1595 = vpop.f32.mrf.mxu0
      %v1596 = vadd.f32 %v1355, %v1595
      %v1597 = vpop.f32.mrf.mxu0
      %v1598 = vpop.f32.mrf.mxu0
      %v1599 = vadd.f32 %v1358, %v1598
      %v1600 = vpop.f32.mrf.mxu0
      %1601 = vmatprep.mubr.bf16.mxu0 0
      %1602 = vmatmul.mubr.bf16.gmra.mxu0 %v1490
      %v1603 = vpop.f32.mrf.mxu0
      %v1604 = vpop.f32.mrf.mxu0
      %v1605 = vpop.f32.mrf.mxu0
      %v1606 = vadd.f32 %v1365, %v1605
      %v1607 = vpop.f32.mrf.mxu0
      %1608 = vmatprep.mubr.bf16.mxu0 0
      %1609 = vmatmul.mubr.bf16.gmra.mxu0 %v1491
      %v1610 = vpop.f32.mrf.mxu0
      %v1611 = vadd.f32 %v1370, %v1610
      %v1612 = vpop.f32.mrf.mxu0
      %v1613 = vpop.f32.mrf.mxu0
      %v1614 = vpop.f32.mrf.mxu0
      %1615 = vmatprep.mubr.bf16.mxu0 0
      %1616 = vmatmul.mubr.bf16.gmra.mxu0 %v1492
      %v1617 = vpop.f32.mrf.mxu0
      %v1618 = vadd.f32 %v1377, %v1617
      %v1619 = vpop.f32.mrf.mxu0
      %v1620 = vpop.f32.mrf.mxu0
      %v1621 = vadd.f32 %v1380, %v1620
      %v1622 = vpop.f32.mrf.mxu0
      %1623 = vmatprep.mubr.bf16.mxu0 0
      %1624 = vmatmul.mubr.bf16.gmra.mxu0 %v1493
      %v1625 = vpop.f32.mrf.mxu0
      %v1626 = vpop.f32.mrf.mxu0
      %v1627 = vpop.f32.mrf.mxu0
      %v1628 = vadd.f32 %v1387, %v1627
      %v1629 = vpop.f32.mrf.mxu0
      %1630 = vmatprep.mubr.bf16.mxu0 0
      %1631 = vmatmul.mubr.bf16.gmra.mxu0 %v1494
      %v1632 = vpop.f32.mrf.mxu0
      %v1633 = vadd.f32 %v1392, %v1632
      %v1634 = vpop.f32.mrf.mxu0
      %v1635 = vpop.f32.mrf.mxu0
      %v1636 = vpop.f32.mrf.mxu0
      %1637 = vmatprep.mubr.bf16.mxu0 0
      %1638 = vmatmul.mubr.bf16.gmra.mxu0 %v1495
      %v1639 = vpop.f32.mrf.mxu0
      %v1640 = vadd.f32 %v1399, %v1639
      %v1641 = vpop.f32.mrf.mxu0
      %v1642 = vpop.f32.mrf.mxu0
      %v1643 = vadd.f32 %v1402, %v1642
      %v1644 = vpop.f32.mrf.mxu0
      %1645 = vmatprep.mubr.bf16.mxu0 0
      %1646 = vmatmul.mubr.bf16.gmra.mxu0 %v1496
      %v1647 = vpop.f32.mrf.mxu0
      %v1648 = vpop.f32.mrf.mxu0
      %v1649 = vpop.f32.mrf.mxu0
      %v1650 = vadd.f32 %v1409, %v1649
      %v1651 = vpop.f32.mrf.mxu0
      %1652 = vmatprep.mubr.bf16.mxu0 0
      %1653 = vmatmul.mubr.bf16.gmra.mxu0 %v1497
      %v1654 = vpop.f32.mrf.mxu0
      %v1655 = vadd.f32 %v1414, %v1654
      %v1656 = vpop.f32.mrf.mxu0
      %v1657 = vpop.f32.mrf.mxu0
      %v1658 = vpop.f32.mrf.mxu0
      %1659 = vmatprep.mubr.bf16.mxu0 0
      %1660 = vmatmul.mubr.bf16.gmra.mxu0 %v1498
      %v1661 = vpop.f32.mrf.mxu0
      %v1662 = vadd.f32 %v1421, %v1661
      %v1663 = vpop.f32.mrf.mxu0
      %v1664 = vpop.f32.mrf.mxu0
      %v1665 = vadd.f32 %v1424, %v1664
      %v1666 = vpop.f32.mrf.mxu0
      %1667 = vmatprep.mubr.bf16.mxu0 0
      %1668 = vmatmul.mubr.bf16.gmra.mxu0 %v1499
      %v1669 = vpop.f32.mrf.mxu0
      %v1670 = vpop.f32.mrf.mxu0
      %v1671 = vpop.f32.mrf.mxu0
      %v1672 = vadd.f32 %v1431, %v1671
      %v1673 = vpop.f32.mrf.mxu0
      %1674 = vmatprep.mubr.bf16.mxu0 0
      %1675 = vmatmul.mubr.bf16.gmra.mxu0 %v1500
      %v1676 = vpop.f32.mrf.mxu0
      %v1677 = vadd.f32 %v1436, %v1676
      %v1678 = vpop.f32.mrf.mxu0
      %v1679 = vpop.f32.mrf.mxu0
      %v1680 = vpop.f32.mrf.mxu0
      %1681 = vdwg.mxu0
      %s1682 = scalar_lea.vmem %s4, 384
      %v1683 = vld [vmem:[%s1682] sm:$0xf]
      %v1684 = vld [vmem:[%s1682 + $0x4] sm:$0xf]
      %v1685 = vld [vmem:[%s1682 + $0x8] sm:$0xf]
      %v1686 = vld [vmem:[%s1682 + $0xc] sm:$0xf]
      %v1687 = vld [vmem:[%s1682 + $0x10] sm:$0xf]
      %v1688 = vld [vmem:[%s1682 + $0x14] sm:$0xf]
      %v1689 = vld [vmem:[%s1682 + $0x18] sm:$0xf]
      %v1690 = vld [vmem:[%s1682 + $0x1c] sm:$0xf]
      %v1691 = vld [vmem:[%s1682 + $0x20] sm:$0xf]
      %v1692 = vld [vmem:[%s1682 + $0x24] sm:$0xf]
      %v1693 = vld [vmem:[%s1682 + $0x28] sm:$0xf]
      %v1694 = vld [vmem:[%s1682 + $0x2c] sm:$0xf]
      %v1695 = vld [vmem:[%s1682 + $0x30] sm:$0xf]
      %v1696 = vld [vmem:[%s1682 + $0x34] sm:$0xf]
      %v1697 = vld [vmem:[%s1682 + $0x38] sm:$0xf]
      %v1698 = vld [vmem:[%s1682 + $0x3c] sm:$0xf]
      %v1723 = vunpack.c.l.b16 %v1143
      %v1724 = vunpack.c.l.b16 %v1144
      %v1725 = vunpack.c.l.b16 %v1145
      %v1726 = vunpack.c.l.b16 %v1146
      %v1727 = vunpack.c.l.b16 %v1147
      %v1728 = vunpack.c.l.b16 %v1148
      %v1729 = vunpack.c.l.b16 %v1149
      %v1730 = vunpack.c.l.b16 %v1150
      %v1731 = vunpack.c.l.b16 %v1151
      %v1732 = vunpack.c.l.b16 %v1152
      %v1733 = vunpack.c.l.b16 %v1153
      %v1734 = vunpack.c.l.b16 %v1154
      %v1735 = vunpack.c.l.b16 %v1155
      %v1736 = vunpack.c.l.b16 %v1156
      %v1737 = vunpack.c.l.b16 %v1157
      %v1738 = vunpack.c.l.b16 %v1158
      %v1739 = vunpack.c.l.b16 %v1159
      %v1740 = vunpack.c.l.b16 %v1160
      %v1741 = vunpack.c.l.b16 %v1161
      %v1742 = vunpack.c.l.b16 %v1162
      %v1743 = vunpack.c.l.b16 %v1163
      %v1744 = vunpack.c.l.b16 %v1164
      %v1745 = vunpack.c.l.b16 %v1165
      %v1746 = vunpack.c.l.b16 %v1166
      %v1747 = vpack.c.b16 %v1724, %v1723
      %v1748 = vpack.c.b16 %v1726, %v1725
      %v1749 = vpack.c.b16 %v1728, %v1727
      %v1750 = vpack.c.b16 %v1730, %v1729
      %v1751 = vpack.c.b16 %v1732, %v1731
      %v1752 = vpack.c.b16 %v1734, %v1733
      %v1753 = vpack.c.b16 %v1736, %v1735
      %v1754 = vpack.c.b16 %v1738, %v1737
      %v1755 = vpack.c.b16 %v1740, %v1739
      %v1756 = vpack.c.b16 %v1742, %v1741
      %v1757 = vpack.c.b16 %v1744, %v1743
      %v1758 = vpack.c.b16 %v1746, %v1745
      %v1787 = vunpack.c.l.b16 %v1683
      %v1788 = vunpack.c.l.b16 %v1684
      %v1789 = vunpack.c.l.b16 %v1685
      %v1790 = vunpack.c.l.b16 %v1686
      %v1791 = vunpack.c.l.b16 %v1687
      %v1792 = vunpack.c.l.b16 %v1688
      %v1793 = vunpack.c.l.b16 %v1689
      %v1794 = vunpack.c.l.b16 %v1690
      %v1795 = vunpack.c.l.b16 %v1691
      %v1796 = vunpack.c.l.b16 %v1692
      %v1797 = vunpack.c.l.b16 %v1693
      %v1798 = vunpack.c.l.b16 %v1694
      %v1799 = vunpack.c.l.b16 %v1695
      %v1800 = vunpack.c.l.b16 %v1696
      %v1801 = vunpack.c.l.b16 %v1697
      %v1802 = vunpack.c.l.b16 %v1698
      %v1803 = vpack.c.b16 %v1788, %v1787
      %v1804 = vpack.c.b16 %v1790, %v1789
      %v1805 = vpack.c.b16 %v1792, %v1791
      %v1806 = vpack.c.b16 %v1794, %v1793
      %v1807 = vpack.c.b16 %v1796, %v1795
      %v1808 = vpack.c.b16 %v1798, %v1797
      %v1809 = vpack.c.b16 %v1800, %v1799
      %v1810 = vpack.c.b16 %v1802, %v1801
      %1819 = vmatprep.subr.bf16.mxu0 0
      %1820 = vmatpush1.bf16.msra.mxu0 %v1810
      %1821 = vmatprep.subr.bf16.mxu0 0
      %1822 = vmatpush1.bf16.msra.mxu0 %v1809
      %1823 = vmatprep.subr.bf16.mxu0 0
      %1824 = vmatpush1.bf16.msra.mxu0 %v1808
      %1825 = vmatprep.subr.bf16.mxu0 0
      %1826 = vmatpush1.bf16.msra.mxu0 %v1807
      %1827 = vmatprep.subr.bf16.mxu0 0
      %1828 = vmatpush1.bf16.msra.mxu0 %v1806
      %1829 = vmatprep.subr.bf16.mxu0 0
      %1830 = vmatpush1.bf16.msra.mxu0 %v1805
      %1831 = vmatprep.subr.bf16.mxu0 0
      %1832 = vmatpush1.bf16.msra.mxu0 %v1804
      %1833 = vmatprep.subr.bf16.mxu0 0
      %1834 = vmatpush1.bf16.msra.mxu0 %v1803
      %1835 = vmatprep.subr.bf16.mxu0 0
      %1836 = vmatpush2.bf16.msra.mxu0 0
      %1837 = vmatprep.subr.bf16.mxu0 0
      %1838 = vmatpush2.bf16.msra.mxu0 0
      %1839 = vmatprep.subr.bf16.mxu0 0
      %1840 = vmatpush2.bf16.msra.mxu0 0
      %1841 = vmatprep.subr.bf16.mxu0 0
      %1842 = vmatpush2.bf16.msra.mxu0 0
      %1843 = vmatprep.subr.bf16.mxu0 0
      %1844 = vmatpush2.bf16.msra.mxu0 0
      %1845 = vmatprep.subr.bf16.mxu0 0
      %1846 = vmatpush2.bf16.msra.mxu0 0
      %1847 = vmatprep.subr.bf16.mxu0 0
      %1848 = vmatpush2.bf16.msra.mxu0 0
      %1849 = vmatprep.subr.bf16.mxu0 0
      %1850 = vmatpush2.bf16.msra.mxu0 0
      %1851 = vmatprep.mubr.bf16.mxu0 0
      %1852 = vmatmul.mubr.bf16.gmra.mxu0 %v1747
      %v1853 = vpop.f32.mrf.mxu0
      %v1854 = vadd.f32 0.0, %v1853
      %v1855 = vpop.f32.mrf.mxu0
      %v1856 = vpop.f32.mrf.mxu0
      %v1857 = vadd.f32 0.0, %v1856
      %v1858 = vpop.f32.mrf.mxu0
      %1859 = vmatprep.mubr.bf16.mxu0 0
      %1860 = vmatmul.mubr.bf16.gmra.mxu0 %v1748
      %v1861 = vpop.f32.mrf.mxu0
      %v1862 = vpop.f32.mrf.mxu0
      %v1863 = vpop.f32.mrf.mxu0
      %v1864 = vadd.f32 0.0, %v1863
      %v1865 = vpop.f32.mrf.mxu0
      %1866 = vmatprep.mubr.bf16.mxu0 0
      %1867 = vmatmul.mubr.bf16.gmra.mxu0 %v1749
      %v1868 = vpop.f32.mrf.mxu0
      %v1869 = vadd.f32 0.0, %v1868
      %v1870 = vpop.f32.mrf.mxu0
      %v1871 = vpop.f32.mrf.mxu0
      %v1872 = vpop.f32.mrf.mxu0
      %1873 = vmatprep.mubr.bf16.mxu0 0
      %1874 = vmatmul.mubr.bf16.gmra.mxu0 %v1750
      %v1875 = vpop.f32.mrf.mxu0
      %v1876 = vadd.f32 0.0, %v1875
      %v1877 = vpop.f32.mrf.mxu0
      %v1878 = vpop.f32.mrf.mxu0
      %v1879 = vadd.f32 0.0, %v1878
      %v1880 = vpop.f32.mrf.mxu0
      %1881 = vmatprep.mubr.bf16.mxu0 0
      %1882 = vmatmul.mubr.bf16.gmra.mxu0 %v1751
      %v1883 = vpop.f32.mrf.mxu0
      %v1884 = vpop.f32.mrf.mxu0
      %v1885 = vpop.f32.mrf.mxu0
      %v1886 = vadd.f32 0.0, %v1885
      %v1887 = vpop.f32.mrf.mxu0
      %1888 = vmatprep.mubr.bf16.mxu0 0
      %1889 = vmatmul.mubr.bf16.gmra.mxu0 %v1752
      %v1890 = vpop.f32.mrf.mxu0
      %v1891 = vadd.f32 0.0, %v1890
      %v1892 = vpop.f32.mrf.mxu0
      %v1893 = vpop.f32.mrf.mxu0
      %v1894 = vpop.f32.mrf.mxu0
      %1895 = vmatprep.mubr.bf16.mxu0 0
      %1896 = vmatmul.mubr.bf16.gmra.mxu0 %v1753
      %v1897 = vpop.f32.mrf.mxu0
      %v1898 = vadd.f32 0.0, %v1897
      %v1899 = vpop.f32.mrf.mxu0
      %v1900 = vpop.f32.mrf.mxu0
      %v1901 = vadd.f32 0.0, %v1900
      %v1902 = vpop.f32.mrf.mxu0
      %1903 = vmatprep.mubr.bf16.mxu0 0
      %1904 = vmatmul.mubr.bf16.gmra.mxu0 %v1754
      %v1905 = vpop.f32.mrf.mxu0
      %v1906 = vpop.f32.mrf.mxu0
      %v1907 = vpop.f32.mrf.mxu0
      %v1908 = vadd.f32 0.0, %v1907
      %v1909 = vpop.f32.mrf.mxu0
      %1910 = vmatprep.mubr.bf16.mxu0 0
      %1911 = vmatmul.mubr.bf16.gmra.mxu0 %v1755
      %v1912 = vpop.f32.mrf.mxu0
      %v1913 = vadd.f32 0.0, %v1912
      %v1914 = vpop.f32.mrf.mxu0
      %v1915 = vpop.f32.mrf.mxu0
      %v1916 = vpop.f32.mrf.mxu0
      %1917 = vmatprep.mubr.bf16.mxu0 0
      %1918 = vmatmul.mubr.bf16.gmra.mxu0 %v1756
      %v1919 = vpop.f32.mrf.mxu0
      %v1920 = vadd.f32 0.0, %v1919
      %v1921 = vpop.f32.mrf.mxu0
      %v1922 = vpop.f32.mrf.mxu0
      %v1923 = vadd.f32 0.0, %v1922
      %v1924 = vpop.f32.mrf.mxu0
      %1925 = vmatprep.mubr.bf16.mxu0 0
      %1926 = vmatmul.mubr.bf16.gmra.mxu0 %v1757
      %v1927 = vpop.f32.mrf.mxu0
      %v1928 = vpop.f32.mrf.mxu0
      %v1929 = vpop.f32.mrf.mxu0
      %v1930 = vadd.f32 0.0, %v1929
      %v1931 = vpop.f32.mrf.mxu0
      %1932 = vmatprep.mubr.bf16.mxu0 0
      %1933 = vmatmul.mubr.bf16.gmra.mxu0 %v1758
      %v1934 = vpop.f32.mrf.mxu0
      %v1935 = vadd.f32 0.0, %v1934
      %v1936 = vpop.f32.mrf.mxu0
      %v1937 = vpop.f32.mrf.mxu0
      %v1938 = vpop.f32.mrf.mxu0
      %1939 = vdwg.mxu0
      %v1940 = vadd.f32 %v1596, %v1854
      %v1941 = vadd.f32 %v1599, %v1857
      %v1942 = vadd.f32 %v1606, %v1864
      %v1943 = vadd.f32 %v1611, %v1869
      %v1944 = vadd.f32 %v1618, %v1876
      %v1945 = vadd.f32 %v1621, %v1879
      %v1946 = vadd.f32 %v1628, %v1886
      %v1947 = vadd.f32 %v1633, %v1891
      %v1948 = vadd.f32 %v1640, %v1898
      %v1949 = vadd.f32 %v1643, %v1901
      %v1950 = vadd.f32 %v1650, %v1908
      %v1951 = vadd.f32 %v1655, %v1913
      %v1952 = vadd.f32 %v1662, %v1920
      %v1953 = vadd.f32 %v1665, %v1923
      %v1954 = vadd.f32 %v1672, %v1930
      %v1955 = vadd.f32 %v1677, %v1935
      %s1956 = scalar_lea.vmem %s4, 64
      %v1957 = vld [vmem:[%s1956] sm:$0xf]
      %v1958 = vld [vmem:[%s1956 + $0x4] sm:$0xf]
      %v1959 = vld [vmem:[%s1956 + $0x8] sm:$0xf]
      %v1960 = vld [vmem:[%s1956 + $0xc] sm:$0xf]
      %v1961 = vld [vmem:[%s1956 + $0x10] sm:$0xf]
      %v1962 = vld [vmem:[%s1956 + $0x14] sm:$0xf]
      %v1963 = vld [vmem:[%s1956 + $0x18] sm:$0xf]
      %v1964 = vld [vmem:[%s1956 + $0x1c] sm:$0xf]
      %v1965 = vld [vmem:[%s1956 + $0x20] sm:$0xf]
      %v1966 = vld [vmem:[%s1956 + $0x24] sm:$0xf]
      %v1967 = vld [vmem:[%s1956 + $0x28] sm:$0xf]
      %v1968 = vld [vmem:[%s1956 + $0x2c] sm:$0xf]
      %v1969 = vld [vmem:[%s1956 + $0x30] sm:$0xf]
      %v1970 = vld [vmem:[%s1956 + $0x34] sm:$0xf]
      %v1971 = vld [vmem:[%s1956 + $0x38] sm:$0xf]
      %v1972 = vld [vmem:[%s1956 + $0x3c] sm:$0xf]
      %s1973 = scalar_lea.vmem %s4, 256
      %v1974 = vld [vmem:[%s1973] sm:$0xf]
      %v1975 = vld [vmem:[%s1973 + $0x4] sm:$0xf]
      %v1976 = vld [vmem:[%s1973 + $0x8] sm:$0xf]
      %v1977 = vld [vmem:[%s1973 + $0xc] sm:$0xf]
      %v1978 = vld [vmem:[%s1973 + $0x10] sm:$0xf]
      %v1979 = vld [vmem:[%s1973 + $0x14] sm:$0xf]
      %v1980 = vld [vmem:[%s1973 + $0x18] sm:$0xf]
      %v1981 = vld [vmem:[%s1973 + $0x1c] sm:$0xf]
      %v1982 = vld [vmem:[%s1973 + $0x20] sm:$0xf]
      %v1983 = vld [vmem:[%s1973 + $0x24] sm:$0xf]
      %v1984 = vld [vmem:[%s1973 + $0x28] sm:$0xf]
      %v1985 = vld [vmem:[%s1973 + $0x2c] sm:$0xf]
      %v1986 = vld [vmem:[%s1973 + $0x30] sm:$0xf]
      %v1987 = vld [vmem:[%s1973 + $0x34] sm:$0xf]
      %v1988 = vld [vmem:[%s1973 + $0x38] sm:$0xf]
      %v1989 = vld [vmem:[%s1973 + $0x3c] sm:$0xf]
      %v2006 = vunpack.c.l.b16 %v1974
      %v2007 = vunpack.c.l.b16 %v1975
      %v2008 = vunpack.c.l.b16 %v1976
      %v2009 = vunpack.c.l.b16 %v1977
      %v2010 = vunpack.c.l.b16 %v1978
      %v2011 = vunpack.c.l.b16 %v1979
      %v2012 = vunpack.c.l.b16 %v1980
      %v2013 = vunpack.c.l.b16 %v1981
      %v2014 = vunpack.c.l.b16 %v1982
      %v2015 = vunpack.c.l.b16 %v1983
      %v2016 = vunpack.c.l.b16 %v1984
      %v2017 = vunpack.c.l.b16 %v1985
      %v2018 = vunpack.c.l.b16 %v1986
      %v2019 = vunpack.c.l.b16 %v1987
      %v2020 = vunpack.c.l.b16 %v1988
      %v2021 = vunpack.c.l.b16 %v1989
      %v2022 = vpack.c.b16 %v2007, %v2006
      %v2023 = vpack.c.b16 %v2009, %v2008
      %v2024 = vpack.c.b16 %v2011, %v2010
      %v2025 = vpack.c.b16 %v2013, %v2012
      %v2026 = vpack.c.b16 %v2015, %v2014
      %v2027 = vpack.c.b16 %v2017, %v2016
      %v2028 = vpack.c.b16 %v2019, %v2018
      %v2029 = vpack.c.b16 %v2021, %v2020
      %2038 = vmatprep.subr.bf16.mxu0 0
      %2039 = vmatpush1.bf16.msra.mxu0 %v2029
      %2040 = vmatprep.subr.bf16.mxu0 0
      %2041 = vmatpush1.bf16.msra.mxu0 %v2028
      %2042 = vmatprep.subr.bf16.mxu0 0
      %2043 = vmatpush1.bf16.msra.mxu0 %v2027
      %2044 = vmatprep.subr.bf16.mxu0 0
      %2045 = vmatpush1.bf16.msra.mxu0 %v2026
      %2046 = vmatprep.subr.bf16.mxu0 0
      %2047 = vmatpush1.bf16.msra.mxu0 %v2025
      %2048 = vmatprep.subr.bf16.mxu0 0
      %2049 = vmatpush1.bf16.msra.mxu0 %v2024
      %2050 = vmatprep.subr.bf16.mxu0 0
      %2051 = vmatpush1.bf16.msra.mxu0 %v2023
      %2052 = vmatprep.subr.bf16.mxu0 0
      %2053 = vmatpush1.bf16.msra.mxu0 %v2022
      %2054 = vmatprep.subr.bf16.mxu0 0
      %2055 = vmatpush2.bf16.msra.mxu0 0
      %2056 = vmatprep.subr.bf16.mxu0 0
      %2057 = vmatpush2.bf16.msra.mxu0 0
      %2058 = vmatprep.subr.bf16.mxu0 0
      %2059 = vmatpush2.bf16.msra.mxu0 0
      %2060 = vmatprep.subr.bf16.mxu0 0
      %2061 = vmatpush2.bf16.msra.mxu0 0
      %2062 = vmatprep.subr.bf16.mxu0 0
      %2063 = vmatpush2.bf16.msra.mxu0 0
      %2064 = vmatprep.subr.bf16.mxu0 0
      %2065 = vmatpush2.bf16.msra.mxu0 0
      %2066 = vmatprep.subr.bf16.mxu0 0
      %2067 = vmatpush2.bf16.msra.mxu0 0
      %2068 = vmatprep.subr.bf16.mxu0 0
      %2069 = vmatpush2.bf16.msra.mxu0 0
      %2070 = vmatprep.mubr.bf16.mxu0 0
      %2071 = vmatmul.mubr.bf16.gmra.mxu0 %v1248
      %v2072 = vpop.f32.mrf.mxu0
      %v2073 = vadd.f32 0.0, %v2072
      %v2074 = vpop.f32.mrf.mxu0
      %v2075 = vpop.f32.mrf.mxu0
      %v2076 = vadd.f32 0.0, %v2075
      %v2077 = vpop.f32.mrf.mxu0
      %2078 = vmatprep.mubr.bf16.mxu0 0
      %2079 = vmatmul.mubr.bf16.gmra.mxu0 %v1249
      %v2080 = vpop.f32.mrf.mxu0
      %v2081 = vadd.f32 0.0, %v2080
      %v2082 = vpop.f32.mrf.mxu0
      %v2083 = vpop.f32.mrf.mxu0
      %v2084 = vadd.f32 0.0, %v2083
      %v2085 = vpop.f32.mrf.mxu0
      %2086 = vmatprep.mubr.bf16.mxu0 0
      %2087 = vmatmul.mubr.bf16.gmra.mxu0 %v1250
      %v2088 = vpop.f32.mrf.mxu0
      %v2089 = vadd.f32 0.0, %v2088
      %v2090 = vpop.f32.mrf.mxu0
      %v2091 = vpop.f32.mrf.mxu0
      %v2092 = vadd.f32 0.0, %v2091
      %v2093 = vpop.f32.mrf.mxu0
      %2094 = vmatprep.mubr.bf16.mxu0 0
      %2095 = vmatmul.mubr.bf16.gmra.mxu0 %v1251
      %v2096 = vpop.f32.mrf.mxu0
      %v2097 = vadd.f32 0.0, %v2096
      %v2098 = vpop.f32.mrf.mxu0
      %v2099 = vpop.f32.mrf.mxu0
      %v2100 = vadd.f32 0.0, %v2099
      %v2101 = vpop.f32.mrf.mxu0
      %2102 = vmatprep.mubr.bf16.mxu0 0
      %2103 = vmatmul.mubr.bf16.gmra.mxu0 %v1252
      %v2104 = vpop.f32.mrf.mxu0
      %v2105 = vadd.f32 0.0, %v2104
      %v2106 = vpop.f32.mrf.mxu0
      %v2107 = vpop.f32.mrf.mxu0
      %v2108 = vadd.f32 0.0, %v2107
      %v2109 = vpop.f32.mrf.mxu0
      %2110 = vmatprep.mubr.bf16.mxu0 0
      %2111 = vmatmul.mubr.bf16.gmra.mxu0 %v1253
      %v2112 = vpop.f32.mrf.mxu0
      %v2113 = vadd.f32 0.0, %v2112
      %v2114 = vpop.f32.mrf.mxu0
      %v2115 = vpop.f32.mrf.mxu0
      %v2116 = vadd.f32 0.0, %v2115
      %v2117 = vpop.f32.mrf.mxu0
      %2118 = vmatprep.mubr.bf16.mxu0 0
      %2119 = vmatmul.mubr.bf16.gmra.mxu0 %v1254
      %v2120 = vpop.f32.mrf.mxu0
      %v2121 = vadd.f32 0.0, %v2120
      %v2122 = vpop.f32.mrf.mxu0
      %v2123 = vpop.f32.mrf.mxu0
      %v2124 = vadd.f32 0.0, %v2123
      %v2125 = vpop.f32.mrf.mxu0
      %2126 = vmatprep.mubr.bf16.mxu0 0
      %2127 = vmatmul.mubr.bf16.gmra.mxu0 %v1255
      %v2128 = vpop.f32.mrf.mxu0
      %v2129 = vadd.f32 0.0, %v2128
      %v2130 = vpop.f32.mrf.mxu0
      %v2131 = vpop.f32.mrf.mxu0
      %v2132 = vadd.f32 0.0, %v2131
      %v2133 = vpop.f32.mrf.mxu0
      %2134 = vmatprep.mubr.bf16.mxu0 0
      %2135 = vmatmul.mubr.bf16.gmra.mxu0 %v1256
      %v2136 = vpop.f32.mrf.mxu0
      %v2137 = vadd.f32 0.0, %v2136
      %v2138 = vpop.f32.mrf.mxu0
      %v2139 = vpop.f32.mrf.mxu0
      %v2140 = vadd.f32 0.0, %v2139
      %v2141 = vpop.f32.mrf.mxu0
      %2142 = vmatprep.mubr.bf16.mxu0 0
      %2143 = vmatmul.mubr.bf16.gmra.mxu0 %v1257
      %v2144 = vpop.f32.mrf.mxu0
      %v2145 = vadd.f32 0.0, %v2144
      %v2146 = vpop.f32.mrf.mxu0
      %v2147 = vpop.f32.mrf.mxu0
      %v2148 = vadd.f32 0.0, %v2147
      %v2149 = vpop.f32.mrf.mxu0
      %2150 = vmatprep.mubr.bf16.mxu0 0
      %2151 = vmatmul.mubr.bf16.gmra.mxu0 %v1258
      %v2152 = vpop.f32.mrf.mxu0
      %v2153 = vadd.f32 0.0, %v2152
      %v2154 = vpop.f32.mrf.mxu0
      %v2155 = vpop.f32.mrf.mxu0
      %v2156 = vadd.f32 0.0, %v2155
      %v2157 = vpop.f32.mrf.mxu0
      %2158 = vmatprep.mubr.bf16.mxu0 0
      %2159 = vmatmul.mubr.bf16.gmra.mxu0 %v1259
      %v2160 = vpop.f32.mrf.mxu0
      %v2161 = vadd.f32 0.0, %v2160
      %v2162 = vpop.f32.mrf.mxu0
      %v2163 = vpop.f32.mrf.mxu0
      %v2164 = vadd.f32 0.0, %v2163
      %v2165 = vpop.f32.mrf.mxu0
      %2166 = vdwg.mxu0
      %v2183 = vunpack.c.l.b16 %v1957
      %v2184 = vunpack.c.l.b16 %v1958
      %v2185 = vunpack.c.l.b16 %v1959
      %v2186 = vunpack.c.l.b16 %v1960
      %v2187 = vunpack.c.l.b16 %v1961
      %v2188 = vunpack.c.l.b16 %v1962
      %v2189 = vunpack.c.l.b16 %v1963
      %v2190 = vunpack.c.l.b16 %v1964
      %v2191 = vunpack.c.l.b16 %v1965
      %v2192 = vunpack.c.l.b16 %v1966
      %v2193 = vunpack.c.l.b16 %v1967
      %v2194 = vunpack.c.l.b16 %v1968
      %v2195 = vunpack.c.l.b16 %v1969
      %v2196 = vunpack.c.l.b16 %v1970
      %v2197 = vunpack.c.l.b16 %v1971
      %v2198 = vunpack.c.l.b16 %v1972
      %v2199 = vpack.c.b16 %v2184, %v2183
      %v2200 = vpack.c.b16 %v2186, %v2185
      %v2201 = vpack.c.b16 %v2188, %v2187
      %v2202 = vpack.c.b16 %v2190, %v2189
      %v2203 = vpack.c.b16 %v2192, %v2191
      %v2204 = vpack.c.b16 %v2194, %v2193
      %v2205 = vpack.c.b16 %v2196, %v2195
      %v2206 = vpack.c.b16 %v2198, %v2197
      %2215 = vmatprep.subr.bf16.mxu0 0
      %2216 = vmatpush1.bf16.msra.mxu0 %v2206
      %2217 = vmatprep.subr.bf16.mxu0 0
      %2218 = vmatpush1.bf16.msra.mxu0 %v2205
      %2219 = vmatprep.subr.bf16.mxu0 0
      %2220 = vmatpush1.bf16.msra.mxu0 %v2204
      %2221 = vmatprep.subr.bf16.mxu0 0
      %2222 = vmatpush1.bf16.msra.mxu0 %v2203
      %2223 = vmatprep.subr.bf16.mxu0 0
      %2224 = vmatpush1.bf16.msra.mxu0 %v2202
      %2225 = vmatprep.subr.bf16.mxu0 0
      %2226 = vmatpush1.bf16.msra.mxu0 %v2201
      %2227 = vmatprep.subr.bf16.mxu0 0
      %2228 = vmatpush1.bf16.msra.mxu0 %v2200
      %2229 = vmatprep.subr.bf16.mxu0 0
      %2230 = vmatpush1.bf16.msra.mxu0 %v2199
      %2231 = vmatprep.subr.bf16.mxu0 0
      %2232 = vmatpush2.bf16.msra.mxu0 0
      %2233 = vmatprep.subr.bf16.mxu0 0
      %2234 = vmatpush2.bf16.msra.mxu0 0
      %2235 = vmatprep.subr.bf16.mxu0 0
      %2236 = vmatpush2.bf16.msra.mxu0 0
      %2237 = vmatprep.subr.bf16.mxu0 0
      %2238 = vmatpush2.bf16.msra.mxu0 0
      %2239 = vmatprep.subr.bf16.mxu0 0
      %2240 = vmatpush2.bf16.msra.mxu0 0
      %2241 = vmatprep.subr.bf16.mxu0 0
      %2242 = vmatpush2.bf16.msra.mxu0 0
      %2243 = vmatprep.subr.bf16.mxu0 0
      %2244 = vmatpush2.bf16.msra.mxu0 0
      %2245 = vmatprep.subr.bf16.mxu0 0
      %2246 = vmatpush2.bf16.msra.mxu0 0
      %2247 = vmatprep.mubr.bf16.mxu0 0
      %2248 = vmatmul.mubr.bf16.gmra.mxu0 %v1489
      %v2249 = vpop.f32.mrf.mxu0
      %v2250 = vadd.f32 %v2073, %v2249
      %v2251 = vpop.f32.mrf.mxu0
      %v2252 = vpop.f32.mrf.mxu0
      %v2253 = vadd.f32 %v2076, %v2252
      %v2254 = vpop.f32.mrf.mxu0
      %2255 = vmatprep.mubr.bf16.mxu0 0
      %2256 = vmatmul.mubr.bf16.gmra.mxu0 %v1490
      %v2257 = vpop.f32.mrf.mxu0
      %v2258 = vadd.f32 %v2081, %v2257
      %v2259 = vpop.f32.mrf.mxu0
      %v2260 = vpop.f32.mrf.mxu0
      %v2261 = vadd.f32 %v2084, %v2260
      %v2262 = vpop.f32.mrf.mxu0
      %2263 = vmatprep.mubr.bf16.mxu0 0
      %2264 = vmatmul.mubr.bf16.gmra.mxu0 %v1491
      %v2265 = vpop.f32.mrf.mxu0
      %v2266 = vadd.f32 %v2089, %v2265
      %v2267 = vpop.f32.mrf.mxu0
      %v2268 = vpop.f32.mrf.mxu0
      %v2269 = vadd.f32 %v2092, %v2268
      %v2270 = vpop.f32.mrf.mxu0
      %2271 = vmatprep.mubr.bf16.mxu0 0
      %2272 = vmatmul.mubr.bf16.gmra.mxu0 %v1492
      %v2273 = vpop.f32.mrf.mxu0
      %v2274 = vadd.f32 %v2097, %v2273
      %v2275 = vpop.f32.mrf.mxu0
      %v2276 = vpop.f32.mrf.mxu0
      %v2277 = vadd.f32 %v2100, %v2276
      %v2278 = vpop.f32.mrf.mxu0
      %2279 = vmatprep.mubr.bf16.mxu0 0
      %2280 = vmatmul.mubr.bf16.gmra.mxu0 %v1493
      %v2281 = vpop.f32.mrf.mxu0
      %v2282 = vadd.f32 %v2105, %v2281
      %v2283 = vpop.f32.mrf.mxu0
      %v2284 = vpop.f32.mrf.mxu0
      %v2285 = vadd.f32 %v2108, %v2284
      %v2286 = vpop.f32.mrf.mxu0
      %2287 = vmatprep.mubr.bf16.mxu0 0
      %2288 = vmatmul.mubr.bf16.gmra.mxu0 %v1494
      %v2289 = vpop.f32.mrf.mxu0
      %v2290 = vadd.f32 %v2113, %v2289
      %v2291 = vpop.f32.mrf.mxu0
      %v2292 = vpop.f32.mrf.mxu0
      %v2293 = vadd.f32 %v2116, %v2292
      %v2294 = vpop.f32.mrf.mxu0
      %2295 = vmatprep.mubr.bf16.mxu0 0
      %2296 = vmatmul.mubr.bf16.gmra.mxu0 %v1495
      %v2297 = vpop.f32.mrf.mxu0
      %v2298 = vadd.f32 %v2121, %v2297
      %v2299 = vpop.f32.mrf.mxu0
      %v2300 = vpop.f32.mrf.mxu0
      %v2301 = vadd.f32 %v2124, %v2300
      %v2302 = vpop.f32.mrf.mxu0
      %2303 = vmatprep.mubr.bf16.mxu0 0
      %2304 = vmatmul.mubr.bf16.gmra.mxu0 %v1496
      %v2305 = vpop.f32.mrf.mxu0
      %v2306 = vadd.f32 %v2129, %v2305
      %v2307 = vpop.f32.mrf.mxu0
      %v2308 = vpop.f32.mrf.mxu0
      %v2309 = vadd.f32 %v2132, %v2308
      %v2310 = vpop.f32.mrf.mxu0
      %2311 = vmatprep.mubr.bf16.mxu0 0
      %2312 = vmatmul.mubr.bf16.gmra.mxu0 %v1497
      %v2313 = vpop.f32.mrf.mxu0
      %v2314 = vadd.f32 %v2137, %v2313
      %v2315 = vpop.f32.mrf.mxu0
      %v2316 = vpop.f32.mrf.mxu0
      %v2317 = vadd.f32 %v2140, %v2316
      %v2318 = vpop.f32.mrf.mxu0
      %2319 = vmatprep.mubr.bf16.mxu0 0
      %2320 = vmatmul.mubr.bf16.gmra.mxu0 %v1498
      %v2321 = vpop.f32.mrf.mxu0
      %v2322 = vadd.f32 %v2145, %v2321
      %v2323 = vpop.f32.mrf.mxu0
      %v2324 = vpop.f32.mrf.mxu0
      %v2325 = vadd.f32 %v2148, %v2324
      %v2326 = vpop.f32.mrf.mxu0
      %2327 = vmatprep.mubr.bf16.mxu0 0
      %2328 = vmatmul.mubr.bf16.gmra.mxu0 %v1499
      %v2329 = vpop.f32.mrf.mxu0
      %v2330 = vadd.f32 %v2153, %v2329
      %v2331 = vpop.f32.mrf.mxu0
      %v2332 = vpop.f32.mrf.mxu0
      %v2333 = vadd.f32 %v2156, %v2332
      %v2334 = vpop.f32.mrf.mxu0
      %2335 = vmatprep.mubr.bf16.mxu0 0
      %2336 = vmatmul.mubr.bf16.gmra.mxu0 %v1500
      %v2337 = vpop.f32.mrf.mxu0
      %v2338 = vadd.f32 %v2161, %v2337
      %v2339 = vpop.f32.mrf.mxu0
      %v2340 = vpop.f32.mrf.mxu0
      %v2341 = vadd.f32 %v2164, %v2340
      %v2342 = vpop.f32.mrf.mxu0
      %2343 = vdwg.mxu0
      %s2344 = scalar_lea.vmem %s4, 448
      %v2345 = vld [vmem:[%s2344] sm:$0xf]
      %v2346 = vld [vmem:[%s2344 + $0x4] sm:$0xf]
      %v2347 = vld [vmem:[%s2344 + $0x8] sm:$0xf]
      %v2348 = vld [vmem:[%s2344 + $0xc] sm:$0xf]
      %v2349 = vld [vmem:[%s2344 + $0x10] sm:$0xf]
      %v2350 = vld [vmem:[%s2344 + $0x14] sm:$0xf]
      %v2351 = vld [vmem:[%s2344 + $0x18] sm:$0xf]
      %v2352 = vld [vmem:[%s2344 + $0x1c] sm:$0xf]
      %v2353 = vld [vmem:[%s2344 + $0x20] sm:$0xf]
      %v2354 = vld [vmem:[%s2344 + $0x24] sm:$0xf]
      %v2355 = vld [vmem:[%s2344 + $0x28] sm:$0xf]
      %v2356 = vld [vmem:[%s2344 + $0x2c] sm:$0xf]
      %v2357 = vld [vmem:[%s2344 + $0x30] sm:$0xf]
      %v2358 = vld [vmem:[%s2344 + $0x34] sm:$0xf]
      %v2359 = vld [vmem:[%s2344 + $0x38] sm:$0xf]
      %v2360 = vld [vmem:[%s2344 + $0x3c] sm:$0xf]
      %v2377 = vunpack.c.l.b16 %v2345
      %v2378 = vunpack.c.l.b16 %v2346
      %v2379 = vunpack.c.l.b16 %v2347
      %v2380 = vunpack.c.l.b16 %v2348
      %v2381 = vunpack.c.l.b16 %v2349
      %v2382 = vunpack.c.l.b16 %v2350
      %v2383 = vunpack.c.l.b16 %v2351
      %v2384 = vunpack.c.l.b16 %v2352
      %v2385 = vunpack.c.l.b16 %v2353
      %v2386 = vunpack.c.l.b16 %v2354
      %v2387 = vunpack.c.l.b16 %v2355
      %v2388 = vunpack.c.l.b16 %v2356
      %v2389 = vunpack.c.l.b16 %v2357
      %v2390 = vunpack.c.l.b16 %v2358
      %v2391 = vunpack.c.l.b16 %v2359
      %v2392 = vunpack.c.l.b16 %v2360
      %v2393 = vpack.c.b16 %v2378, %v2377
      %v2394 = vpack.c.b16 %v2380, %v2379
      %v2395 = vpack.c.b16 %v2382, %v2381
      %v2396 = vpack.c.b16 %v2384, %v2383
      %v2397 = vpack.c.b16 %v2386, %v2385
      %v2398 = vpack.c.b16 %v2388, %v2387
      %v2399 = vpack.c.b16 %v2390, %v2389
      %v2400 = vpack.c.b16 %v2392, %v2391
      %2409 = vmatprep.subr.bf16.mxu0 0
      %2410 = vmatpush1.bf16.msra.mxu0 %v2400
      %2411 = vmatprep.subr.bf16.mxu0 0
      %2412 = vmatpush1.bf16.msra.mxu0 %v2399
      %2413 = vmatprep.subr.bf16.mxu0 0
      %2414 = vmatpush1.bf16.msra.mxu0 %v2398
      %2415 = vmatprep.subr.bf16.mxu0 0
      %2416 = vmatpush1.bf16.msra.mxu0 %v2397
      %2417 = vmatprep.subr.bf16.mxu0 0
      %2418 = vmatpush1.bf16.msra.mxu0 %v2396
      %2419 = vmatprep.subr.bf16.mxu0 0
      %2420 = vmatpush1.bf16.msra.mxu0 %v2395
      %2421 = vmatprep.subr.bf16.mxu0 0
      %2422 = vmatpush1.bf16.msra.mxu0 %v2394
      %2423 = vmatprep.subr.bf16.mxu0 0
      %2424 = vmatpush1.bf16.msra.mxu0 %v2393
      %2425 = vmatprep.subr.bf16.mxu0 0
      %2426 = vmatpush2.bf16.msra.mxu0 0
      %2427 = vmatprep.subr.bf16.mxu0 0
      %2428 = vmatpush2.bf16.msra.mxu0 0
      %2429 = vmatprep.subr.bf16.mxu0 0
      %2430 = vmatpush2.bf16.msra.mxu0 0
      %2431 = vmatprep.subr.bf16.mxu0 0
      %2432 = vmatpush2.bf16.msra.mxu0 0
      %2433 = vmatprep.subr.bf16.mxu0 0
      %2434 = vmatpush2.bf16.msra.mxu0 0
      %2435 = vmatprep.subr.bf16.mxu0 0
      %2436 = vmatpush2.bf16.msra.mxu0 0
      %2437 = vmatprep.subr.bf16.mxu0 0
      %2438 = vmatpush2.bf16.msra.mxu0 0
      %2439 = vmatprep.subr.bf16.mxu0 0
      %2440 = vmatpush2.bf16.msra.mxu0 0
      %2441 = vmatprep.mubr.bf16.mxu0 0
      %2442 = vmatmul.mubr.bf16.gmra.mxu0 %v1747
      %v2443 = vpop.f32.mrf.mxu0
      %v2444 = vadd.f32 0.0, %v2443
      %v2445 = vpop.f32.mrf.mxu0
      %v2446 = vpop.f32.mrf.mxu0
      %v2447 = vadd.f32 0.0, %v2446
      %v2448 = vpop.f32.mrf.mxu0
      %2449 = vmatprep.mubr.bf16.mxu0 0
      %2450 = vmatmul.mubr.bf16.gmra.mxu0 %v1748
      %v2451 = vpop.f32.mrf.mxu0
      %v2452 = vadd.f32 0.0, %v2451
      %v2453 = vpop.f32.mrf.mxu0
      %v2454 = vpop.f32.mrf.mxu0
      %v2455 = vadd.f32 0.0, %v2454
      %v2456 = vpop.f32.mrf.mxu0
      %2457 = vmatprep.mubr.bf16.mxu0 0
      %2458 = vmatmul.mubr.bf16.gmra.mxu0 %v1749
      %v2459 = vpop.f32.mrf.mxu0
      %v2460 = vadd.f32 0.0, %v2459
      %v2461 = vpop.f32.mrf.mxu0
      %v2462 = vpop.f32.mrf.mxu0
      %v2463 = vadd.f32 0.0, %v2462
      %v2464 = vpop.f32.mrf.mxu0
      %2465 = vmatprep.mubr.bf16.mxu0 0
      %2466 = vmatmul.mubr.bf16.gmra.mxu0 %v1750
      %v2467 = vpop.f32.mrf.mxu0
      %v2468 = vadd.f32 0.0, %v2467
      %v2469 = vpop.f32.mrf.mxu0
      %v2470 = vpop.f32.mrf.mxu0
      %v2471 = vadd.f32 0.0, %v2470
      %v2472 = vpop.f32.mrf.mxu0
      %2473 = vmatprep.mubr.bf16.mxu0 0
      %2474 = vmatmul.mubr.bf16.gmra.mxu0 %v1751
      %v2475 = vpop.f32.mrf.mxu0
      %v2476 = vadd.f32 0.0, %v2475
      %v2477 = vpop.f32.mrf.mxu0
      %v2478 = vpop.f32.mrf.mxu0
      %v2479 = vadd.f32 0.0, %v2478
      %v2480 = vpop.f32.mrf.mxu0
      %2481 = vmatprep.mubr.bf16.mxu0 0
      %2482 = vmatmul.mubr.bf16.gmra.mxu0 %v1752
      %v2483 = vpop.f32.mrf.mxu0
      %v2484 = vadd.f32 0.0, %v2483
      %v2485 = vpop.f32.mrf.mxu0
      %v2486 = vpop.f32.mrf.mxu0
      %v2487 = vadd.f32 0.0, %v2486
      %v2488 = vpop.f32.mrf.mxu0
      %2489 = vmatprep.mubr.bf16.mxu0 0
      %2490 = vmatmul.mubr.bf16.gmra.mxu0 %v1753
      %v2491 = vpop.f32.mrf.mxu0
      %v2492 = vadd.f32 0.0, %v2491
      %v2493 = vpop.f32.mrf.mxu0
      %v2494 = vpop.f32.mrf.mxu0
      %v2495 = vadd.f32 0.0, %v2494
      %v2496 = vpop.f32.mrf.mxu0
      %2497 = vmatprep.mubr.bf16.mxu0 0
      %2498 = vmatmul.mubr.bf16.gmra.mxu0 %v1754
      %v2499 = vpop.f32.mrf.mxu0
      %v2500 = vadd.f32 0.0, %v2499
      %v2501 = vpop.f32.mrf.mxu0
      %v2502 = vpop.f32.mrf.mxu0
      %v2503 = vadd.f32 0.0, %v2502
      %v2504 = vpop.f32.mrf.mxu0
      %2505 = vmatprep.mubr.bf16.mxu0 0
      %2506 = vmatmul.mubr.bf16.gmra.mxu0 %v1755
      %v2507 = vpop.f32.mrf.mxu0
      %v2508 = vadd.f32 0.0, %v2507
      %v2509 = vpop.f32.mrf.mxu0
      %v2510 = vpop.f32.mrf.mxu0
      %v2511 = vadd.f32 0.0, %v2510
      %v2512 = vpop.f32.mrf.mxu0
      %2513 = vmatprep.mubr.bf16.mxu0 0
      %2514 = vmatmul.mubr.bf16.gmra.mxu0 %v1756
      %v2515 = vpop.f32.mrf.mxu0
      %v2516 = vadd.f32 0.0, %v2515
      %v2517 = vpop.f32.mrf.mxu0
      %v2518 = vpop.f32.mrf.mxu0
      %v2519 = vadd.f32 0.0, %v2518
      %v2520 = vpop.f32.mrf.mxu0
      %2521 = vmatprep.mubr.bf16.mxu0 0
      %2522 = vmatmul.mubr.bf16.gmra.mxu0 %v1757
      %v2523 = vpop.f32.mrf.mxu0
      %v2524 = vadd.f32 0.0, %v2523
      %v2525 = vpop.f32.mrf.mxu0
      %v2526 = vpop.f32.mrf.mxu0
      %v2527 = vadd.f32 0.0, %v2526
      %v2528 = vpop.f32.mrf.mxu0
      %2529 = vmatprep.mubr.bf16.mxu0 0
      %2530 = vmatmul.mubr.bf16.gmra.mxu0 %v1758
      %v2531 = vpop.f32.mrf.mxu0
      %v2532 = vadd.f32 0.0, %v2531
      %v2533 = vpop.f32.mrf.mxu0
      %v2534 = vpop.f32.mrf.mxu0
      %v2535 = vadd.f32 0.0, %v2534
      %v2536 = vpop.f32.mrf.mxu0
      %2537 = vdwg.mxu0
      %v2538 = vadd.f32 %v2250, %v2444
      %v2539 = vadd.f32 %v2253, %v2447
      %v2540 = vadd.f32 %v2258, %v2452
      %v2541 = vadd.f32 %v2261, %v2455
      %v2542 = vadd.f32 %v2266, %v2460
      %v2543 = vadd.f32 %v2269, %v2463
      %v2544 = vadd.f32 %v2274, %v2468
      %v2545 = vadd.f32 %v2277, %v2471
      %v2546 = vadd.f32 %v2282, %v2476
      %v2547 = vadd.f32 %v2285, %v2479
      %v2548 = vadd.f32 %v2290, %v2484
      %v2549 = vadd.f32 %v2293, %v2487
      %v2550 = vadd.f32 %v2298, %v2492
      %v2551 = vadd.f32 %v2301, %v2495
      %v2552 = vadd.f32 %v2306, %v2500
      %v2553 = vadd.f32 %v2309, %v2503
      %v2554 = vadd.f32 %v2314, %v2508
      %v2555 = vadd.f32 %v2317, %v2511
      %v2556 = vadd.f32 %v2322, %v2516
      %v2557 = vadd.f32 %v2325, %v2519
      %v2558 = vadd.f32 %v2330, %v2524
      %v2559 = vadd.f32 %v2333, %v2527
      %v2560 = vadd.f32 %v2338, %v2532
      %v2561 = vadd.f32 %v2341, %v2535
      %v2562 = vrot.slane %v2538, 1
      %v2563 = vrot.slane %v2539, 1
      %v2564 = vrot.slane %v2540, 1
      %v2565 = vrot.slane %v2541, 1
      %v2566 = vrot.slane %v2542, 1
      %v2567 = vrot.slane %v2543, 1
      %v2568 = vrot.slane %v2544, 1
      %v2569 = vrot.slane %v2545, 1
      %v2570 = vrot.slane %v2546, 1
      %v2571 = vrot.slane %v2547, 1
      %v2572 = vrot.slane %v2548, 1
      %v2573 = vrot.slane %v2549, 1
      %v2574 = vrot.slane %v2550, 1
      %v2575 = vrot.slane %v2551, 1
      %v2576 = vrot.slane %v2552, 1
      %v2577 = vrot.slane %v2553, 1
      %v2578 = vrot.slane %v2554, 1
      %v2579 = vrot.slane %v2555, 1
      %v2580 = vrot.slane %v2556, 1
      %v2581 = vrot.slane %v2557, 1
      %v2582 = vrot.slane %v2558, 1
      %v2583 = vrot.slane %v2559, 1
      %v2584 = vrot.slane %v2560, 1
      %v2585 = vrot.slane %v2561, 1
      %vm2586 = vcmp.lt.s32.totalorder %v332, 7
      %v2587 = vsel %vm2586, %v2584, %v2585
      %v2588 = vsel %vm2586, %v2583, %v2584
      %v2589 = vsel %vm2586, %v2581, %v2582
      %v2590 = vsel %vm2586, %v2580, %v2581
      %v2591 = vsel %vm2586, %v2578, %v2579
      %v2592 = vsel %vm2586, %v2577, %v2578
      %v2593 = vsel %vm2586, %v2575, %v2576
      %v2594 = vsel %vm2586, %v2574, %v2575
      %v2595 = vsel %vm2586, %v2572, %v2573
      %v2596 = vsel %vm2586, %v2571, %v2572
      %v2597 = vsel %vm2586, %v2569, %v2570
      %v2598 = vsel %vm2586, %v2568, %v2569
      %v2599 = vsel %vm2586, %v2566, %v2567
      %v2600 = vsel %vm2586, %v2565, %v2566
      %v2601 = vsel %vm2586, %v2563, %v2564
      %v2602 = vsel %vm2586, %v2562, %v2563
      %v2603 = vadd.f32 %v1940, %v2602
      %v2604 = vadd.f32 %v1941, %v2601
      %v2605 = vadd.f32 %v1942, %v2600
      %v2606 = vadd.f32 %v1943, %v2599
      %v2607 = vadd.f32 %v1944, %v2598
      %v2608 = vadd.f32 %v1945, %v2597
      %v2609 = vadd.f32 %v1946, %v2596
      %v2610 = vadd.f32 %v1947, %v2595
      %v2611 = vadd.f32 %v1948, %v2594
      %v2612 = vadd.f32 %v1949, %v2593
      %v2613 = vadd.f32 %v1950, %v2592
      %v2614 = vadd.f32 %v1951, %v2591
      %v2615 = vadd.f32 %v1952, %v2590
      %v2616 = vadd.f32 %v1953, %v2589
      %v2617 = vadd.f32 %v1954, %v2588
      %v2618 = vadd.f32 %v1955, %v2587
      %s2619 = scalar_lea.vmem %s4, 128
      %v2620 = vld [vmem:[%s2619] sm:$0xf]
      %v2621 = vld [vmem:[%s2619 + $0x4] sm:$0xf]
      %v2622 = vld [vmem:[%s2619 + $0x8] sm:$0xf]
      %v2623 = vld [vmem:[%s2619 + $0xc] sm:$0xf]
      %v2624 = vld [vmem:[%s2619 + $0x10] sm:$0xf]
      %v2625 = vld [vmem:[%s2619 + $0x14] sm:$0xf]
      %v2626 = vld [vmem:[%s2619 + $0x18] sm:$0xf]
      %v2627 = vld [vmem:[%s2619 + $0x1c] sm:$0xf]
      %v2628 = vld [vmem:[%s2619 + $0x20] sm:$0xf]
      %v2629 = vld [vmem:[%s2619 + $0x24] sm:$0xf]
      %v2630 = vld [vmem:[%s2619 + $0x28] sm:$0xf]
      %v2631 = vld [vmem:[%s2619 + $0x2c] sm:$0xf]
      %v2632 = vld [vmem:[%s2619 + $0x30] sm:$0xf]
      %v2633 = vld [vmem:[%s2619 + $0x34] sm:$0xf]
      %v2634 = vld [vmem:[%s2619 + $0x38] sm:$0xf]
      %v2635 = vld [vmem:[%s2619 + $0x3c] sm:$0xf]
      %s2636 = scalar_lea.vmem %s4, 320
      %v2637 = vld [vmem:[%s2636] sm:$0xf]
      %v2638 = vld [vmem:[%s2636 + $0x4] sm:$0xf]
      %v2639 = vld [vmem:[%s2636 + $0x8] sm:$0xf]
      %v2640 = vld [vmem:[%s2636 + $0xc] sm:$0xf]
      %v2641 = vld [vmem:[%s2636 + $0x10] sm:$0xf]
      %v2642 = vld [vmem:[%s2636 + $0x14] sm:$0xf]
      %v2643 = vld [vmem:[%s2636 + $0x18] sm:$0xf]
      %v2644 = vld [vmem:[%s2636 + $0x1c] sm:$0xf]
      %v2645 = vld [vmem:[%s2636 + $0x20] sm:$0xf]
      %v2646 = vld [vmem:[%s2636 + $0x24] sm:$0xf]
      %v2647 = vld [vmem:[%s2636 + $0x28] sm:$0xf]
      %v2648 = vld [vmem:[%s2636 + $0x2c] sm:$0xf]
      %v2649 = vld [vmem:[%s2636 + $0x30] sm:$0xf]
      %v2650 = vld [vmem:[%s2636 + $0x34] sm:$0xf]
      %v2651 = vld [vmem:[%s2636 + $0x38] sm:$0xf]
      %v2652 = vld [vmem:[%s2636 + $0x3c] sm:$0xf]
      %v2669 = vunpack.c.l.b16 %v2637
      %v2670 = vunpack.c.l.b16 %v2638
      %v2671 = vunpack.c.l.b16 %v2639
      %v2672 = vunpack.c.l.b16 %v2640
      %v2673 = vunpack.c.l.b16 %v2641
      %v2674 = vunpack.c.l.b16 %v2642
      %v2675 = vunpack.c.l.b16 %v2643
      %v2676 = vunpack.c.l.b16 %v2644
      %v2677 = vunpack.c.l.b16 %v2645
      %v2678 = vunpack.c.l.b16 %v2646
      %v2679 = vunpack.c.l.b16 %v2647
      %v2680 = vunpack.c.l.b16 %v2648
      %v2681 = vunpack.c.l.b16 %v2649
      %v2682 = vunpack.c.l.b16 %v2650
      %v2683 = vunpack.c.l.b16 %v2651
      %v2684 = vunpack.c.l.b16 %v2652
      %v2685 = vpack.c.b16 %v2670, %v2669
      %v2686 = vpack.c.b16 %v2672, %v2671
      %v2687 = vpack.c.b16 %v2674, %v2673
      %v2688 = vpack.c.b16 %v2676, %v2675
      %v2689 = vpack.c.b16 %v2678, %v2677
      %v2690 = vpack.c.b16 %v2680, %v2679
      %v2691 = vpack.c.b16 %v2682, %v2681
      %v2692 = vpack.c.b16 %v2684, %v2683
      %2701 = vmatprep.subr.bf16.mxu0 0
      %2702 = vmatpush1.bf16.msra.mxu0 %v2692
      %2703 = vmatprep.subr.bf16.mxu0 0
      %2704 = vmatpush1.bf16.msra.mxu0 %v2691
      %2705 = vmatprep.subr.bf16.mxu0 0
      %2706 = vmatpush1.bf16.msra.mxu0 %v2690
      %2707 = vmatprep.subr.bf16.mxu0 0
      %2708 = vmatpush1.bf16.msra.mxu0 %v2689
      %2709 = vmatprep.subr.bf16.mxu0 0
      %2710 = vmatpush1.bf16.msra.mxu0 %v2688
      %2711 = vmatprep.subr.bf16.mxu0 0
      %2712 = vmatpush1.bf16.msra.mxu0 %v2687
      %2713 = vmatprep.subr.bf16.mxu0 0
      %2714 = vmatpush1.bf16.msra.mxu0 %v2686
      %2715 = vmatprep.subr.bf16.mxu0 0
      %2716 = vmatpush1.bf16.msra.mxu0 %v2685
      %2717 = vmatprep.subr.bf16.mxu0 0
      %2718 = vmatpush2.bf16.msra.mxu0 0
      %2719 = vmatprep.subr.bf16.mxu0 0
      %2720 = vmatpush2.bf16.msra.mxu0 0
      %2721 = vmatprep.subr.bf16.mxu0 0
      %2722 = vmatpush2.bf16.msra.mxu0 0
      %2723 = vmatprep.subr.bf16.mxu0 0
      %2724 = vmatpush2.bf16.msra.mxu0 0
      %2725 = vmatprep.subr.bf16.mxu0 0
      %2726 = vmatpush2.bf16.msra.mxu0 0
      %2727 = vmatprep.subr.bf16.mxu0 0
      %2728 = vmatpush2.bf16.msra.mxu0 0
      %2729 = vmatprep.subr.bf16.mxu0 0
      %2730 = vmatpush2.bf16.msra.mxu0 0
      %2731 = vmatprep.subr.bf16.mxu0 0
      %2732 = vmatpush2.bf16.msra.mxu0 0
      %2733 = vmatprep.mubr.bf16.mxu0 0
      %2734 = vmatmul.mubr.bf16.gmra.mxu0 %v1248
      %v2735 = vpop.f32.mrf.mxu0
      %v2736 = vadd.f32 0.0, %v2735
      %v2737 = vpop.f32.mrf.mxu0
      %v2738 = vpop.f32.mrf.mxu0
      %v2739 = vadd.f32 0.0, %v2738
      %v2740 = vpop.f32.mrf.mxu0
      %2741 = vmatprep.mubr.bf16.mxu0 0
      %2742 = vmatmul.mubr.bf16.gmra.mxu0 %v1249
      %v2743 = vpop.f32.mrf.mxu0
      %v2744 = vadd.f32 0.0, %v2743
      %v2745 = vpop.f32.mrf.mxu0
      %v2746 = vpop.f32.mrf.mxu0
      %v2747 = vadd.f32 0.0, %v2746
      %v2748 = vpop.f32.mrf.mxu0
      %2749 = vmatprep.mubr.bf16.mxu0 0
      %2750 = vmatmul.mubr.bf16.gmra.mxu0 %v1250
      %v2751 = vpop.f32.mrf.mxu0
      %v2752 = vadd.f32 0.0, %v2751
      %v2753 = vpop.f32.mrf.mxu0
      %v2754 = vpop.f32.mrf.mxu0
      %v2755 = vadd.f32 0.0, %v2754
      %v2756 = vpop.f32.mrf.mxu0
      %2757 = vmatprep.mubr.bf16.mxu0 0
      %2758 = vmatmul.mubr.bf16.gmra.mxu0 %v1251
      %v2759 = vpop.f32.mrf.mxu0
      %v2760 = vadd.f32 0.0, %v2759
      %v2761 = vpop.f32.mrf.mxu0
      %v2762 = vpop.f32.mrf.mxu0
      %v2763 = vadd.f32 0.0, %v2762
      %v2764 = vpop.f32.mrf.mxu0
      %2765 = vmatprep.mubr.bf16.mxu0 0
      %2766 = vmatmul.mubr.bf16.gmra.mxu0 %v1252
      %v2767 = vpop.f32.mrf.mxu0
      %v2768 = vadd.f32 0.0, %v2767
      %v2769 = vpop.f32.mrf.mxu0
      %v2770 = vpop.f32.mrf.mxu0
      %v2771 = vadd.f32 0.0, %v2770
      %v2772 = vpop.f32.mrf.mxu0
      %2773 = vmatprep.mubr.bf16.mxu0 0
      %2774 = vmatmul.mubr.bf16.gmra.mxu0 %v1253
      %v2775 = vpop.f32.mrf.mxu0
      %v2776 = vadd.f32 0.0, %v2775
      %v2777 = vpop.f32.mrf.mxu0
      %v2778 = vpop.f32.mrf.mxu0
      %v2779 = vadd.f32 0.0, %v2778
      %v2780 = vpop.f32.mrf.mxu0
      %2781 = vmatprep.mubr.bf16.mxu0 0
      %2782 = vmatmul.mubr.bf16.gmra.mxu0 %v1254
      %v2783 = vpop.f32.mrf.mxu0
      %v2784 = vadd.f32 0.0, %v2783
      %v2785 = vpop.f32.mrf.mxu0
      %v2786 = vpop.f32.mrf.mxu0
      %v2787 = vadd.f32 0.0, %v2786
      %v2788 = vpop.f32.mrf.mxu0
      %2789 = vmatprep.mubr.bf16.mxu0 0
      %2790 = vmatmul.mubr.bf16.gmra.mxu0 %v1255
      %v2791 = vpop.f32.mrf.mxu0
      %v2792 = vadd.f32 0.0, %v2791
      %v2793 = vpop.f32.mrf.mxu0
      %v2794 = vpop.f32.mrf.mxu0
      %v2795 = vadd.f32 0.0, %v2794
      %v2796 = vpop.f32.mrf.mxu0
      %2797 = vmatprep.mubr.bf16.mxu0 0
      %2798 = vmatmul.mubr.bf16.gmra.mxu0 %v1256
      %v2799 = vpop.f32.mrf.mxu0
      %v2800 = vadd.f32 0.0, %v2799
      %v2801 = vpop.f32.mrf.mxu0
      %v2802 = vpop.f32.mrf.mxu0
      %v2803 = vadd.f32 0.0, %v2802
      %v2804 = vpop.f32.mrf.mxu0
      %2805 = vmatprep.mubr.bf16.mxu0 0
      %2806 = vmatmul.mubr.bf16.gmra.mxu0 %v1257
      %v2807 = vpop.f32.mrf.mxu0
      %v2808 = vadd.f32 0.0, %v2807
      %v2809 = vpop.f32.mrf.mxu0
      %v2810 = vpop.f32.mrf.mxu0
      %v2811 = vadd.f32 0.0, %v2810
      %v2812 = vpop.f32.mrf.mxu0
      %2813 = vmatprep.mubr.bf16.mxu0 0
      %2814 = vmatmul.mubr.bf16.gmra.mxu0 %v1258
      %v2815 = vpop.f32.mrf.mxu0
      %v2816 = vadd.f32 0.0, %v2815
      %v2817 = vpop.f32.mrf.mxu0
      %v2818 = vpop.f32.mrf.mxu0
      %v2819 = vadd.f32 0.0, %v2818
      %v2820 = vpop.f32.mrf.mxu0
      %2821 = vmatprep.mubr.bf16.mxu0 0
      %2822 = vmatmul.mubr.bf16.gmra.mxu0 %v1259
      %v2823 = vpop.f32.mrf.mxu0
      %v2824 = vadd.f32 0.0, %v2823
      %v2825 = vpop.f32.mrf.mxu0
      %v2826 = vpop.f32.mrf.mxu0
      %v2827 = vadd.f32 0.0, %v2826
      %v2828 = vpop.f32.mrf.mxu0
      %2829 = vdwg.mxu0
      %v2846 = vunpack.c.l.b16 %v2620
      %v2847 = vunpack.c.l.b16 %v2621
      %v2848 = vunpack.c.l.b16 %v2622
      %v2849 = vunpack.c.l.b16 %v2623
      %v2850 = vunpack.c.l.b16 %v2624
      %v2851 = vunpack.c.l.b16 %v2625
      %v2852 = vunpack.c.l.b16 %v2626
      %v2853 = vunpack.c.l.b16 %v2627
      %v2854 = vunpack.c.l.b16 %v2628
      %v2855 = vunpack.c.l.b16 %v2629
      %v2856 = vunpack.c.l.b16 %v2630
      %v2857 = vunpack.c.l.b16 %v2631
      %v2858 = vunpack.c.l.b16 %v2632
      %v2859 = vunpack.c.l.b16 %v2633
      %v2860 = vunpack.c.l.b16 %v2634
      %v2861 = vunpack.c.l.b16 %v2635
      %v2862 = vpack.c.b16 %v2847, %v2846
      %v2863 = vpack.c.b16 %v2849, %v2848
      %v2864 = vpack.c.b16 %v2851, %v2850
      %v2865 = vpack.c.b16 %v2853, %v2852
      %v2866 = vpack.c.b16 %v2855, %v2854
      %v2867 = vpack.c.b16 %v2857, %v2856
      %v2868 = vpack.c.b16 %v2859, %v2858
      %v2869 = vpack.c.b16 %v2861, %v2860
      %2878 = vmatprep.subr.bf16.mxu0 0
      %2879 = vmatpush1.bf16.msra.mxu0 %v2869
      %2880 = vmatprep.subr.bf16.mxu0 0
      %2881 = vmatpush1.bf16.msra.mxu0 %v2868
      %2882 = vmatprep.subr.bf16.mxu0 0
      %2883 = vmatpush1.bf16.msra.mxu0 %v2867
      %2884 = vmatprep.subr.bf16.mxu0 0
      %2885 = vmatpush1.bf16.msra.mxu0 %v2866
      %2886 = vmatprep.subr.bf16.mxu0 0
      %2887 = vmatpush1.bf16.msra.mxu0 %v2865
      %2888 = vmatprep.subr.bf16.mxu0 0
      %2889 = vmatpush1.bf16.msra.mxu0 %v2864
      %2890 = vmatprep.subr.bf16.mxu0 0
      %2891 = vmatpush1.bf16.msra.mxu0 %v2863
      %2892 = vmatprep.subr.bf16.mxu0 0
      %2893 = vmatpush1.bf16.msra.mxu0 %v2862
      %2894 = vmatprep.subr.bf16.mxu0 0
      %2895 = vmatpush2.bf16.msra.mxu0 0
      %2896 = vmatprep.subr.bf16.mxu0 0
      %2897 = vmatpush2.bf16.msra.mxu0 0
      %2898 = vmatprep.subr.bf16.mxu0 0
      %2899 = vmatpush2.bf16.msra.mxu0 0
      %2900 = vmatprep.subr.bf16.mxu0 0
      %2901 = vmatpush2.bf16.msra.mxu0 0
      %2902 = vmatprep.subr.bf16.mxu0 0
      %2903 = vmatpush2.bf16.msra.mxu0 0
      %2904 = vmatprep.subr.bf16.mxu0 0
      %2905 = vmatpush2.bf16.msra.mxu0 0
      %2906 = vmatprep.subr.bf16.mxu0 0
      %2907 = vmatpush2.bf16.msra.mxu0 0
      %2908 = vmatprep.subr.bf16.mxu0 0
      %2909 = vmatpush2.bf16.msra.mxu0 0
      %2910 = vmatprep.mubr.bf16.mxu0 0
      %2911 = vmatmul.mubr.bf16.gmra.mxu0 %v1489
      %v2912 = vpop.f32.mrf.mxu0
      %v2913 = vadd.f32 %v2736, %v2912
      %v2914 = vpop.f32.mrf.mxu0
      %v2915 = vpop.f32.mrf.mxu0
      %v2916 = vadd.f32 %v2739, %v2915
      %v2917 = vpop.f32.mrf.mxu0
      %2918 = vmatprep.mubr.bf16.mxu0 0
      %2919 = vmatmul.mubr.bf16.gmra.mxu0 %v1490
      %v2920 = vpop.f32.mrf.mxu0
      %v2921 = vadd.f32 %v2744, %v2920
      %v2922 = vpop.f32.mrf.mxu0
      %v2923 = vpop.f32.mrf.mxu0
      %v2924 = vadd.f32 %v2747, %v2923
      %v2925 = vpop.f32.mrf.mxu0
      %2926 = vmatprep.mubr.bf16.mxu0 0
      %2927 = vmatmul.mubr.bf16.gmra.mxu0 %v1491
      %v2928 = vpop.f32.mrf.mxu0
      %v2929 = vadd.f32 %v2752, %v2928
      %v2930 = vpop.f32.mrf.mxu0
      %v2931 = vpop.f32.mrf.mxu0
      %v2932 = vadd.f32 %v2755, %v2931
      %v2933 = vpop.f32.mrf.mxu0
      %2934 = vmatprep.mubr.bf16.mxu0 0
      %2935 = vmatmul.mubr.bf16.gmra.mxu0 %v1492
      %v2936 = vpop.f32.mrf.mxu0
      %v2937 = vadd.f32 %v2760, %v2936
      %v2938 = vpop.f32.mrf.mxu0
      %v2939 = vpop.f32.mrf.mxu0
      %v2940 = vadd.f32 %v2763, %v2939
      %v2941 = vpop.f32.mrf.mxu0
      %2942 = vmatprep.mubr.bf16.mxu0 0
      %2943 = vmatmul.mubr.bf16.gmra.mxu0 %v1493
      %v2944 = vpop.f32.mrf.mxu0
      %v2945 = vadd.f32 %v2768, %v2944
      %v2946 = vpop.f32.mrf.mxu0
      %v2947 = vpop.f32.mrf.mxu0
      %v2948 = vadd.f32 %v2771, %v2947
      %v2949 = vpop.f32.mrf.mxu0
      %2950 = vmatprep.mubr.bf16.mxu0 0
      %2951 = vmatmul.mubr.bf16.gmra.mxu0 %v1494
      %v2952 = vpop.f32.mrf.mxu0
      %v2953 = vadd.f32 %v2776, %v2952
      %v2954 = vpop.f32.mrf.mxu0
      %v2955 = vpop.f32.mrf.mxu0
      %v2956 = vadd.f32 %v2779, %v2955
      %v2957 = vpop.f32.mrf.mxu0
      %2958 = vmatprep.mubr.bf16.mxu0 0
      %2959 = vmatmul.mubr.bf16.gmra.mxu0 %v1495
      %v2960 = vpop.f32.mrf.mxu0
      %v2961 = vadd.f32 %v2784, %v2960
      %v2962 = vpop.f32.mrf.mxu0
      %v2963 = vpop.f32.mrf.mxu0
      %v2964 = vadd.f32 %v2787, %v2963
      %v2965 = vpop.f32.mrf.mxu0
      %2966 = vmatprep.mubr.bf16.mxu0 0
      %2967 = vmatmul.mubr.bf16.gmra.mxu0 %v1496
      %v2968 = vpop.f32.mrf.mxu0
      %v2969 = vadd.f32 %v2792, %v2968
      %v2970 = vpop.f32.mrf.mxu0
      %v2971 = vpop.f32.mrf.mxu0
      %v2972 = vadd.f32 %v2795, %v2971
      %v2973 = vpop.f32.mrf.mxu0
      %2974 = vmatprep.mubr.bf16.mxu0 0
      %2975 = vmatmul.mubr.bf16.gmra.mxu0 %v1497
      %v2976 = vpop.f32.mrf.mxu0
      %v2977 = vadd.f32 %v2800, %v2976
      %v2978 = vpop.f32.mrf.mxu0
      %v2979 = vpop.f32.mrf.mxu0
      %v2980 = vadd.f32 %v2803, %v2979
      %v2981 = vpop.f32.mrf.mxu0
      %2982 = vmatprep.mubr.bf16.mxu0 0
      %2983 = vmatmul.mubr.bf16.gmra.mxu0 %v1498
      %v2984 = vpop.f32.mrf.mxu0
      %v2985 = vadd.f32 %v2808, %v2984
      %v2986 = vpop.f32.mrf.mxu0
      %v2987 = vpop.f32.mrf.mxu0
      %v2988 = vadd.f32 %v2811, %v2987
      %v2989 = vpop.f32.mrf.mxu0
      %2990 = vmatprep.mubr.bf16.mxu0 0
      %2991 = vmatmul.mubr.bf16.gmra.mxu0 %v1499
      %v2992 = vpop.f32.mrf.mxu0
      %v2993 = vadd.f32 %v2816, %v2992
      %v2994 = vpop.f32.mrf.mxu0
      %v2995 = vpop.f32.mrf.mxu0
      %v2996 = vadd.f32 %v2819, %v2995
      %v2997 = vpop.f32.mrf.mxu0
      %2998 = vmatprep.mubr.bf16.mxu0 0
      %2999 = vmatmul.mubr.bf16.gmra.mxu0 %v1500
      %v3000 = vpop.f32.mrf.mxu0
      %v3001 = vadd.f32 %v2824, %v3000
      %v3002 = vpop.f32.mrf.mxu0
      %v3003 = vpop.f32.mrf.mxu0
      %v3004 = vadd.f32 %v2827, %v3003
      %v3005 = vpop.f32.mrf.mxu0
      %3006 = vdwg.mxu0
      %s3007 = scalar_lea.vmem %s4, 512
      %v3008 = vld [vmem:[%s3007] sm:$0xf]
      %v3009 = vld [vmem:[%s3007 + $0x4] sm:$0xf]
      %v3010 = vld [vmem:[%s3007 + $0x8] sm:$0xf]
      %v3011 = vld [vmem:[%s3007 + $0xc] sm:$0xf]
      %v3012 = vld [vmem:[%s3007 + $0x10] sm:$0xf]
      %v3013 = vld [vmem:[%s3007 + $0x14] sm:$0xf]
      %v3014 = vld [vmem:[%s3007 + $0x18] sm:$0xf]
      %v3015 = vld [vmem:[%s3007 + $0x1c] sm:$0xf]
      %v3016 = vld [vmem:[%s3007 + $0x20] sm:$0xf]
      %v3017 = vld [vmem:[%s3007 + $0x24] sm:$0xf]
      %v3018 = vld [vmem:[%s3007 + $0x28] sm:$0xf]
      %v3019 = vld [vmem:[%s3007 + $0x2c] sm:$0xf]
      %v3020 = vld [vmem:[%s3007 + $0x30] sm:$0xf]
      %v3021 = vld [vmem:[%s3007 + $0x34] sm:$0xf]
      %v3022 = vld [vmem:[%s3007 + $0x38] sm:$0xf]
      %v3023 = vld [vmem:[%s3007 + $0x3c] sm:$0xf]
      %v3040 = vunpack.c.l.b16 %v3008
      %v3041 = vunpack.c.l.b16 %v3009
      %v3042 = vunpack.c.l.b16 %v3010
      %v3043 = vunpack.c.l.b16 %v3011
      %v3044 = vunpack.c.l.b16 %v3012
      %v3045 = vunpack.c.l.b16 %v3013
      %v3046 = vunpack.c.l.b16 %v3014
      %v3047 = vunpack.c.l.b16 %v3015
      %v3048 = vunpack.c.l.b16 %v3016
      %v3049 = vunpack.c.l.b16 %v3017
      %v3050 = vunpack.c.l.b16 %v3018
      %v3051 = vunpack.c.l.b16 %v3019
      %v3052 = vunpack.c.l.b16 %v3020
      %v3053 = vunpack.c.l.b16 %v3021
      %v3054 = vunpack.c.l.b16 %v3022
      %v3055 = vunpack.c.l.b16 %v3023
      %v3056 = vpack.c.b16 %v3041, %v3040
      %v3057 = vpack.c.b16 %v3043, %v3042
      %v3058 = vpack.c.b16 %v3045, %v3044
      %v3059 = vpack.c.b16 %v3047, %v3046
      %v3060 = vpack.c.b16 %v3049, %v3048
      %v3061 = vpack.c.b16 %v3051, %v3050
      %v3062 = vpack.c.b16 %v3053, %v3052
      %v3063 = vpack.c.b16 %v3055, %v3054
      %3072 = vmatprep.subr.bf16.mxu0 0
      %3073 = vmatpush1.bf16.msra.mxu0 %v3063
      %3074 = vmatprep.subr.bf16.mxu0 0
      %3075 = vmatpush1.bf16.msra.mxu0 %v3062
      %3076 = vmatprep.subr.bf16.mxu0 0
      %3077 = vmatpush1.bf16.msra.mxu0 %v3061
      %3078 = vmatprep.subr.bf16.mxu0 0
      %3079 = vmatpush1.bf16.msra.mxu0 %v3060
      %3080 = vmatprep.subr.bf16.mxu0 0
      %3081 = vmatpush1.bf16.msra.mxu0 %v3059
      %3082 = vmatprep.subr.bf16.mxu0 0
      %3083 = vmatpush1.bf16.msra.mxu0 %v3058
      %3084 = vmatprep.subr.bf16.mxu0 0
      %3085 = vmatpush1.bf16.msra.mxu0 %v3057
      %3086 = vmatprep.subr.bf16.mxu0 0
      %3087 = vmatpush1.bf16.msra.mxu0 %v3056
      %3088 = vmatprep.subr.bf16.mxu0 0
      %3089 = vmatpush2.bf16.msra.mxu0 0
      %3090 = vmatprep.subr.bf16.mxu0 0
      %3091 = vmatpush2.bf16.msra.mxu0 0
      %3092 = vmatprep.subr.bf16.mxu0 0
      %3093 = vmatpush2.bf16.msra.mxu0 0
      %3094 = vmatprep.subr.bf16.mxu0 0
      %3095 = vmatpush2.bf16.msra.mxu0 0
      %3096 = vmatprep.subr.bf16.mxu0 0
      %3097 = vmatpush2.bf16.msra.mxu0 0
      %3098 = vmatprep.subr.bf16.mxu0 0
      %3099 = vmatpush2.bf16.msra.mxu0 0
      %3100 = vmatprep.subr.bf16.mxu0 0
      %3101 = vmatpush2.bf16.msra.mxu0 0
      %3102 = vmatprep.subr.bf16.mxu0 0
      %3103 = vmatpush2.bf16.msra.mxu0 0
      %3104 = vmatprep.mubr.bf16.mxu0 0
      %3105 = vmatmul.mubr.bf16.gmra.mxu0 %v1747
      %v3106 = vpop.f32.mrf.mxu0
      %v3107 = vadd.f32 0.0, %v3106
      %v3108 = vpop.f32.mrf.mxu0
      %v3109 = vpop.f32.mrf.mxu0
      %v3110 = vadd.f32 0.0, %v3109
      %v3111 = vpop.f32.mrf.mxu0
      %3112 = vmatprep.mubr.bf16.mxu0 0
      %3113 = vmatmul.mubr.bf16.gmra.mxu0 %v1748
      %v3114 = vpop.f32.mrf.mxu0
      %v3115 = vadd.f32 0.0, %v3114
      %v3116 = vpop.f32.mrf.mxu0
      %v3117 = vpop.f32.mrf.mxu0
      %v3118 = vadd.f32 0.0, %v3117
      %v3119 = vpop.f32.mrf.mxu0
      %3120 = vmatprep.mubr.bf16.mxu0 0
      %3121 = vmatmul.mubr.bf16.gmra.mxu0 %v1749
      %v3122 = vpop.f32.mrf.mxu0
      %v3123 = vadd.f32 0.0, %v3122
      %v3124 = vpop.f32.mrf.mxu0
      %v3125 = vpop.f32.mrf.mxu0
      %v3126 = vadd.f32 0.0, %v3125
      %v3127 = vpop.f32.mrf.mxu0
      %3128 = vmatprep.mubr.bf16.mxu0 0
      %3129 = vmatmul.mubr.bf16.gmra.mxu0 %v1750
      %v3130 = vpop.f32.mrf.mxu0
      %v3131 = vadd.f32 0.0, %v3130
      %v3132 = vpop.f32.mrf.mxu0
      %v3133 = vpop.f32.mrf.mxu0
      %v3134 = vadd.f32 0.0, %v3133
      %v3135 = vpop.f32.mrf.mxu0
      %3136 = vmatprep.mubr.bf16.mxu0 0
      %3137 = vmatmul.mubr.bf16.gmra.mxu0 %v1751
      %v3138 = vpop.f32.mrf.mxu0
      %v3139 = vadd.f32 0.0, %v3138
      %v3140 = vpop.f32.mrf.mxu0
      %v3141 = vpop.f32.mrf.mxu0
      %v3142 = vadd.f32 0.0, %v3141
      %v3143 = vpop.f32.mrf.mxu0
      %3144 = vmatprep.mubr.bf16.mxu0 0
      %3145 = vmatmul.mubr.bf16.gmra.mxu0 %v1752
      %v3146 = vpop.f32.mrf.mxu0
      %v3147 = vadd.f32 0.0, %v3146
      %v3148 = vpop.f32.mrf.mxu0
      %v3149 = vpop.f32.mrf.mxu0
      %v3150 = vadd.f32 0.0, %v3149
      %v3151 = vpop.f32.mrf.mxu0
      %3152 = vmatprep.mubr.bf16.mxu0 0
      %3153 = vmatmul.mubr.bf16.gmra.mxu0 %v1753
      %v3154 = vpop.f32.mrf.mxu0
      %v3155 = vadd.f32 0.0, %v3154
      %v3156 = vpop.f32.mrf.mxu0
      %v3157 = vpop.f32.mrf.mxu0
      %v3158 = vadd.f32 0.0, %v3157
      %v3159 = vpop.f32.mrf.mxu0
      %3160 = vmatprep.mubr.bf16.mxu0 0
      %3161 = vmatmul.mubr.bf16.gmra.mxu0 %v1754
      %v3162 = vpop.f32.mrf.mxu0
      %v3163 = vadd.f32 0.0, %v3162
      %v3164 = vpop.f32.mrf.mxu0
      %v3165 = vpop.f32.mrf.mxu0
      %v3166 = vadd.f32 0.0, %v3165
      %v3167 = vpop.f32.mrf.mxu0
      %3168 = vmatprep.mubr.bf16.mxu0 0
      %3169 = vmatmul.mubr.bf16.gmra.mxu0 %v1755
      %v3170 = vpop.f32.mrf.mxu0
      %v3171 = vadd.f32 0.0, %v3170
      %v3172 = vpop.f32.mrf.mxu0
      %v3173 = vpop.f32.mrf.mxu0
      %v3174 = vadd.f32 0.0, %v3173
      %v3175 = vpop.f32.mrf.mxu0
      %3176 = vmatprep.mubr.bf16.mxu0 0
      %3177 = vmatmul.mubr.bf16.gmra.mxu0 %v1756
      %v3178 = vpop.f32.mrf.mxu0
      %v3179 = vadd.f32 0.0, %v3178
      %v3180 = vpop.f32.mrf.mxu0
      %v3181 = vpop.f32.mrf.mxu0
      %v3182 = vadd.f32 0.0, %v3181
      %v3183 = vpop.f32.mrf.mxu0
      %3184 = vmatprep.mubr.bf16.mxu0 0
      %3185 = vmatmul.mubr.bf16.gmra.mxu0 %v1757
      %v3186 = vpop.f32.mrf.mxu0
      %v3187 = vadd.f32 0.0, %v3186
      %v3188 = vpop.f32.mrf.mxu0
      %v3189 = vpop.f32.mrf.mxu0
      %v3190 = vadd.f32 0.0, %v3189
      %v3191 = vpop.f32.mrf.mxu0
      %3192 = vmatprep.mubr.bf16.mxu0 0
      %3193 = vmatmul.mubr.bf16.gmra.mxu0 %v1758
      %v3194 = vpop.f32.mrf.mxu0
      %v3195 = vadd.f32 0.0, %v3194
      %v3196 = vpop.f32.mrf.mxu0
      %v3197 = vpop.f32.mrf.mxu0
      %v3198 = vadd.f32 0.0, %v3197
      %v3199 = vpop.f32.mrf.mxu0
      %3200 = vdwg.mxu0
      %v3201 = vadd.f32 %v2913, %v3107
      %v3202 = vadd.f32 %v2916, %v3110
      %v3203 = vadd.f32 %v2921, %v3115
      %v3204 = vadd.f32 %v2924, %v3118
      %v3205 = vadd.f32 %v2929, %v3123
      %v3206 = vadd.f32 %v2932, %v3126
      %v3207 = vadd.f32 %v2937, %v3131
      %v3208 = vadd.f32 %v2940, %v3134
      %v3209 = vadd.f32 %v2945, %v3139
      %v3210 = vadd.f32 %v2948, %v3142
      %v3211 = vadd.f32 %v2953, %v3147
      %v3212 = vadd.f32 %v2956, %v3150
      %v3213 = vadd.f32 %v2961, %v3155
      %v3214 = vadd.f32 %v2964, %v3158
      %v3215 = vadd.f32 %v2969, %v3163
      %v3216 = vadd.f32 %v2972, %v3166
      %v3217 = vadd.f32 %v2977, %v3171
      %v3218 = vadd.f32 %v2980, %v3174
      %v3219 = vadd.f32 %v2985, %v3179
      %v3220 = vadd.f32 %v2988, %v3182
      %v3221 = vadd.f32 %v2993, %v3187
      %v3222 = vadd.f32 %v2996, %v3190
      %v3223 = vadd.f32 %v3001, %v3195
      %v3224 = vadd.f32 %v3004, %v3198
      %v3225 = vrot.slane %v3201, 2
      %v3226 = vrot.slane %v3202, 2
      %v3227 = vrot.slane %v3203, 2
      %v3228 = vrot.slane %v3204, 2
      %v3229 = vrot.slane %v3205, 2
      %v3230 = vrot.slane %v3206, 2
      %v3231 = vrot.slane %v3207, 2
      %v3232 = vrot.slane %v3208, 2
      %v3233 = vrot.slane %v3209, 2
      %v3234 = vrot.slane %v3210, 2
      %v3235 = vrot.slane %v3211, 2
      %v3236 = vrot.slane %v3212, 2
      %v3237 = vrot.slane %v3213, 2
      %v3238 = vrot.slane %v3214, 2
      %v3239 = vrot.slane %v3215, 2
      %v3240 = vrot.slane %v3216, 2
      %v3241 = vrot.slane %v3217, 2
      %v3242 = vrot.slane %v3218, 2
      %v3243 = vrot.slane %v3219, 2
      %v3244 = vrot.slane %v3220, 2
      %v3245 = vrot.slane %v3221, 2
      %v3246 = vrot.slane %v3222, 2
      %v3247 = vrot.slane %v3223, 2
      %v3248 = vrot.slane %v3224, 2
      %vm3249 = vcmp.lt.s32.totalorder %v332, 6
      %v3250 = vsel %vm3249, %v3247, %v3248
      %v3251 = vsel %vm3249, %v3246, %v3247
      %v3252 = vsel %vm3249, %v3244, %v3245
      %v3253 = vsel %vm3249, %v3243, %v3244
      %v3254 = vsel %vm3249, %v3241, %v3242
      %v3255 = vsel %vm3249, %v3240, %v3241
      %v3256 = vsel %vm3249, %v3238, %v3239
      %v3257 = vsel %vm3249, %v3237, %v3238
      %v3258 = vsel %vm3249, %v3235, %v3236
      %v3259 = vsel %vm3249, %v3234, %v3235
      %v3260 = vsel %vm3249, %v3232, %v3233
      %v3261 = vsel %vm3249, %v3231, %v3232
      %v3262 = vsel %vm3249, %v3229, %v3230
      %v3263 = vsel %vm3249, %v3228, %v3229
      %v3264 = vsel %vm3249, %v3226, %v3227
      %v3265 = vsel %vm3249, %v3225, %v3226
      %v3266 = vadd.f32 %v2603, %v3265
      %v3267 = vadd.f32 %v2604, %v3264
      %v3268 = vadd.f32 %v2605, %v3263
      %v3269 = vadd.f32 %v2606, %v3262
      %v3270 = vadd.f32 %v2607, %v3261
      %v3271 = vadd.f32 %v2608, %v3260
      %v3272 = vadd.f32 %v2609, %v3259
      %v3273 = vadd.f32 %v2610, %v3258
      %v3274 = vadd.f32 %v2611, %v3257
      %v3275 = vadd.f32 %v2612, %v3256
      %v3276 = vadd.f32 %v2613, %v3255
      %v3277 = vadd.f32 %v2614, %v3254
      %v3278 = vadd.f32 %v2615, %v3253
      %v3279 = vadd.f32 %v2616, %v3252
      %v3280 = vadd.f32 %v2617, %v3251
      %v3281 = vadd.f32 %v2618, %v3250
      %v3282 = vld [vmem:[%s5] sm:$0x1]
      %v3284 = vlaneseq
      %v3285 = vshrl.u32 %v3284, 7
      %v3286 = vsub.s32 0, %v3285
      %v3287 = vrot.slane %v3282, %v3286
      %v3289 = vadd.f32 %v3266, %v3287
      %v3290 = vadd.f32 %v3267, %v3287
      %v3291 = vadd.f32 %v3268, %v3287
      %v3292 = vadd.f32 %v3269, %v3287
      %v3293 = vadd.f32 %v3270, %v3287
      %v3294 = vadd.f32 %v3271, %v3287
      %v3295 = vadd.f32 %v3272, %v3287
      %v3296 = vadd.f32 %v3273, %v3287
      %v3297 = vadd.f32 %v3274, %v3287
      %v3298 = vadd.f32 %v3275, %v3287
      %v3299 = vadd.f32 %v3276, %v3287
      %v3300 = vadd.f32 %v3277, %v3287
      %v3301 = vadd.f32 %v3278, %v3287
      %v3302 = vadd.f32 %v3279, %v3287
      %v3303 = vadd.f32 %v3280, %v3287
      %v3304 = vadd.f32 %v3281, %v3287
      %vm3305 = vcmp.gt.f32.partialorder %v3289, 0.0
      %vm3306 = vcmp.gt.f32.partialorder %v3290, 0.0
      %vm3307 = vcmp.gt.f32.partialorder %v3291, 0.0
      %vm3308 = vcmp.gt.f32.partialorder %v3292, 0.0
      %vm3309 = vcmp.gt.f32.partialorder %v3293, 0.0
      %vm3310 = vcmp.gt.f32.partialorder %v3294, 0.0
      %vm3311 = vcmp.gt.f32.partialorder %v3295, 0.0
      %vm3312 = vcmp.gt.f32.partialorder %v3296, 0.0
      %vm3313 = vcmp.gt.f32.partialorder %v3297, 0.0
      %vm3314 = vcmp.gt.f32.partialorder %v3298, 0.0
      %vm3315 = vcmp.gt.f32.partialorder %v3299, 0.0
      %vm3316 = vcmp.gt.f32.partialorder %v3300, 0.0
      %vm3317 = vcmp.gt.f32.partialorder %v3301, 0.0
      %vm3318 = vcmp.gt.f32.partialorder %v3302, 0.0
      %vm3319 = vcmp.gt.f32.partialorder %v3303, 0.0
      %vm3320 = vcmp.gt.f32.partialorder %v3304, 0.0
      %v3321 = vmul.f32 %v3289, 0.1
      %v3322 = vmul.f32 %v3290, 0.1
      %v3323 = vmul.f32 %v3291, 0.1
      %v3324 = vmul.f32 %v3292, 0.1
      %v3325 = vmul.f32 %v3293, 0.1
      %v3326 = vmul.f32 %v3294, 0.1
      %v3327 = vmul.f32 %v3295, 0.1
      %v3328 = vmul.f32 %v3296, 0.1
      %v3329 = vmul.f32 %v3297, 0.1
      %v3330 = vmul.f32 %v3298, 0.1
      %v3331 = vmul.f32 %v3299, 0.1
      %v3332 = vmul.f32 %v3300, 0.1
      %v3333 = vmul.f32 %v3301, 0.1
      %v3334 = vmul.f32 %v3302, 0.1
      %v3335 = vmul.f32 %v3303, 0.1
      %v3336 = vmul.f32 %v3304, 0.1
      %v3337 = vsel %vm3305, %v3289, %v3321
      %v3338 = vsel %vm3306, %v3290, %v3322
      %v3339 = vsel %vm3307, %v3291, %v3323
      %v3340 = vsel %vm3308, %v3292, %v3324
      %v3341 = vsel %vm3309, %v3293, %v3325
      %v3342 = vsel %vm3310, %v3294, %v3326
      %v3343 = vsel %vm3311, %v3295, %v3327
      %v3344 = vsel %vm3312, %v3296, %v3328
      %v3345 = vsel %vm3313, %v3297, %v3329
      %v3346 = vsel %vm3314, %v3298, %v3330
      %v3347 = vsel %vm3315, %v3299, %v3331
      %v3348 = vsel %vm3316, %v3300, %v3332
      %v3349 = vsel %vm3317, %v3301, %v3333
      %v3350 = vsel %vm3318, %v3302, %v3334
      %v3351 = vsel %vm3319, %v3303, %v3335
      %v3352 = vsel %vm3320, %v3304, %v3336
      %v3353 = vunpack.c.l.bf16 %v344
      %v3354 = vunpack.c.l.bf16 %v345
      %v3355 = vunpack.c.l.bf16 %v346
      %v3356 = vunpack.c.l.bf16 %v347
      %v3357 = vunpack.c.l.bf16 %v348
      %v3358 = vunpack.c.l.bf16 %v349
      %v3359 = vunpack.c.l.bf16 %v350
      %v3360 = vunpack.c.l.bf16 %v351
      %v3361 = vunpack.c.l.bf16 %v352
      %v3362 = vunpack.c.l.bf16 %v353
      %v3363 = vunpack.c.l.bf16 %v354
      %v3364 = vunpack.c.l.bf16 %v355
      %v3365 = vunpack.c.l.bf16 %v356
      %v3366 = vunpack.c.l.bf16 %v357
      %v3367 = vunpack.c.l.bf16 %v358
      %v3368 = vunpack.c.l.bf16 %v359
      %v3369 = vunpack.c.l.bf16 %v360
      %v3370 = vunpack.c.l.bf16 %v361
      %v3371 = vunpack.c.l.bf16 %v362
      %v3372 = vunpack.c.l.bf16 %v363
      %v3373 = vunpack.c.l.bf16 %v364
      %v3374 = vunpack.c.l.bf16 %v365
      %v3375 = vunpack.c.l.bf16 %v366
      %v3376 = vunpack.c.l.bf16 %v367
      %v3377 = vrot.slane %v3353, 1
      %v3378 = vrot.slane %v3354, 1
      %v3379 = vrot.slane %v3355, 1
      %v3380 = vrot.slane %v3356, 1
      %v3381 = vrot.slane %v3357, 1
      %v3382 = vrot.slane %v3358, 1
      %v3383 = vrot.slane %v3359, 1
      %v3384 = vrot.slane %v3360, 1
      %v3385 = vrot.slane %v3361, 1
      %v3386 = vrot.slane %v3362, 1
      %v3387 = vrot.slane %v3363, 1
      %v3388 = vrot.slane %v3364, 1
      %v3389 = vrot.slane %v3365, 1
      %v3390 = vrot.slane %v3366, 1
      %v3391 = vrot.slane %v3367, 1
      %v3392 = vrot.slane %v3368, 1
      %v3393 = vrot.slane %v3369, 1
      %v3394 = vrot.slane %v3370, 1
      %v3395 = vrot.slane %v3371, 1
      %v3396 = vrot.slane %v3372, 1
      %v3397 = vrot.slane %v3373, 1
      %v3398 = vrot.slane %v3374, 1
      %v3399 = vrot.slane %v3375, 1
      %v3400 = vrot.slane %v3376, 1
      %v3401 = vsel %vm2586, %v3399, %v3400
      %v3402 = vsel %vm2586, %v3398, %v3399
      %v3403 = vsel %vm2586, %v3396, %v3397
      %v3404 = vsel %vm2586, %v3395, %v3396
      %v3405 = vsel %vm2586, %v3393, %v3394
      %v3406 = vsel %vm2586, %v3392, %v3393
      %v3407 = vsel %vm2586, %v3390, %v3391
      %v3408 = vsel %vm2586, %v3389, %v3390
      %v3409 = vsel %vm2586, %v3387, %v3388
      %v3410 = vsel %vm2586, %v3386, %v3387
      %v3411 = vsel %vm2586, %v3384, %v3385
      %v3412 = vsel %vm2586, %v3383, %v3384
      %v3413 = vsel %vm2586, %v3381, %v3382
      %v3414 = vsel %vm2586, %v3380, %v3381
      %v3415 = vsel %vm2586, %v3378, %v3379
      %v3416 = vsel %vm2586, %v3377, %v3378
      %v3417 = vadd.f32 %v3337, %v3416
      %v3418 = vadd.f32 %v3338, %v3415
      %v3419 = vadd.f32 %v3339, %v3414
      %v3420 = vadd.f32 %v3340, %v3413
      %v3421 = vadd.f32 %v3341, %v3412
      %v3422 = vadd.f32 %v3342, %v3411
      %v3423 = vadd.f32 %v3343, %v3410
      %v3424 = vadd.f32 %v3344, %v3409
      %v3425 = vadd.f32 %v3345, %v3408
      %v3426 = vadd.f32 %v3346, %v3407
      %v3427 = vadd.f32 %v3347, %v3406
      %v3428 = vadd.f32 %v3348, %v3405
      %v3429 = vadd.f32 %v3349, %v3404
      %v3430 = vadd.f32 %v3350, %v3403
      %v3431 = vadd.f32 %v3351, %v3402
      %v3432 = vadd.f32 %v3352, %v3401
      %v3433 = vpack.c.bf16 %v3418, %v3417
      %v3434 = vpack.c.bf16 %v3420, %v3419
      %v3435 = vpack.c.bf16 %v3422, %v3421
      %v3436 = vpack.c.bf16 %v3424, %v3423
      %v3437 = vpack.c.bf16 %v3426, %v3425
      %v3438 = vpack.c.bf16 %v3428, %v3427
      %v3439 = vpack.c.bf16 %v3430, %v3429
      %v3440 = vpack.c.bf16 %v3432, %v3431
      %v3449 = vunpack.c.l.b16 %v3433
      %v3450 = vunpack.c.h.b16 %v3433
      %v3451 = vunpack.c.l.b16 %v3434
      %v3452 = vunpack.c.h.b16 %v3434
      %v3453 = vunpack.c.l.b16 %v3435
      %v3454 = vunpack.c.h.b16 %v3435
      %v3455 = vunpack.c.l.b16 %v3436
      %v3456 = vunpack.c.h.b16 %v3436
      %v3457 = vunpack.c.l.b16 %v3437
      %v3458 = vunpack.c.h.b16 %v3437
      %v3459 = vunpack.c.l.b16 %v3438
      %v3460 = vunpack.c.h.b16 %v3438
      %v3461 = vunpack.c.l.b16 %v3439
      %v3462 = vunpack.c.h.b16 %v3439
      %v3463 = vunpack.c.l.b16 %v3440
      %v3464 = vunpack.c.h.b16 %v3440
      %v3465 = vpack.c.b16 %v3449, %v3449
      %v3466 = vpack.c.b16 %v3450, %v3450
      %v3467 = vpack.c.b16 %v3451, %v3451
      %v3468 = vpack.c.b16 %v3452, %v3452
      %v3469 = vpack.c.b16 %v3453, %v3453
      %v3470 = vpack.c.b16 %v3454, %v3454
      %v3471 = vpack.c.b16 %v3455, %v3455
      %v3472 = vpack.c.b16 %v3456, %v3456
      %v3473 = vpack.c.b16 %v3457, %v3457
      %v3474 = vpack.c.b16 %v3458, %v3458
      %v3475 = vpack.c.b16 %v3459, %v3459
      %v3476 = vpack.c.b16 %v3460, %v3460
      %v3477 = vpack.c.b16 %v3461, %v3461
      %v3478 = vpack.c.b16 %v3462, %v3462
      %v3479 = vpack.c.b16 %v3463, %v3463
      %v3480 = vpack.c.b16 %v3464, %v3464
      %3497 = vst [vmem:[%s328] sm:$0xf] %v3465
      %3498 = vst [vmem:[%s328 + $0x4] sm:$0xf] %v3466
      %3499 = vst [vmem:[%s328 + $0x8] sm:$0xf] %v3467
      %3500 = vst [vmem:[%s328 + $0xc] sm:$0xf] %v3468
      %3501 = vst [vmem:[%s328 + $0x10] sm:$0xf] %v3469
      %3502 = vst [vmem:[%s328 + $0x14] sm:$0xf] %v3470
      %3503 = vst [vmem:[%s328 + $0x18] sm:$0xf] %v3471
      %3504 = vst [vmem:[%s328 + $0x1c] sm:$0xf] %v3472
      %3505 = vst [vmem:[%s328 + $0x20] sm:$0xf] %v3473
      %3506 = vst [vmem:[%s328 + $0x24] sm:$0xf] %v3474
      %3507 = vst [vmem:[%s328 + $0x28] sm:$0xf] %v3475
      %3508 = vst [vmem:[%s328 + $0x2c] sm:$0xf] %v3476
      %3509 = vst [vmem:[%s328 + $0x30] sm:$0xf] %v3477
      %3510 = vst [vmem:[%s328 + $0x34] sm:$0xf] %v3478
      %3511 = vst [vmem:[%s328 + $0x38] sm:$0xf] %v3479
      %3512 = vst [vmem:[%s328 + $0x3c] sm:$0xf] %v3480
      %s3513 = smul.u32 8, %s22
      %p3514 = scmp.lt.s32.totalorder %s21, 1
      %s3515 = scalar_select %p3514, %s21, 1
      %p3516 = scmp.lt.s32.totalorder %s3513, 15
      %s3517 = scalar_select %p3516, %s3513, 15
      %s3518 = smul.addr %s3517, 2
      %s3519 = smul.addr %s3515, 32
      %s3520 = sadd.s32 %s3518, %s3519
      %s3521 = smul.addr %s3520, 4
      %s3522 = scalar_lea.vmem %s6, %s3521
      // Predicated region
      $region45: #{yolo_res_block.1} parent=43 // pred_check
        %p3523 = pneg %p189
      $region46: #{yolo_res_block.1} parent=43 // pred_check_branch
        %3525 = sbr.rel (%p3523) target = $region48
      $region47: #{yolo_res_block.1} parent=43 // pred_region
        %s3526 = smul.u32 8, %s22
      $region48: #{yolo_res_block.1} parent=43 // pred_fallthru
        _
    $region44: #{yolo_res_block.1} parent=5 // pred_fallthru
      _
    %p3527 = scmp.le.s32.totalorder 2, %s12
    // Predicated region
    $region49: #{yolo_res_block.1} parent=5 // pred_check
      %p3528 = pneg %p3527
    $region50: #{yolo_res_block.1} parent=5 // pred_check_branch
      %3530 = sbr.rel (%p3528) target = $region52
    $region51: #{yolo_res_block.1} parent=5 // pred_region
      %s3531 = ssub.s32 %s12, 2
      // Predicated region
      $region53: #{yolo_res_block.1} parent=51 // pred_check
        %p3532 = pneg %p195
      $region54: #{yolo_res_block.1} parent=51 // pred_check_branch
        %3534 = sbr.rel (%p3532) target = $region56
      $region55: #{yolo_res_block.1} parent=51 // pred_region
        %s3535 = smul.u32 8, %s24
        %p3536 = scmp.lt.s32.totalorder %s23, 1
        %s3537 = scalar_select %p3536, %s23, 1
        %p3538 = scmp.lt.s32.totalorder %s3535, 15
        %s3539 = scalar_select %p3538, %s3535, 15
        %s3540 = smul.addr %s3539, 2
        %s3541 = smul.addr %s3537, 32
        %s3542 = sadd.s32 %s3540, %s3541
        %s3543 = smul.addr %s3542, 4
        %s3544 = scalar_lea.vmem %s6, %s3543
      $region56: #{yolo_res_block.1} parent=51 // pred_fallthru
        _
    $region52: #{yolo_res_block.1} parent=5 // pred_fallthru
      _
  $region6: #{yolo_res_block.1} parent=0 // loop_footer
    %s16 = sadd.s32 1, %s12
  $region7: #{yolo_res_block.1} parent=0 // loop_footer_branch
    %11 = sbr.rel target = $region3
  $region8: #{yolo_res_block.1} parent=0 // loop_exit
    _

</llo_original>
